<compile_context>
chip_gen: v6e
topology: v6e:2x2x1
jax: 0.10.0
libtpu: 0.0.40
codegen_flags: <defaults>
</compile_context>

<pallas_src>
import jax
import jax.numpy as jnp
from jax import lax
from jax.experimental import pallas as pl
from jax.experimental.pallas import tpu as pltpu

KH = KW = 4
STRIDE = 2
PAD = 1
BN_EPS = 1e-5
LRELU_SLOPE = 0.2


def _vmem_limit_bytes():
    """Per-generation VMEM budget: ~3/4 of per-core VMEM, conservative fallback."""
    cap = 64 << 20                      # v7x per-TensorCore VMEM; safe lower bound
    try:
        info = pltpu.get_tpu_info()
        cap = int(getattr(info, "vmem_capacity_bytes", cap))
    except Exception:
        pass
    return max(32 << 20, min(cap * 3 // 4, 112 << 20))


def _pick_row_tile(ho, bytes_per_row, target_bytes):
    """Largest divisor of `ho` whose row tile stays under `target_bytes` (>= 1 row)."""
    best = 1
    for d in range(1, ho + 1):
        if ho % d == 0 and d * bytes_per_row <= target_bytes:
            best = d
    return best


def _spectral_normalize(weight):
    # spectral_norm semantics: divide by the largest singular value of the
    # (out, in*kh*kw) matrix.  PyTorch runs 1 power iteration per forward with
    # persistent u/v buffers; here we use a converged (30-step) power iteration,
    # which is deterministic and stateless.
    co = weight.shape[0]
    wm = weight.reshape(co, -1)
    u = jnp.ones((co,), jnp.float32) / jnp.sqrt(co)

    def body(_, u):
        v = wm.T @ u
        v = v / (jnp.linalg.norm(v) + 1e-12)
        u = wm @ v
        u = u / (jnp.linalg.norm(u) + 1e-12)
        return u

    u = lax.fori_loop(0, 30, body, u)
    v = wm.T @ u
    v = v / (jnp.linalg.norm(v) + 1e-12)
    sigma = u @ (wm @ v)
    return weight / sigma


@jax.jit
def downblock_forward(x_nchw, weight_oihw, gamma, beta):
    """x_nchw: (N, Ci, H, W); weight_oihw: (Co, Ci, 4, 4). Returns (N, Co, Ho, Wo) f32."""
    n, ci, h, w = x_nchw.shape
    co = weight_oihw.shape[0]
    ho = (h + 2 * PAD - KH) // STRIDE + 1       # PyTorch floor formula
    wo = (w + 2 * PAD - KW) // STRIDE + 1
    hop, wop = ho + 1, wo + 1                   # phase-view extent (+1 halo row/col)

    vmem_limit = _vmem_limit_bytes()
    # pass-1 tile sized by its f32 accumulator; pass 2 is pure streaming -> bigger tile.
    toh = _pick_row_tile(ho, wo * co * 4, max(vmem_limit // 32, 1 << 19))
    toh2 = _pick_row_tile(ho, wo * co * 2, max(vmem_limit // 6, 1 << 20))
    t1 = ho // toh
    t2 = ho // toh2

    # ---- parameter prep (tiny, XLA) ----
    w_sn = _spectral_normalize(weight_oihw.astype(jnp.float32))
    w_taps = jnp.transpose(w_sn, (2, 3, 1, 0)).astype(jnp.bfloat16)   # (KH, KW, Ci, Co)

    # ---- fused-im2col inputs: 2x2 phase decomposition of the padded NHWC activation ----
    # Cost ~1x input size (vs ~4x duplicated reads + full write for materialized im2col).
    # Tap (kh, kw) of the k4s2 conv == unit-stride shifted view (kh//2, kw//2) of phase
    # (kh%2, kw%2), so every in-kernel tap access is a contiguous slice.
    x_nhwc = jnp.transpose(x_nchw, (0, 2, 3, 1)).astype(jnp.bfloat16)
    xp = jnp.pad(x_nhwc, ((0, 0), (PAD, PAD), (PAD, PAD), (0, 0)))
    phases = [xp[:, p:p + 2 * hop:2, q:q + 2 * wop:2, :][:, :hop, :wop, :]
              for p in (0, 1) for q in (0, 1)]                        # 4 x (N, hop, wop, Ci)

    # --------------------- pass 1: fused conv + BN statistics ---------------------
    def conv_stats_kernel(x00, x01, x10, x11, w_ref, y_ref, sum_ref, ssq_ref, acc_ref):
        t = pl.program_id(1)

        @pl.when(t == 0)
        def _():
            sum_ref[...] = jnp.zeros_like(sum_ref)
            ssq_ref[...] = jnp.zeros_like(ssq_ref)

        phase_refs = ((x00, x01), (x10, x11))
        oh0 = t * toh
        first = True
        for kh in range(KH):
            p, dh = kh % 2, kh // 2
            for kw in range(KW):
                q, dw = kw % 2, kw // 2
                x_tap = phase_refs[p][q][0, pl.ds(oh0 + dh, toh), pl.ds(dw, wo), :]
                contrib = jnp.dot(x_tap.reshape(toh * wo, ci), w_ref[kh, kw],
                                  preferred_element_type=jnp.float32)
                if first:
                    acc_ref[...] = contrib
                    first = False
                else:
                    acc_ref[...] += contrib

        acc = acc_ref[...]                                            # f32 conv tile
        y_ref[...] = acc.reshape(1, toh, wo, co).astype(y_ref.dtype)  # bf16 store
        sum_ref[...] += jnp.sum(acc, axis=0).reshape(1, 1, co)        # stats from f32
        ssq_ref[...] += jnp.sum(acc * acc, axis=0).reshape(1, 1, co)

    # TODO(synk): for very large per-image footprints (H*W*Ci*2B x 8 buffers > VMEM
    # budget) or huge Ci*Co, add H-halo / Ci tiling instead of keeping whole phase
    # images resident per batch element.
    phase_spec = pl.BlockSpec((1, hop, wop, ci), lambda nn, tt: (nn, 0, 0, 0))
    stat_spec = pl.BlockSpec((1, 1, co), lambda nn, tt: (nn, 0, 0))
    pass1_cost = pl.CostEstimate(
        flops=2 * n * ho * wo * KH * KW * ci * co,
        transcendentals=0,
        bytes_accessed=(4 * n * hop * wop * ci * 2 + KH * KW * ci * co * 2
                        + n * ho * wo * co * 2 + 2 * n * co * 4))

    y_nhwc, ch_sum, ch_ssq = pl.pallas_call(
        conv_stats_kernel,
        out_shape=[
            jax.ShapeDtypeStruct((n, ho, wo, co), jnp.bfloat16),   # conv output (bf16)
            jax.ShapeDtypeStruct((n, 1, co), jnp.float32),         # per-image channel sum
            jax.ShapeDtypeStruct((n, 1, co), jnp.float32),         # per-image channel sum sq
        ],
        grid=(n, t1),
        in_specs=[phase_spec, phase_spec, phase_spec, phase_spec,
                  pl.BlockSpec((KH, KW, ci, co), lambda nn, tt: (0, 0, 0, 0))],
        out_specs=[
            pl.BlockSpec((1, toh, wo, co), lambda nn, tt: (nn, tt, 0, 0)),
            stat_spec, stat_spec,
        ],
        scratch_shapes=[pltpu.VMEM((toh * wo, co), jnp.float32)],
        compiler_params=pltpu.CompilerParams(
            dimension_semantics=("parallel", "arbitrary"),   # batch across cores, rows reduce
            vmem_limit_bytes=vmem_limit),
        cost_estimate=pass1_cost,
    )(phases[0], phases[1], phases[2], phases[3], w_taps)

    # ---- fold train-mode BN into a per-channel affine (tiny XLA math) ----
    m_total = n * ho * wo
    total_sum = jnp.sum(ch_sum, axis=0)                      # combine per-image partials
    total_ssq = jnp.sum(ch_ssq, axis=0)
    mean = total_sum * (1.0 / m_total)
    # TODO(synk): Welford-style combine of the per-image partials would avoid the
    # E[y^2]-E[y]^2 cancellation in extreme mean/var regimes; fine for conv activations.
    var = jnp.maximum(total_ssq * (1.0 / m_total) - mean * mean, 0.0)
    inv_std = lax.rsqrt(var + BN_EPS)
    scale = gamma.astype(jnp.float32).reshape(1, co) * inv_std
    shift = beta.astype(jnp.float32).reshape(1, co) - mean * scale
    scale4 = scale.reshape(1, 1, 1, co)
    shift4 = shift.reshape(1, 1, 1, co)

    # --------------------- pass 2: BN affine + LeakyReLU (in place) ---------------------
    def bn_act_kernel(y_ref, scale_ref, shift_ref, o_ref):
        z = y_ref[...].astype(jnp.float32) * scale_ref[...] + shift_ref[...]
        o_ref[...] = jnp.where(z >= 0, z, LRELU_SLOPE * z).astype(o_ref.dtype)

    row_spec2 = pl.BlockSpec((1, toh2, wo, co), lambda nn, tt: (nn, tt, 0, 0))
    vec_spec2 = pl.BlockSpec((1, 1, 1, co), lambda nn, tt: (0, 0, 0, 0))
    pass2_cost = pl.CostEstimate(
        flops=4 * n * ho * wo * co,
        transcendentals=0,
        bytes_accessed=2 * n * ho * wo * co * 2 + 2 * co * 4)

    out_nhwc = pl.pallas_call(
        bn_act_kernel,
        out_shape=jax.ShapeDtypeStruct((n, ho, wo, co), jnp.bfloat16),
        grid=(n, t2),
        in_specs=[row_spec2, vec_spec2, vec_spec2],
        out_specs=row_spec2,
        input_output_aliases={0: 0},        # y is dead after this pass -> reuse its buffer
        compiler_params=pltpu.CompilerParams(
            dimension_semantics=("parallel", "parallel"),
            vmem_limit_bytes=vmem_limit),
        cost_estimate=pass2_cost,
    )(y_nhwc, scale4, shift4)

    # TODO(synk): keep the activation NHWC (and bf16) end-to-end when the consumer allows
    # it — this NCHW transpose is an extra full-tensor HBM round trip outside the kernels.
    return jnp.transpose(out_nhwc, (0, 3, 1, 2)).astype(jnp.float32)


# ------------------------------ pure-JAX reference ---------------------------------

def _reference(x_nchw, weight_oihw, gamma, beta):
    # Same bf16 conv operands / f32 accumulation as the kernel; BN + LeakyReLU in f32.
    w_sn = _spectral_normalize(weight_oihw.astype(jnp.float32))
    y = lax.conv_general_dilated(
        x_nchw.astype(jnp.bfloat16), w_sn.astype(jnp.bfloat16),
        window_strides=(STRIDE, STRIDE), padding=((PAD, PAD), (PAD, PAD)),
        dimension_numbers=("NCHW", "OIHW", "NCHW"),
        preferred_element_type=jnp.float32)
    mean = jnp.mean(y, axis=(0, 2, 3), keepdims=True)
    var = jnp.mean((y - mean) ** 2, axis=(0, 2, 3), keepdims=True)
    xhat = (y - mean) * lax.rsqrt(var + BN_EPS)
    z = xhat * gamma.reshape(1, -1, 1, 1) + beta.reshape(1, -1, 1, 1)
    return jnp.where(z >= 0, z, LRELU_SLOPE * z)


if __name__ == "__main__":
    key = jax.random.PRNGKey(0)
    kx, kw, kg, kb = jax.random.split(key, 4)

    N, CI, H, W = 2, 4, 16, 16
    CO = 8

    x = jax.random.normal(kx, (N, CI, H, W), dtype=jnp.float32)
    weight = jax.random.normal(kw, (CO, CI, KH, KW), dtype=jnp.float32) * 0.1
    # BatchNorm2d default init is gamma=1, beta=0; perturb so the affine path is exercised.
    gamma = 1.0 + 0.1 * jax.random.normal(kg, (CO,), dtype=jnp.float32)
    beta = 0.1 * jax.random.normal(kb, (CO,), dtype=jnp.float32)

    out = jax.block_until_ready(downblock_forward(x, weight, gamma, beta))
    ref = jax.block_until_ready(_reference(x, weight, gamma, beta))

    assert out.shape == (N, CO, H // 2, W // 2), out.shape
    max_err = float(jnp.max(jnp.abs(out - ref)))
    # The bf16 conv intermediate + aliased bf16 activation bound the error at ~1 bf16 ulp
    # of y carried through the BN affine (~1e-2 worst case); BN stats stay in f32.
    assert jnp.allclose(out, ref, atol=2e-2, rtol=2e-2), max_err

    print("KERNEL_OK")
</pallas_src>

<mosaic_0001>
module attributes {stable_mosaic.version = 11 : i64} {
  func.func @conv_stats_kernel(%arg0: i32, %arg1: i32, %arg2: memref<1x9x9x4xbf16, #tpu.memory_space<vmem>>, %arg3: memref<1x9x9x4xbf16, #tpu.memory_space<vmem>>, %arg4: memref<1x9x9x4xbf16, #tpu.memory_space<vmem>>, %arg5: memref<1x9x9x4xbf16, #tpu.memory_space<vmem>>, %arg6: memref<4x4x4x8xbf16, #tpu.memory_space<vmem>>, %arg7: memref<1x8x8x8xbf16, #tpu.memory_space<vmem>>, %arg8: memref<1x1x8xf32, #tpu.memory_space<vmem>>, %arg9: memref<1x1x8xf32, #tpu.memory_space<vmem>>, %arg10: memref<64x8xf32, #tpu.memory_space<vmem>>) attributes {dimension_semantics = [#tpu.dimension_semantics<parallel>, #tpu.dimension_semantics<arbitrary>], iteration_bounds = array<i64: 2, 1>, scalar_prefetch = 0 : i64, scratch_operands = 1 : i64, tpu.core_type = #tpu.core_type<tc>, window_params = [{transform_indices = @transform_0, window_bounds = array<i64: 1, 9, 9, 4>}, {transform_indices = @transform_1, window_bounds = array<i64: 1, 9, 9, 4>}, {transform_indices = @transform_2, window_bounds = array<i64: 1, 9, 9, 4>}, {transform_indices = @transform_3, window_bounds = array<i64: 1, 9, 9, 4>}, {pipeline_mode = #tpu.pipeline_mode<synchronous>, transform_indices = @transform_4, window_bounds = array<i64: 4, 4, 4, 8>}, {transform_indices = @transform_5, window_bounds = array<i64: 1, 8, 8, 8>}, {transform_indices = @transform_6, window_bounds = array<i64: 1, 1, 8>}, {transform_indices = @transform_7, window_bounds = array<i64: 1, 1, 8>}]} {
    %c0_i32 = arith.constant 0 : i32
    %0 = arith.cmpi eq, %arg1, %c0_i32 : i32
    %1 = arith.extui %0 : i1 to i32
    %c0_i32_0 = arith.constant 0 : i32
    %2 = arith.cmpi ne, %1, %c0_i32_0 : i32
    scf.if %2 {
      %cst_221 = arith.constant 0.000000e+00 : f32
      %193 = vector.broadcast %cst_221 : f32 to vector<1x1x8xf32>
      %c0_222 = arith.constant 0 : index
      %c0_223 = arith.constant 0 : index
      %c0_224 = arith.constant 0 : index
      %194 = vector.load %arg8[%c0_222, %c0_223, %c0_224] : memref<1x1x8xf32, #tpu.memory_space<vmem>>, vector<1x1x8xf32>
      tpu.vector_store %arg8[%c0_222, %c0_223, %c0_224], %193 {strides = array<i32>} : memref<1x1x8xf32, #tpu.memory_space<vmem>>, vector<1x1x8xf32>,
      %cst_225 = arith.constant 0.000000e+00 : f32
      %195 = vector.broadcast %cst_225 : f32 to vector<1x1x8xf32>
      %c0_226 = arith.constant 0 : index
      %c0_227 = arith.constant 0 : index
      %c0_228 = arith.constant 0 : index
      %196 = vector.load %arg9[%c0_226, %c0_227, %c0_228] : memref<1x1x8xf32, #tpu.memory_space<vmem>>, vector<1x1x8xf32>
      tpu.vector_store %arg9[%c0_226, %c0_227, %c0_228], %195 {strides = array<i32>} : memref<1x1x8xf32, #tpu.memory_space<vmem>>, vector<1x1x8xf32>,
    } else {
    }
    %c8_i32 = arith.constant 8 : i32
    %3 = arith.muli %arg1, %c8_i32 : i32
    %c0_i32_1 = arith.constant 0 : i32
    %4 = arith.addi %3, %c0_i32_1 : i32
    %c0 = arith.constant 0 : index
    %5 = arith.index_cast %4 : i32 to index
    %c0_2 = arith.constant 0 : index
    %c0_3 = arith.constant 0 : index
    %6 = vector.load %arg2[%c0, %5, %c0_2, %c0_3] : memref<1x9x9x4xbf16, #tpu.memory_space<vmem>>, vector<1x8x8x4xbf16>
    %7 = vector.shape_cast %6 : vector<1x8x8x4xbf16> to vector<8x8x4xbf16>
    %8 = vector.shape_cast %7 : vector<8x8x4xbf16> to vector<64x4xbf16>
    %c0_4 = arith.constant 0 : index
    %c0_5 = arith.constant 0 : index
    %c0_6 = arith.constant 0 : index
    %c0_7 = arith.constant 0 : index
    %9 = vector.load %arg6[%c0_4, %c0_5, %c0_6, %c0_7] : memref<4x4x4x8xbf16, #tpu.memory_space<vmem>>, vector<1x1x4x8xbf16>
    %10 = vector.shape_cast %9 : vector<1x1x4x8xbf16> to vector<4x8xbf16>
    %cst = arith.constant dense<0.000000e+00> : vector<64x8xf32>
    %11 = tpu.matmul %8, %10, %cst {dimension_numbers = #tpu.dot_dimension_numbers<[1], [0], [0], [1], [0, 0, 1, 1], [], []>} : vector<64x4xbf16>, vector<4x8xbf16>, vector<64x8xf32> -> vector<64x8xf32>
    %c0_8 = arith.constant 0 : index
    %c0_9 = arith.constant 0 : index
    %12 = vector.load %arg10[%c0_8, %c0_9] : memref<64x8xf32, #tpu.memory_space<vmem>>, vector<64x8xf32>
    tpu.vector_store %arg10[%c0_8, %c0_9], %11 {strides = array<i32>} : memref<64x8xf32, #tpu.memory_space<vmem>>, vector<64x8xf32>,
    %c0_i32_10 = arith.constant 0 : i32
    %13 = arith.addi %3, %c0_i32_10 : i32
    %c0_11 = arith.constant 0 : index
    %14 = arith.index_cast %13 : i32 to index
    %c0_12 = arith.constant 0 : index
    %c0_13 = arith.constant 0 : index
    %15 = vector.load %arg3[%c0_11, %14, %c0_12, %c0_13] : memref<1x9x9x4xbf16, #tpu.memory_space<vmem>>, vector<1x8x8x4xbf16>
    %16 = vector.shape_cast %15 : vector<1x8x8x4xbf16> to vector<8x8x4xbf16>
    %17 = vector.shape_cast %16 : vector<8x8x4xbf16> to vector<64x4xbf16>
    %c0_14 = arith.constant 0 : index
    %c1 = arith.constant 1 : index
    %c0_15 = arith.constant 0 : index
    %c0_16 = arith.constant 0 : index
    %18 = vector.load %arg6[%c0_14, %c1, %c0_15, %c0_16] : memref<4x4x4x8xbf16, #tpu.memory_space<vmem>>, vector<1x1x4x8xbf16>
    %19 = vector.shape_cast %18 : vector<1x1x4x8xbf16> to vector<4x8xbf16>
    %cst_17 = arith.constant dense<0.000000e+00> : vector<64x8xf32>
    %20 = tpu.matmul %17, %19, %cst_17 {dimension_numbers = #tpu.dot_dimension_numbers<[1], [0], [0], [1], [0, 0, 1, 1], [], []>} : vector<64x4xbf16>, vector<4x8xbf16>, vector<64x8xf32> -> vector<64x8xf32>
    %c0_18 = arith.constant 0 : index
    %c0_19 = arith.constant 0 : index
    %21 = vector.load %arg10[%c0_18, %c0_19] : memref<64x8xf32, #tpu.memory_space<vmem>>, vector<64x8xf32>
    %22 = arith.addf %21, %20 : vector<64x8xf32>
    %c0_20 = arith.constant 0 : index
    %c0_21 = arith.constant 0 : index
    %23 = vector.load %arg10[%c0_20, %c0_21] : memref<64x8xf32, #tpu.memory_space<vmem>>, vector<64x8xf32>
    tpu.vector_store %arg10[%c0_20, %c0_21], %22 {strides = array<i32>} : memref<64x8xf32, #tpu.memory_space<vmem>>, vector<64x8xf32>,
    %c0_i32_22 = arith.constant 0 : i32
    %24 = arith.addi %3, %c0_i32_22 : i32
    %c0_23 = arith.constant 0 : index
    %25 = arith.index_cast %24 : i32 to index
    %c1_24 = arith.constant 1 : index
    %c0_25 = arith.constant 0 : index
    %26 = vector.load %arg2[%c0_23, %25, %c1_24, %c0_25] : memref<1x9x9x4xbf16, #tpu.memory_space<vmem>>, vector<1x8x8x4xbf16>
    %27 = vector.shape_cast %26 : vector<1x8x8x4xbf16> to vector<8x8x4xbf16>
    %28 = vector.shape_cast %27 : vector<8x8x4xbf16> to vector<64x4xbf16>
    %c0_26 = arith.constant 0 : index
    %c2 = arith.constant 2 : index
    %c0_27 = arith.constant 0 : index
    %c0_28 = arith.constant 0 : index
    %29 = vector.load %arg6[%c0_26, %c2, %c0_27, %c0_28] : memref<4x4x4x8xbf16, #tpu.memory_space<vmem>>, vector<1x1x4x8xbf16>
    %30 = vector.shape_cast %29 : vector<1x1x4x8xbf16> to vector<4x8xbf16>
    %cst_29 = arith.constant dense<0.000000e+00> : vector<64x8xf32>
    %31 = tpu.matmul %28, %30, %cst_29 {dimension_numbers = #tpu.dot_dimension_numbers<[1], [0], [0], [1], [0, 0, 1, 1], [], []>} : vector<64x4xbf16>, vector<4x8xbf16>, vector<64x8xf32> -> vector<64x8xf32>
    %c0_30 = arith.constant 0 : index
    %c0_31 = arith.constant 0 : index
    %32 = vector.load %arg10[%c0_30, %c0_31] : memref<64x8xf32, #tpu.memory_space<vmem>>, vector<64x8xf32>
    %33 = arith.addf %32, %31 : vector<64x8xf32>
    %c0_32 = arith.constant 0 : index
    %c0_33 = arith.constant 0 : index
    %34 = vector.load %arg10[%c0_32, %c0_33] : memref<64x8xf32, #tpu.memory_space<vmem>>, vector<64x8xf32>
    tpu.vector_store %arg10[%c0_32, %c0_33], %33 {strides = array<i32>} : memref<64x8xf32, #tpu.memory_space<vmem>>, vector<64x8xf32>,
    %c0_i32_34 = arith.constant 0 : i32
    %35 = arith.addi %3, %c0_i32_34 : i32
    %c0_35 = arith.constant 0 : index
    %36 = arith.index_cast %35 : i32 to index
    %c1_36 = arith.constant 1 : index
    %c0_37 = arith.constant 0 : index
    %37 = vector.load %arg3[%c0_35, %36, %c1_36, %c0_37] : memref<1x9x9x4xbf16, #tpu.memory_space<vmem>>, vector<1x8x8x4xbf16>
    %38 = vector.shape_cast %37 : vector<1x8x8x4xbf16> to vector<8x8x4xbf16>
    %39 = vector.shape_cast %38 : vector<8x8x4xbf16> to vector<64x4xbf16>
    %c0_38 = arith.constant 0 : index
    %c3 = arith.constant 3 : index
    %c0_39 = arith.constant 0 : index
    %c0_40 = arith.constant 0 : index
    %40 = vector.load %arg6[%c0_38, %c3, %c0_39, %c0_40] : memref<4x4x4x8xbf16, #tpu.memory_space<vmem>>, vector<1x1x4x8xbf16>
    %41 = vector.shape_cast %40 : vector<1x1x4x8xbf16> to vector<4x8xbf16>
    %cst_41 = arith.constant dense<0.000000e+00> : vector<64x8xf32>
    %42 = tpu.matmul %39, %41, %cst_41 {dimension_numbers = #tpu.dot_dimension_numbers<[1], [0], [0], [1], [0, 0, 1, 1], [], []>} : vector<64x4xbf16>, vector<4x8xbf16>, vector<64x8xf32> -> vector<64x8xf32>
    %c0_42 = arith.constant 0 : index
    %c0_43 = arith.constant 0 : index
    %43 = vector.load %arg10[%c0_42, %c0_43] : memref<64x8xf32, #tpu.memory_space<vmem>>, vector<64x8xf32>
    %44 = arith.addf %43, %42 : vector<64x8xf32>
    %c0_44 = arith.constant 0 : index
    %c0_45 = arith.constant 0 : index
    %45 = vector.load %arg10[%c0_44, %c0_45] : memref<64x8xf32, #tpu.memory_space<vmem>>, vector<64x8xf32>
    tpu.vector_store %arg10[%c0_44, %c0_45], %44 {strides = array<i32>} : memref<64x8xf32, #tpu.memory_space<vmem>>, vector<64x8xf32>,
    %c0_i32_46 = arith.constant 0 : i32
    %46 = arith.addi %3, %c0_i32_46 : i32
    %c0_47 = arith.constant 0 : index
    %47 = arith.index_cast %46 : i32 to index
    %c0_48 = arith.constant 0 : index
    %c0_49 = arith.constant 0 : index
    %48 = vector.load %arg4[%c0_47, %47, %c0_48, %c0_49] : memref<1x9x9x4xbf16, #tpu.memory_space<vmem>>, vector<1x8x8x4xbf16>
    %49 = vector.shape_cast %48 : vector<1x8x8x4xbf16> to vector<8x8x4xbf16>
    %50 = vector.shape_cast %49 : vector<8x8x4xbf16> to vector<64x4xbf16>
    %c1_50 = arith.constant 1 : index
    %c0_51 = arith.constant 0 : index
    %c0_52 = arith.constant 0 : index
    %c0_53 = arith.constant 0 : index
    %51 = vector.load %arg6[%c1_50, %c0_51, %c0_52, %c0_53] : memref<4x4x4x8xbf16, #tpu.memory_space<vmem>>, vector<1x1x4x8xbf16>
    %52 = vector.shape_cast %51 : vector<1x1x4x8xbf16> to vector<4x8xbf16>
    %cst_54 = arith.constant dense<0.000000e+00> : vector<64x8xf32>
    %53 = tpu.matmul %50, %52, %cst_54 {dimension_numbers = #tpu.dot_dimension_numbers<[1], [0], [0], [1], [0, 0, 1, 1], [], []>} : vector<64x4xbf16>, vector<4x8xbf16>, vector<64x8xf32> -> vector<64x8xf32>
    %c0_55 = arith.constant 0 : index
    %c0_56 = arith.constant 0 : index
    %54 = vector.load %arg10[%c0_55, %c0_56] : memref<64x8xf32, #tpu.memory_space<vmem>>, vector<64x8xf32>
    %55 = arith.addf %54, %53 : vector<64x8xf32>
    %c0_57 = arith.constant 0 : index
    %c0_58 = arith.constant 0 : index
    %56 = vector.load %arg10[%c0_57, %c0_58] : memref<64x8xf32, #tpu.memory_space<vmem>>, vector<64x8xf32>
    tpu.vector_store %arg10[%c0_57, %c0_58], %55 {strides = array<i32>} : memref<64x8xf32, #tpu.memory_space<vmem>>, vector<64x8xf32>,
    %c0_i32_59 = arith.constant 0 : i32
    %57 = arith.addi %3, %c0_i32_59 : i32
    %c0_60 = arith.constant 0 : index
    %58 = arith.index_cast %57 : i32 to index
    %c0_61 = arith.constant 0 : index
    %c0_62 = arith.constant 0 : index
    %59 = vector.load %arg5[%c0_60, %58, %c0_61, %c0_62] : memref<1x9x9x4xbf16, #tpu.memory_space<vmem>>, vector<1x8x8x4xbf16>
    %60 = vector.shape_cast %59 : vector<1x8x8x4xbf16> to vector<8x8x4xbf16>
    %61 = vector.shape_cast %60 : vector<8x8x4xbf16> to vector<64x4xbf16>
    %c1_63 = arith.constant 1 : index
    %c1_64 = arith.constant 1 : index
    %c0_65 = arith.constant 0 : index
    %c0_66 = arith.constant 0 : index
    %62 = vector.load %arg6[%c1_63, %c1_64, %c0_65, %c0_66] : memref<4x4x4x8xbf16, #tpu.memory_space<vmem>>, vector<1x1x4x8xbf16>
    %63 = vector.shape_cast %62 : vector<1x1x4x8xbf16> to vector<4x8xbf16>
    %cst_67 = arith.constant dense<0.000000e+00> : vector<64x8xf32>
    %64 = tpu.matmul %61, %63, %cst_67 {dimension_numbers = #tpu.dot_dimension_numbers<[1], [0], [0], [1], [0, 0, 1, 1], [], []>} : vector<64x4xbf16>, vector<4x8xbf16>, vector<64x8xf32> -> vector<64x8xf32>
    %c0_68 = arith.constant 0 : index
    %c0_69 = arith.constant 0 : index
    %65 = vector.load %arg10[%c0_68, %c0_69] : memref<64x8xf32, #tpu.memory_space<vmem>>, vector<64x8xf32>
    %66 = arith.addf %65, %64 : vector<64x8xf32>
    %c0_70 = arith.constant 0 : index
    %c0_71 = arith.constant 0 : index
    %67 = vector.load %arg10[%c0_70, %c0_71] : memref<64x8xf32, #tpu.memory_space<vmem>>, vector<64x8xf32>
    tpu.vector_store %arg10[%c0_70, %c0_71], %66 {strides = array<i32>} : memref<64x8xf32, #tpu.memory_space<vmem>>, vector<64x8xf32>,
    %c0_i32_72 = arith.constant 0 : i32
    %68 = arith.addi %3, %c0_i32_72 : i32
    %c0_73 = arith.constant 0 : index
    %69 = arith.index_cast %68 : i32 to index
    %c1_74 = arith.constant 1 : index
    %c0_75 = arith.constant 0 : index
    %70 = vector.load %arg4[%c0_73, %69, %c1_74, %c0_75] : memref<1x9x9x4xbf16, #tpu.memory_space<vmem>>, vector<1x8x8x4xbf16>
    %71 = vector.shape_cast %70 : vector<1x8x8x4xbf16> to vector<8x8x4xbf16>
    %72 = vector.shape_cast %71 : vector<8x8x4xbf16> to vector<64x4xbf16>
    %c1_76 = arith.constant 1 : index
    %c2_77 = arith.constant 2 : index
    %c0_78 = arith.constant 0 : index
    %c0_79 = arith.constant 0 : index
    %73 = vector.load %arg6[%c1_76, %c2_77, %c0_78, %c0_79] : memref<4x4x4x8xbf16, #tpu.memory_space<vmem>>, vector<1x1x4x8xbf16>
    %74 = vector.shape_cast %73 : vector<1x1x4x8xbf16> to vector<4x8xbf16>
    %cst_80 = arith.constant dense<0.000000e+00> : vector<64x8xf32>
    %75 = tpu.matmul %72, %74, %cst_80 {dimension_numbers = #tpu.dot_dimension_numbers<[1], [0], [0], [1], [0, 0, 1, 1], [], []>} : vector<64x4xbf16>, vector<4x8xbf16>, vector<64x8xf32> -> vector<64x8xf32>
    %c0_81 = arith.constant 0 : index
    %c0_82 = arith.constant 0 : index
    %76 = vector.load %arg10[%c0_81, %c0_82] : memref<64x8xf32, #tpu.memory_space<vmem>>, vector<64x8xf32>
    %77 = arith.addf %76, %75 : vector<64x8xf32>
    %c0_83 = arith.constant 0 : index
    %c0_84 = arith.constant 0 : index
    %78 = vector.load %arg10[%c0_83, %c0_84] : memref<64x8xf32, #tpu.memory_space<vmem>>, vector<64x8xf32>
    tpu.vector_store %arg10[%c0_83, %c0_84], %77 {strides = array<i32>} : memref<64x8xf32, #tpu.memory_space<vmem>>, vector<64x8xf32>,
    %c0_i32_85 = arith.constant 0 : i32
    %79 = arith.addi %3, %c0_i32_85 : i32
    %c0_86 = arith.constant 0 : index
    %80 = arith.index_cast %79 : i32 to index
    %c1_87 = arith.constant 1 : index
    %c0_88 = arith.constant 0 : index
    %81 = vector.load %arg5[%c0_86, %80, %c1_87, %c0_88] : memref<1x9x9x4xbf16, #tpu.memory_space<vmem>>, vector<1x8x8x4xbf16>
    %82 = vector.shape_cast %81 : vector<1x8x8x4xbf16> to vector<8x8x4xbf16>
    %83 = vector.shape_cast %82 : vector<8x8x4xbf16> to vector<64x4xbf16>
    %c1_89 = arith.constant 1 : index
    %c3_90 = arith.constant 3 : index
    %c0_91 = arith.constant 0 : index
    %c0_92 = arith.constant 0 : index
    %84 = vector.load %arg6[%c1_89, %c3_90, %c0_91, %c0_92] : memref<4x4x4x8xbf16, #tpu.memory_space<vmem>>, vector<1x1x4x8xbf16>
    %85 = vector.shape_cast %84 : vector<1x1x4x8xbf16> to vector<4x8xbf16>
    %cst_93 = arith.constant dense<0.000000e+00> : vector<64x8xf32>
    %86 = tpu.matmul %83, %85, %cst_93 {dimension_numbers = #tpu.dot_dimension_numbers<[1], [0], [0], [1], [0, 0, 1, 1], [], []>} : vector<64x4xbf16>, vector<4x8xbf16>, vector<64x8xf32> -> vector<64x8xf32>
    %c0_94 = arith.constant 0 : index
    %c0_95 = arith.constant 0 : index
    %87 = vector.load %arg10[%c0_94, %c0_95] : memref<64x8xf32, #tpu.memory_space<vmem>>, vector<64x8xf32>
    %88 = arith.addf %87, %86 : vector<64x8xf32>
    %c0_96 = arith.constant 0 : index
    %c0_97 = arith.constant 0 : index
    %89 = vector.load %arg10[%c0_96, %c0_97] : memref<64x8xf32, #tpu.memory_space<vmem>>, vector<64x8xf32>
    tpu.vector_store %arg10[%c0_96, %c0_97], %88 {strides = array<i32>} : memref<64x8xf32, #tpu.memory_space<vmem>>, vector<64x8xf32>,
    %c1_i32 = arith.constant 1 : i32
    %90 = arith.addi %3, %c1_i32 : i32
    %c0_98 = arith.constant 0 : index
    %91 = arith.index_cast %90 : i32 to index
    %c0_99 = arith.constant 0 : index
    %c0_100 = arith.constant 0 : index
    %92 = vector.load %arg2[%c0_98, %91, %c0_99, %c0_100] : memref<1x9x9x4xbf16, #tpu.memory_space<vmem>>, vector<1x8x8x4xbf16>
    %93 = vector.shape_cast %92 : vector<1x8x8x4xbf16> to vector<8x8x4xbf16>
    %94 = vector.shape_cast %93 : vector<8x8x4xbf16> to vector<64x4xbf16>
    %c2_101 = arith.constant 2 : index
    %c0_102 = arith.constant 0 : index
    %c0_103 = arith.constant 0 : index
    %c0_104 = arith.constant 0 : index
    %95 = vector.load %arg6[%c2_101, %c0_102, %c0_103, %c0_104] : memref<4x4x4x8xbf16, #tpu.memory_space<vmem>>, vector<1x1x4x8xbf16>
    %96 = vector.shape_cast %95 : vector<1x1x4x8xbf16> to vector<4x8xbf16>
    %cst_105 = arith.constant dense<0.000000e+00> : vector<64x8xf32>
    %97 = tpu.matmul %94, %96, %cst_105 {dimension_numbers = #tpu.dot_dimension_numbers<[1], [0], [0], [1], [0, 0, 1, 1], [], []>} : vector<64x4xbf16>, vector<4x8xbf16>, vector<64x8xf32> -> vector<64x8xf32>
    %c0_106 = arith.constant 0 : index
    %c0_107 = arith.constant 0 : index
    %98 = vector.load %arg10[%c0_106, %c0_107] : memref<64x8xf32, #tpu.memory_space<vmem>>, vector<64x8xf32>
    %99 = arith.addf %98, %97 : vector<64x8xf32>
    %c0_108 = arith.constant 0 : index
    %c0_109 = arith.constant 0 : index
    %100 = vector.load %arg10[%c0_108, %c0_109] : memref<64x8xf32, #tpu.memory_space<vmem>>, vector<64x8xf32>
    tpu.vector_store %arg10[%c0_108, %c0_109], %99 {strides = array<i32>} : memref<64x8xf32, #tpu.memory_space<vmem>>, vector<64x8xf32>,
    %c1_i32_110 = arith.constant 1 : i32
    %101 = arith.addi %3, %c1_i32_110 : i32
    %c0_111 = arith.constant 0 : index
    %102 = arith.index_cast %101 : i32 to index
    %c0_112 = arith.constant 0 : index
    %c0_113 = arith.constant 0 : index
    %103 = vector.load %arg3[%c0_111, %102, %c0_112, %c0_113] : memref<1x9x9x4xbf16, #tpu.memory_space<vmem>>, vector<1x8x8x4xbf16>
    %104 = vector.shape_cast %103 : vector<1x8x8x4xbf16> to vector<8x8x4xbf16>
    %105 = vector.shape_cast %104 : vector<8x8x4xbf16> to vector<64x4xbf16>
    %c2_114 = arith.constant 2 : index
    %c1_115 = arith.constant 1 : index
    %c0_116 = arith.constant 0 : index
    %c0_117 = arith.constant 0 : index
    %106 = vector.load %arg6[%c2_114, %c1_115, %c0_116, %c0_117] : memref<4x4x4x8xbf16, #tpu.memory_space<vmem>>, vector<1x1x4x8xbf16>
    %107 = vector.shape_cast %106 : vector<1x1x4x8xbf16> to vector<4x8xbf16>
    %cst_118 = arith.constant dense<0.000000e+00> : vector<64x8xf32>
    %108 = tpu.matmul %105, %107, %cst_118 {dimension_numbers = #tpu.dot_dimension_numbers<[1], [0], [0], [1], [0, 0, 1, 1], [], []>} : vector<64x4xbf16>, vector<4x8xbf16>, vector<64x8xf32> -> vector<64x8xf32>
    %c0_119 = arith.constant 0 : index
    %c0_120 = arith.constant 0 : index
    %109 = vector.load %arg10[%c0_119, %c0_120] : memref<64x8xf32, #tpu.memory_space<vmem>>, vector<64x8xf32>
    %110 = arith.addf %109, %108 : vector<64x8xf32>
    %c0_121 = arith.constant 0 : index
    %c0_122 = arith.constant 0 : index
    %111 = vector.load %arg10[%c0_121, %c0_122] : memref<64x8xf32, #tpu.memory_space<vmem>>, vector<64x8xf32>
    tpu.vector_store %arg10[%c0_121, %c0_122], %110 {strides = array<i32>} : memref<64x8xf32, #tpu.memory_space<vmem>>, vector<64x8xf32>,
    %c1_i32_123 = arith.constant 1 : i32
    %112 = arith.addi %3, %c1_i32_123 : i32
    %c0_124 = arith.constant 0 : index
    %113 = arith.index_cast %112 : i32 to index
    %c1_125 = arith.constant 1 : index
    %c0_126 = arith.constant 0 : index
    %114 = vector.load %arg2[%c0_124, %113, %c1_125, %c0_126] : memref<1x9x9x4xbf16, #tpu.memory_space<vmem>>, vector<1x8x8x4xbf16>
    %115 = vector.shape_cast %114 : vector<1x8x8x4xbf16> to vector<8x8x4xbf16>
    %116 = vector.shape_cast %115 : vector<8x8x4xbf16> to vector<64x4xbf16>
    %c2_127 = arith.constant 2 : index
    %c2_128 = arith.constant 2 : index
    %c0_129 = arith.constant 0 : index
    %c0_130 = arith.constant 0 : index
    %117 = vector.load %arg6[%c2_127, %c2_128, %c0_129, %c0_130] : memref<4x4x4x8xbf16, #tpu.memory_space<vmem>>, vector<1x1x4x8xbf16>
    %118 = vector.shape_cast %117 : vector<1x1x4x8xbf16> to vector<4x8xbf16>
    %cst_131 = arith.constant dense<0.000000e+00> : vector<64x8xf32>
    %119 = tpu.matmul %116, %118, %cst_131 {dimension_numbers = #tpu.dot_dimension_numbers<[1], [0], [0], [1], [0, 0, 1, 1], [], []>} : vector<64x4xbf16>, vector<4x8xbf16>, vector<64x8xf32> -> vector<64x8xf32>
    %c0_132 = arith.constant 0 : index
    %c0_133 = arith.constant 0 : index
    %120 = vector.load %arg10[%c0_132, %c0_133] : memref<64x8xf32, #tpu.memory_space<vmem>>, vector<64x8xf32>
    %121 = arith.addf %120, %119 : vector<64x8xf32>
    %c0_134 = arith.constant 0 : index
    %c0_135 = arith.constant 0 : index
    %122 = vector.load %arg10[%c0_134, %c0_135] : memref<64x8xf32, #tpu.memory_space<vmem>>, vector<64x8xf32>
    tpu.vector_store %arg10[%c0_134, %c0_135], %121 {strides = array<i32>} : memref<64x8xf32, #tpu.memory_space<vmem>>, vector<64x8xf32>,
    %c1_i32_136 = arith.constant 1 : i32
    %123 = arith.addi %3, %c1_i32_136 : i32
    %c0_137 = arith.constant 0 : index
    %124 = arith.index_cast %123 : i32 to index
    %c1_138 = arith.constant 1 : index
    %c0_139 = arith.constant 0 : index
    %125 = vector.load %arg3[%c0_137, %124, %c1_138, %c0_139] : memref<1x9x9x4xbf16, #tpu.memory_space<vmem>>, vector<1x8x8x4xbf16>
    %126 = vector.shape_cast %125 : vector<1x8x8x4xbf16> to vector<8x8x4xbf16>
    %127 = vector.shape_cast %126 : vector<8x8x4xbf16> to vector<64x4xbf16>
    %c2_140 = arith.constant 2 : index
    %c3_141 = arith.constant 3 : index
    %c0_142 = arith.constant 0 : index
    %c0_143 = arith.constant 0 : index
    %128 = vector.load %arg6[%c2_140, %c3_141, %c0_142, %c0_143] : memref<4x4x4x8xbf16, #tpu.memory_space<vmem>>, vector<1x1x4x8xbf16>
    %129 = vector.shape_cast %128 : vector<1x1x4x8xbf16> to vector<4x8xbf16>
    %cst_144 = arith.constant dense<0.000000e+00> : vector<64x8xf32>
    %130 = tpu.matmul %127, %129, %cst_144 {dimension_numbers = #tpu.dot_dimension_numbers<[1], [0], [0], [1], [0, 0, 1, 1], [], []>} : vector<64x4xbf16>, vector<4x8xbf16>, vector<64x8xf32> -> vector<64x8xf32>
    %c0_145 = arith.constant 0 : index
    %c0_146 = arith.constant 0 : index
    %131 = vector.load %arg10[%c0_145, %c0_146] : memref<64x8xf32, #tpu.memory_space<vmem>>, vector<64x8xf32>
    %132 = arith.addf %131, %130 : vector<64x8xf32>
    %c0_147 = arith.constant 0 : index
    %c0_148 = arith.constant 0 : index
    %133 = vector.load %arg10[%c0_147, %c0_148] : memref<64x8xf32, #tpu.memory_space<vmem>>, vector<64x8xf32>
    tpu.vector_store %arg10[%c0_147, %c0_148], %132 {strides = array<i32>} : memref<64x8xf32, #tpu.memory_space<vmem>>, vector<64x8xf32>,
    %c1_i32_149 = arith.constant 1 : i32
    %134 = arith.addi %3, %c1_i32_149 : i32
    %c0_150 = arith.constant 0 : index
    %135 = arith.index_cast %134 : i32 to index
    %c0_151 = arith.constant 0 : index
    %c0_152 = arith.constant 0 : index
    %136 = vector.load %arg4[%c0_150, %135, %c0_151, %c0_152] : memref<1x9x9x4xbf16, #tpu.memory_space<vmem>>, vector<1x8x8x4xbf16>
    %137 = vector.shape_cast %136 : vector<1x8x8x4xbf16> to vector<8x8x4xbf16>
    %138 = vector.shape_cast %137 : vector<8x8x4xbf16> to vector<64x4xbf16>
    %c3_153 = arith.constant 3 : index
    %c0_154 = arith.constant 0 : index
    %c0_155 = arith.constant 0 : index
    %c0_156 = arith.constant 0 : index
    %139 = vector.load %arg6[%c3_153, %c0_154, %c0_155, %c0_156] : memref<4x4x4x8xbf16, #tpu.memory_space<vmem>>, vector<1x1x4x8xbf16>
    %140 = vector.shape_cast %139 : vector<1x1x4x8xbf16> to vector<4x8xbf16>
    %cst_157 = arith.constant dense<0.000000e+00> : vector<64x8xf32>
    %141 = tpu.matmul %138, %140, %cst_157 {dimension_numbers = #tpu.dot_dimension_numbers<[1], [0], [0], [1], [0, 0, 1, 1], [], []>} : vector<64x4xbf16>, vector<4x8xbf16>, vector<64x8xf32> -> vector<64x8xf32>
    %c0_158 = arith.constant 0 : index
    %c0_159 = arith.constant 0 : index
    %142 = vector.load %arg10[%c0_158, %c0_159] : memref<64x8xf32, #tpu.memory_space<vmem>>, vector<64x8xf32>
    %143 = arith.addf %142, %141 : vector<64x8xf32>
    %c0_160 = arith.constant 0 : index
    %c0_161 = arith.constant 0 : index
    %144 = vector.load %arg10[%c0_160, %c0_161] : memref<64x8xf32, #tpu.memory_space<vmem>>, vector<64x8xf32>
    tpu.vector_store %arg10[%c0_160, %c0_161], %143 {strides = array<i32>} : memref<64x8xf32, #tpu.memory_space<vmem>>, vector<64x8xf32>,
    %c1_i32_162 = arith.constant 1 : i32
    %145 = arith.addi %3, %c1_i32_162 : i32
    %c0_163 = arith.constant 0 : index
    %146 = arith.index_cast %145 : i32 to index
    %c0_164 = arith.constant 0 : index
    %c0_165 = arith.constant 0 : index
    %147 = vector.load %arg5[%c0_163, %146, %c0_164, %c0_165] : memref<1x9x9x4xbf16, #tpu.memory_space<vmem>>, vector<1x8x8x4xbf16>
    %148 = vector.shape_cast %147 : vector<1x8x8x4xbf16> to vector<8x8x4xbf16>
    %149 = vector.shape_cast %148 : vector<8x8x4xbf16> to vector<64x4xbf16>
    %c3_166 = arith.constant 3 : index
    %c1_167 = arith.constant 1 : index
    %c0_168 = arith.constant 0 : index
    %c0_169 = arith.constant 0 : index
    %150 = vector.load %arg6[%c3_166, %c1_167, %c0_168, %c0_169] : memref<4x4x4x8xbf16, #tpu.memory_space<vmem>>, vector<1x1x4x8xbf16>
    %151 = vector.shape_cast %150 : vector<1x1x4x8xbf16> to vector<4x8xbf16>
    %cst_170 = arith.constant dense<0.000000e+00> : vector<64x8xf32>
    %152 = tpu.matmul %149, %151, %cst_170 {dimension_numbers = #tpu.dot_dimension_numbers<[1], [0], [0], [1], [0, 0, 1, 1], [], []>} : vector<64x4xbf16>, vector<4x8xbf16>, vector<64x8xf32> -> vector<64x8xf32>
    %c0_171 = arith.constant 0 : index
    %c0_172 = arith.constant 0 : index
    %153 = vector.load %arg10[%c0_171, %c0_172] : memref<64x8xf32, #tpu.memory_space<vmem>>, vector<64x8xf32>
    %154 = arith.addf %153, %152 : vector<64x8xf32>
    %c0_173 = arith.constant 0 : index
    %c0_174 = arith.constant 0 : index
    %155 = vector.load %arg10[%c0_173, %c0_174] : memref<64x8xf32, #tpu.memory_space<vmem>>, vector<64x8xf32>
    tpu.vector_store %arg10[%c0_173, %c0_174], %154 {strides = array<i32>} : memref<64x8xf32, #tpu.memory_space<vmem>>, vector<64x8xf32>,
    %c1_i32_175 = arith.constant 1 : i32
    %156 = arith.addi %3, %c1_i32_175 : i32
    %c0_176 = arith.constant 0 : index
    %157 = arith.index_cast %156 : i32 to index
    %c1_177 = arith.constant 1 : index
    %c0_178 = arith.constant 0 : index
    %158 = vector.load %arg4[%c0_176, %157, %c1_177, %c0_178] : memref<1x9x9x4xbf16, #tpu.memory_space<vmem>>, vector<1x8x8x4xbf16>
    %159 = vector.shape_cast %158 : vector<1x8x8x4xbf16> to vector<8x8x4xbf16>
    %160 = vector.shape_cast %159 : vector<8x8x4xbf16> to vector<64x4xbf16>
    %c3_179 = arith.constant 3 : index
    %c2_180 = arith.constant 2 : index
    %c0_181 = arith.constant 0 : index
    %c0_182 = arith.constant 0 : index
    %161 = vector.load %arg6[%c3_179, %c2_180, %c0_181, %c0_182] : memref<4x4x4x8xbf16, #tpu.memory_space<vmem>>, vector<1x1x4x8xbf16>
    %162 = vector.shape_cast %161 : vector<1x1x4x8xbf16> to vector<4x8xbf16>
    %cst_183 = arith.constant dense<0.000000e+00> : vector<64x8xf32>
    %163 = tpu.matmul %160, %162, %cst_183 {dimension_numbers = #tpu.dot_dimension_numbers<[1], [0], [0], [1], [0, 0, 1, 1], [], []>} : vector<64x4xbf16>, vector<4x8xbf16>, vector<64x8xf32> -> vector<64x8xf32>
    %c0_184 = arith.constant 0 : index
    %c0_185 = arith.constant 0 : index
    %164 = vector.load %arg10[%c0_184, %c0_185] : memref<64x8xf32, #tpu.memory_space<vmem>>, vector<64x8xf32>
    %165 = arith.addf %164, %163 : vector<64x8xf32>
    %c0_186 = arith.constant 0 : index
    %c0_187 = arith.constant 0 : index
    %166 = vector.load %arg10[%c0_186, %c0_187] : memref<64x8xf32, #tpu.memory_space<vmem>>, vector<64x8xf32>
    tpu.vector_store %arg10[%c0_186, %c0_187], %165 {strides = array<i32>} : memref<64x8xf32, #tpu.memory_space<vmem>>, vector<64x8xf32>,
    %c1_i32_188 = arith.constant 1 : i32
    %167 = arith.addi %3, %c1_i32_188 : i32
    %c0_189 = arith.constant 0 : index
    %168 = arith.index_cast %167 : i32 to index
    %c1_190 = arith.constant 1 : index
    %c0_191 = arith.constant 0 : index
    %169 = vector.load %arg5[%c0_189, %168, %c1_190, %c0_191] : memref<1x9x9x4xbf16, #tpu.memory_space<vmem>>, vector<1x8x8x4xbf16>
    %170 = vector.shape_cast %169 : vector<1x8x8x4xbf16> to vector<8x8x4xbf16>
    %171 = vector.shape_cast %170 : vector<8x8x4xbf16> to vector<64x4xbf16>
    %c3_192 = arith.constant 3 : index
    %c3_193 = arith.constant 3 : index
    %c0_194 = arith.constant 0 : index
    %c0_195 = arith.constant 0 : index
    %172 = vector.load %arg6[%c3_192, %c3_193, %c0_194, %c0_195] : memref<4x4x4x8xbf16, #tpu.memory_space<vmem>>, vector<1x1x4x8xbf16>
    %173 = vector.shape_cast %172 : vector<1x1x4x8xbf16> to vector<4x8xbf16>
    %cst_196 = arith.constant dense<0.000000e+00> : vector<64x8xf32>
    %174 = tpu.matmul %171, %173, %cst_196 {dimension_numbers = #tpu.dot_dimension_numbers<[1], [0], [0], [1], [0, 0, 1, 1], [], []>} : vector<64x4xbf16>, vector<4x8xbf16>, vector<64x8xf32> -> vector<64x8xf32>
    %c0_197 = arith.constant 0 : index
    %c0_198 = arith.constant 0 : index
    %175 = vector.load %arg10[%c0_197, %c0_198] : memref<64x8xf32, #tpu.memory_space<vmem>>, vector<64x8xf32>
    %176 = arith.addf %175, %174 : vector<64x8xf32>
    %c0_199 = arith.constant 0 : index
    %c0_200 = arith.constant 0 : index
    %177 = vector.load %arg10[%c0_199, %c0_200] : memref<64x8xf32, #tpu.memory_space<vmem>>, vector<64x8xf32>
    tpu.vector_store %arg10[%c0_199, %c0_200], %176 {strides = array<i32>} : memref<64x8xf32, #tpu.memory_space<vmem>>, vector<64x8xf32>,
    %c0_201 = arith.constant 0 : index
    %c0_202 = arith.constant 0 : index
    %178 = vector.load %arg10[%c0_201, %c0_202] : memref<64x8xf32, #tpu.memory_space<vmem>>, vector<64x8xf32>
    %179 = vector.shape_cast %178 : vector<64x8xf32> to vector<1x8x8x8xf32>
    %180 = arith.truncf %179 : vector<1x8x8x8xf32> to vector<1x8x8x8xbf16>
    %c0_203 = arith.constant 0 : index
    %c0_204 = arith.constant 0 : index
    %c0_205 = arith.constant 0 : index
    %c0_206 = arith.constant 0 : index
    %181 = vector.load %arg7[%c0_203, %c0_204, %c0_205, %c0_206] : memref<1x8x8x8xbf16, #tpu.memory_space<vmem>>, vector<1x8x8x8xbf16>
    tpu.vector_store %arg7[%c0_203, %c0_204, %c0_205, %c0_206], %180 {strides = array<i32>} : memref<1x8x8x8xbf16, #tpu.memory_space<vmem>>, vector<1x8x8x8xbf16>,
    %c0_207 = arith.constant 0 : index
    %c0_208 = arith.constant 0 : index
    %c0_209 = arith.constant 0 : index
    %182 = vector.load %arg8[%c0_207, %c0_208, %c0_209] : memref<1x1x8xf32, #tpu.memory_space<vmem>>, vector<1x1x8xf32>
    %cst_210 = arith.constant dense<0.000000e+00> : vector<8xf32>
    %183 = vector.multi_reduction <add>, %178, %cst_210 [0] : vector<64x8xf32> to vector<8xf32>
    %184 = vector.shape_cast %183 : vector<8xf32> to vector<1x1x8xf32>
    %185 = arith.addf %182, %184 : vector<1x1x8xf32>
    %c0_211 = arith.constant 0 : index
    %c0_212 = arith.constant 0 : index
    %c0_213 = arith.constant 0 : index
    %186 = vector.load %arg8[%c0_211, %c0_212, %c0_213] : memref<1x1x8xf32, #tpu.memory_space<vmem>>, vector<1x1x8xf32>
    tpu.vector_store %arg8[%c0_211, %c0_212, %c0_213], %185 {strides = array<i32>} : memref<1x1x8xf32, #tpu.memory_space<vmem>>, vector<1x1x8xf32>,
    %c0_214 = arith.constant 0 : index
    %c0_215 = arith.constant 0 : index
    %c0_216 = arith.constant 0 : index
    %187 = vector.load %arg9[%c0_214, %c0_215, %c0_216] : memref<1x1x8xf32, #tpu.memory_space<vmem>>, vector<1x1x8xf32>
    %188 = arith.mulf %178, %178 : vector<64x8xf32>
    %cst_217 = arith.constant dense<0.000000e+00> : vector<8xf32>
    %189 = vector.multi_reduction <add>, %188, %cst_217 [0] : vector<64x8xf32> to vector<8xf32>
    %190 = vector.shape_cast %189 : vector<8xf32> to vector<1x1x8xf32>
    %191 = arith.addf %187, %190 : vector<1x1x8xf32>
    %c0_218 = arith.constant 0 : index
    %c0_219 = arith.constant 0 : index
    %c0_220 = arith.constant 0 : index
    %192 = vector.load %arg9[%c0_218, %c0_219, %c0_220] : memref<1x1x8xf32, #tpu.memory_space<vmem>>, vector<1x1x8xf32>
    tpu.vector_store %arg9[%c0_218, %c0_219, %c0_220], %191 {strides = array<i32>} : memref<1x1x8xf32, #tpu.memory_space<vmem>>, vector<1x1x8xf32>,
    return
  }
  func.func @transform_0(%arg0: i32, %arg1: i32) -> (i32, i32, i32, i32) {
    %c0_i32 = arith.constant 0 : i32
    %c0_i32_0 = arith.constant 0 : i32
    %c0_i32_1 = arith.constant 0 : i32
    %c0_i32_2 = arith.constant 0 : i32
    return %arg0, %c0_i32, %c0_i32_0, %c0_i32_1 : i32, i32, i32, i32
  }
  func.func @transform_1(%arg0: i32, %arg1: i32) -> (i32, i32, i32, i32) {
    %c0_i32 = arith.constant 0 : i32
    %c0_i32_0 = arith.constant 0 : i32
    %c0_i32_1 = arith.constant 0 : i32
    %c0_i32_2 = arith.constant 0 : i32
    return %arg0, %c0_i32, %c0_i32_0, %c0_i32_1 : i32, i32, i32, i32
  }
  func.func @transform_2(%arg0: i32, %arg1: i32) -> (i32, i32, i32, i32) {
    %c0_i32 = arith.constant 0 : i32
    %c0_i32_0 = arith.constant 0 : i32
    %c0_i32_1 = arith.constant 0 : i32
    %c0_i32_2 = arith.constant 0 : i32
    return %arg0, %c0_i32, %c0_i32_0, %c0_i32_1 : i32, i32, i32, i32
  }
  func.func @transform_3(%arg0: i32, %arg1: i32) -> (i32, i32, i32, i32) {
    %c0_i32 = arith.constant 0 : i32
    %c0_i32_0 = arith.constant 0 : i32
    %c0_i32_1 = arith.constant 0 : i32
    %c0_i32_2 = arith.constant 0 : i32
    return %arg0, %c0_i32, %c0_i32_0, %c0_i32_1 : i32, i32, i32, i32
  }
  func.func @transform_4(%arg0: i32, %arg1: i32) -> (i32, i32, i32, i32) {
    %c0_i32 = arith.constant 0 : i32
    %c0_i32_0 = arith.constant 0 : i32
    %c0_i32_1 = arith.constant 0 : i32
    %c0_i32_2 = arith.constant 0 : i32
    %c0_i32_3 = arith.constant 0 : i32
    return %c0_i32, %c0_i32_0, %c0_i32_1, %c0_i32_2 : i32, i32, i32, i32
  }
  func.func @transform_5(%arg0: i32, %arg1: i32) -> (i32, i32, i32, i32) {
    %c0_i32 = arith.constant 0 : i32
    %c0_i32_0 = arith.constant 0 : i32
    %c0_i32_1 = arith.constant 0 : i32
    return %arg0, %arg1, %c0_i32, %c0_i32_0 : i32, i32, i32, i32
  }
  func.func @transform_6(%arg0: i32, %arg1: i32) -> (i32, i32, i32) {
    %c0_i32 = arith.constant 0 : i32
    %c0_i32_0 = arith.constant 0 : i32
    %c0_i32_1 = arith.constant 0 : i32
    return %arg0, %c0_i32, %c0_i32_0 : i32, i32, i32
  }
  func.func @transform_7(%arg0: i32, %arg1: i32) -> (i32, i32, i32) {
    %c0_i32 = arith.constant 0 : i32
    %c0_i32_0 = arith.constant 0 : i32
    %c0_i32_1 = arith.constant 0 : i32
    return %arg0, %c0_i32, %c0_i32_0 : i32, i32, i32
  }
}

module attributes {stable_mosaic.version = 11 : i64} {
  func.func @bn_act_kernel(%arg0: i32, %arg1: i32, %arg2: memref<1x8x8x8xbf16, #tpu.memory_space<vmem>>, %arg3: memref<1x1x1x8xf32, #tpu.memory_space<vmem>>, %arg4: memref<1x1x1x8xf32, #tpu.memory_space<vmem>>, %arg5: memref<1x8x8x8xbf16, #tpu.memory_space<vmem>>) attributes {dimension_semantics = [#tpu.dimension_semantics<parallel>, #tpu.dimension_semantics<parallel>], iteration_bounds = array<i64: 2, 1>, scalar_prefetch = 0 : i64, scratch_operands = 0 : i64, tpu.core_type = #tpu.core_type<tc>, window_params = [{transform_indices = @transform_0, window_bounds = array<i64: 1, 8, 8, 8>}, {pipeline_mode = #tpu.pipeline_mode<synchronous>, transform_indices = @transform_1, window_bounds = array<i64: 1, 1, 1, 8>}, {pipeline_mode = #tpu.pipeline_mode<synchronous>, transform_indices = @transform_2, window_bounds = array<i64: 1, 1, 1, 8>}, {transform_indices = @transform_3, window_bounds = array<i64: 1, 8, 8, 8>}]} {
    %c0 = arith.constant 0 : index
    %c0_0 = arith.constant 0 : index
    %c0_1 = arith.constant 0 : index
    %c0_2 = arith.constant 0 : index
    %0 = vector.load %arg2[%c0, %c0_0, %c0_1, %c0_2] : memref<1x8x8x8xbf16, #tpu.memory_space<vmem>>, vector<1x8x8x8xbf16>
    %1 = arith.extf %0 : vector<1x8x8x8xbf16> to vector<1x8x8x8xf32>
    %c0_3 = arith.constant 0 : index
    %c0_4 = arith.constant 0 : index
    %c0_5 = arith.constant 0 : index
    %c0_6 = arith.constant 0 : index
    %2 = vector.load %arg3[%c0_3, %c0_4, %c0_5, %c0_6] : memref<1x1x1x8xf32, #tpu.memory_space<vmem>>, vector<1x1x1x8xf32>
    %3 = vector.broadcast %2 : vector<1x1x1x8xf32> to vector<1x8x8x8xf32>
    %4 = arith.mulf %1, %3 : vector<1x8x8x8xf32>
    %c0_7 = arith.constant 0 : index
    %c0_8 = arith.constant 0 : index
    %c0_9 = arith.constant 0 : index
    %c0_10 = arith.constant 0 : index
    %5 = vector.load %arg4[%c0_7, %c0_8, %c0_9, %c0_10] : memref<1x1x1x8xf32, #tpu.memory_space<vmem>>, vector<1x1x1x8xf32>
    %6 = vector.broadcast %5 : vector<1x1x1x8xf32> to vector<1x8x8x8xf32>
    %7 = arith.addf %4, %6 : vector<1x8x8x8xf32>
    %cst = arith.constant 0.000000e+00 : f32
    %8 = vector.broadcast %cst : f32 to vector<1x8x8x8xf32>
    %9 = arith.cmpf oge, %7, %8 : vector<1x8x8x8xf32>
    %cst_11 = arith.constant 2.000000e-01 : f32
    %10 = vector.broadcast %cst_11 : f32 to vector<1x8x8x8xf32>
    %11 = arith.mulf %10, %7 : vector<1x8x8x8xf32>
    %12 = arith.select %9, %7, %11 : vector<1x8x8x8xi1>, vector<1x8x8x8xf32>
    %13 = arith.truncf %12 : vector<1x8x8x8xf32> to vector<1x8x8x8xbf16>
    %c0_12 = arith.constant 0 : index
    %c0_13 = arith.constant 0 : index
    %c0_14 = arith.constant 0 : index
    %c0_15 = arith.constant 0 : index
    %14 = vector.load %arg5[%c0_12, %c0_13, %c0_14, %c0_15] : memref<1x8x8x8xbf16, #tpu.memory_space<vmem>>, vector<1x8x8x8xbf16>
    tpu.vector_store %arg5[%c0_12, %c0_13, %c0_14, %c0_15], %13 {strides = array<i32>} : memref<1x8x8x8xbf16, #tpu.memory_space<vmem>>, vector<1x8x8x8xbf16>,
    return
  }
  func.func @transform_0(%arg0: i32, %arg1: i32) -> (i32, i32, i32, i32) {
    %c0_i32 = arith.constant 0 : i32
    %c0_i32_0 = arith.constant 0 : i32
    %c0_i32_1 = arith.constant 0 : i32
    return %arg0, %arg1, %c0_i32, %c0_i32_0 : i32, i32, i32, i32
  }
  func.func @transform_1(%arg0: i32, %arg1: i32) -> (i32, i32, i32, i32) {
    %c0_i32 = arith.constant 0 : i32
    %c0_i32_0 = arith.constant 0 : i32
    %c0_i32_1 = arith.constant 0 : i32
    %c0_i32_2 = arith.constant 0 : i32
    %c0_i32_3 = arith.constant 0 : i32
    return %c0_i32, %c0_i32_0, %c0_i32_1, %c0_i32_2 : i32, i32, i32, i32
  }
  func.func @transform_2(%arg0: i32, %arg1: i32) -> (i32, i32, i32, i32) {
    %c0_i32 = arith.constant 0 : i32
    %c0_i32_0 = arith.constant 0 : i32
    %c0_i32_1 = arith.constant 0 : i32
    %c0_i32_2 = arith.constant 0 : i32
    %c0_i32_3 = arith.constant 0 : i32
    return %c0_i32, %c0_i32_0, %c0_i32_1, %c0_i32_2 : i32, i32, i32, i32
  }
  func.func @transform_3(%arg0: i32, %arg1: i32) -> (i32, i32, i32, i32) {
    %c0_i32 = arith.constant 0 : i32
    %c0_i32_0 = arith.constant 0 : i32
    %c0_i32_1 = arith.constant 0 : i32
    return %arg0, %arg1, %c0_i32, %c0_i32_0 : i32, i32, i32, i32
  }
}

</mosaic_0001>

<llo_original>
// kernel: custom-call
$region0: #{custom-call}
  %s0 = inlined_call_operand.vmem [shape: f32[8], index: 0, kind: output, shape index: {}]

// kernel: downblock_forward.3
$region0: #{downblock_forward.3}
  #allocation0 [shape = 'u32[]', space=smem, size = 0x4, offset = 0x4, fixed_abs, tag = 'smem constant byte address 0x4 - core index']
  #allocation1 [shape = 'u32[144,128]{1,0:T(1,128)}', space=vmem, size = 0x12000, scoped, tag = 'internal scratch']
  %s0 = inlined_call_operand.vmem [shape: bf16[2,8,8,8], index: 0, kind: input, shape index: {}, may-alias: {0,3}]
  %s1 = inlined_call_operand.vmem [shape: f32[1,1,1,8], index: 1, kind: input, shape index: {}]
  %s2 = inlined_call_operand.vmem [shape: f32[1,1,1,8], index: 2, kind: input, shape index: {}]
  %s3 = inlined_call_operand.vmem [shape: bf16[2,8,8,8], index: 3, kind: output, shape index: {}, may-alias: {0,3}]
  %s4 = sld [smem:[#allocation0]]
  $region45: #{downblock_forward.3} parent=0
    _
  %s6 = ssub.s32 1, %s4
  %s7 = scalar_select 0, %s6, %s4
  loop: start=0, step=1, limit=4
  $region2: #{downblock_forward.3} parent=0 // loop_pre_header
    _
  $region3: #{downblock_forward.3} parent=0 // loop_header
    %s9 = sphi 0, %s13
    %p10 = scmp.ge.s32.totalorder %s9, 4
    %s16 = sphi 0, %s28
    %s17 = sphi 0, %s24
    %s18 = sphi 0, %s16
    %s19 = sphi 0, %s17
    %s20 = sphi 0, %s18
    %s21 = sphi 0, %s19
    %s33 = sphi 0, %s35
    %s36 = sphi 0, %s33
    %s37 = sphi 0, %s36
    %s53 = sphi 0, %s37
    %s57 = sphi 0, %s57
    %s59 = sphi 0, %s57
    %s60 = sphi 0, %s59
    %s74 = sphi 0, %s60
    %s78 = sphi 0, %s78
    %s80 = sphi 0, %s78
    %s81 = sphi 0, %s80
    %s95 = sphi 0, %s81
    %s103 = sphi 0, %s105
    %s106 = sphi 0, %s103
    %s107 = sphi 0, %s106
    %s123 = sphi 0, %s107
  $region4: #{downblock_forward.3} parent=0 // loop_header_branch
    %12 = sbr.rel (%p10) target = $region8
  $region5: #{downblock_forward.3} parent=0 // loop_body
    %s14 = ssub.s32 %s9, 1
    %s15 = ssub.s32 %s9, 2
    %s22 = sadd.s32 1, %s17
    %p23 = scmp.ge.s32.totalorder %s22, 1
    %s24 = scalar_select %p23, 0, %s22
    %s25 = sadd.s32 1, %s16
    %s26 = scalar_select %p23, %s25, %s16
    %p27 = scmp.ge.s32.totalorder %s26, 2
    %s28 = scalar_select %p27, 0, %s26
    %s29 = ssub.s32 %s16, %s28
    %s30 = ssub.s32 %s17, %s24
    %s31 = sor.u32 %s29, %s30
    %p32 = scmp.eq.s32.totalorder %s31, 0
    %s34 = sadd.s32 %s33, 1
    %s35 = scalar_select %p32, %s33, %s34
    %p38 = pneg %p32
    %p39 = scmp.eq.s32.totalorder %s9, 1
    %p40 = por %p38, %p39
    %p41 = scmp.ne.s32.totalorder %s33, %s36
    %p42 = scmp.eq.s32.totalorder %s9, 0
    %p43 = por %p41, %p42
    %p44 = scmp.ne.s32.totalorder %s33, %s36
    %p45 = scmp.eq.s32.totalorder %s14, 1
    %p46 = por %p44, %p45
    %p47 = scmp.ne.s32.totalorder %s36, %s37
    %p48 = scmp.eq.s32.totalorder %s14, 0
    %p49 = por %p47, %p48
    %p50 = scmp.ne.s32.totalorder %s36, %s37
    %p51 = scmp.eq.s32.totalorder %s15, 1
    %p52 = por %p50, %p51
    %p54 = scmp.ne.s32.totalorder %s37, %s53
    %p55 = scmp.eq.s32.totalorder %s15, 0
    %p56 = por %p54, %p55
    %s58 = sadd.s32 %s57, 1
    %p61 = scmp.eq.s32.totalorder %s9, 1
    %p62 = scmp.ne.s32.totalorder %s57, %s59
    %p63 = scmp.eq.s32.totalorder %s9, 0
    %p64 = por %p62, %p63
    %p65 = scmp.ne.s32.totalorder %s57, %s59
    %p66 = scmp.eq.s32.totalorder %s14, 1
    %p67 = por %p65, %p66
    %p68 = scmp.ne.s32.totalorder %s59, %s60
    %p69 = scmp.eq.s32.totalorder %s14, 0
    %p70 = por %p68, %p69
    %p71 = scmp.ne.s32.totalorder %s59, %s60
    %p72 = scmp.eq.s32.totalorder %s15, 1
    %p73 = por %p71, %p72
    %p75 = scmp.ne.s32.totalorder %s60, %s74
    %p76 = scmp.eq.s32.totalorder %s15, 0
    %p77 = por %p75, %p76
    %s79 = sadd.s32 %s78, 1
    %p82 = scmp.eq.s32.totalorder %s9, 1
    %p83 = scmp.ne.s32.totalorder %s78, %s80
    %p84 = scmp.eq.s32.totalorder %s9, 0
    %p85 = por %p83, %p84
    %p86 = scmp.ne.s32.totalorder %s78, %s80
    %p87 = scmp.eq.s32.totalorder %s14, 1
    %p88 = por %p86, %p87
    %p89 = scmp.ne.s32.totalorder %s80, %s81
    %p90 = scmp.eq.s32.totalorder %s14, 0
    %p91 = por %p89, %p90
    %p92 = scmp.ne.s32.totalorder %s80, %s81
    %p93 = scmp.eq.s32.totalorder %s15, 1
    %p94 = por %p92, %p93
    %p96 = scmp.ne.s32.totalorder %s81, %s95
    %p97 = scmp.eq.s32.totalorder %s15, 0
    %p98 = por %p96, %p97
    %s99 = ssub.s32 %s16, %s28
    %s100 = ssub.s32 %s17, %s24
    %s101 = sor.u32 %s99, %s100
    %p102 = scmp.eq.s32.totalorder %s101, 0
    %s104 = sadd.s32 %s103, 1
    %s105 = scalar_select %p102, %s103, %s104
    %p108 = pneg %p102
    %p109 = scmp.eq.s32.totalorder %s9, 1
    %p110 = por %p108, %p109
    %p111 = scmp.ne.s32.totalorder %s103, %s106
    %p112 = scmp.eq.s32.totalorder %s9, 0
    %p113 = por %p111, %p112
    %p114 = scmp.ne.s32.totalorder %s103, %s106
    %p115 = scmp.eq.s32.totalorder %s14, 1
    %p116 = por %p114, %p115
    %p117 = scmp.ne.s32.totalorder %s106, %s107
    %p118 = scmp.eq.s32.totalorder %s14, 0
    %p119 = por %p117, %p118
    %p120 = scmp.ne.s32.totalorder %s106, %s107
    %p121 = scmp.eq.s32.totalorder %s15, 1
    %p122 = por %p120, %p121
    %p124 = scmp.ne.s32.totalorder %s107, %s123
    %p125 = scmp.eq.s32.totalorder %s15, 0
    %p126 = por %p124, %p125
    %p127 = scmp.le.s32.totalorder 1, %s9
    %p128 = scmp.lt.s32.totalorder %s9, 3
    %p129 = pnand %p127, %p128
    %p130 = pneg %p129
    // Predicated region
    $region9: #{downblock_forward.3} parent=5 // pred_check
      _
    $region10: #{downblock_forward.3} parent=5 // pred_check_branch
      %132 = sbr.rel (%p129) target = $region12
    $region11: #{downblock_forward.3} parent=5 // pred_region
      %s133 = ssub.s32 %s9, 1
      // Predicated region
      $region13: #{downblock_forward.3} parent=11 // pred_check
        %p134 = pneg %p70
      $region14: #{downblock_forward.3} parent=11 // pred_check_branch
        %136 = sbr.rel (%p134) target = $region16
      $region15: #{downblock_forward.3} parent=11 // pred_region
        _
      $region16: #{downblock_forward.3} parent=11 // pred_fallthru
        _
      // Predicated region
      $region17: #{downblock_forward.3} parent=11 // pred_check
        %p137 = pneg %p91
      $region18: #{downblock_forward.3} parent=11 // pred_check_branch
        %139 = sbr.rel (%p137) target = $region20
      $region19: #{downblock_forward.3} parent=11 // pred_region
        _
      $region20: #{downblock_forward.3} parent=11 // pred_fallthru
        _
    $region12: #{downblock_forward.3} parent=5 // pred_fallthru
      _
    %p140 = scmp.lt.s32.totalorder %s9, 2
    // Predicated region
    $region21: #{downblock_forward.3} parent=5 // pred_check
      %p141 = pneg %p140
    $region22: #{downblock_forward.3} parent=5 // pred_check_branch
      %143 = sbr.rel (%p141) target = $region24
    $region23: #{downblock_forward.3} parent=5 // pred_region
      // Predicated region
      $region25: #{downblock_forward.3} parent=23 // pred_check
        %p144 = pneg %p43
      $region26: #{downblock_forward.3} parent=23 // pred_check_branch
        %146 = sbr.rel (%p144) target = $region28
      $region27: #{downblock_forward.3} parent=23 // pred_region
        %s147 = smul.u32 8, %s17
        %p148 = scmp.lt.s32.totalorder %s16, 1
        %s149 = scalar_select %p148, %s16, 1
        %p150 = scmp.lt.s32.totalorder %s147, 7
        %s151 = scalar_select %p150, %s147, 7
        %s152 = smul.addr %s149, 8
        %s153 = sadd.s32 %s151, %s152
        %s154 = smul.addr %s153, 4
        %s155 = scalar_lea.vmem %s0, %s154
        %s156 = smul.u32 8, %s17
      $region28: #{downblock_forward.3} parent=23 // pred_fallthru
        _
    $region24: #{downblock_forward.3} parent=5 // pred_fallthru
      _
    %p157 = scmp.le.s32.totalorder 1, %s9
    %p158 = scmp.lt.s32.totalorder %s9, 3
    %p159 = pnand %p157, %p158
    %p160 = pneg %p159
    // Predicated region
    $region29: #{downblock_forward.3} parent=5 // pred_check
      _
    $region30: #{downblock_forward.3} parent=5 // pred_check_branch
      %162 = sbr.rel (%p159) target = $region32
    $region31: #{downblock_forward.3} parent=5 // pred_region
      %s163 = ssub.s32 %s9, 1
      %s164 = smul.u32 8, %s19
      %p165 = scmp.lt.s32.totalorder %s18, 1
      %s166 = scalar_select %p165, %s18, 1
      %p167 = scmp.lt.s32.totalorder %s164, 7
      %s168 = scalar_select %p167, %s164, 7
      %s169 = smul.addr %s166, 8
      %s170 = sadd.s32 %s168, %s169
      %s171 = smul.addr %s170, 4
      %s172 = scalar_lea.vmem %s0, %s171
      %p173 = pneg %p49
      %p174 = pneg %p46
      %p175 = pneg %p70
      %p176 = pneg %p67
      %p177 = pneg %p91
      %p178 = pneg %p88
      %p179 = pneg %p119
      %p180 = pneg %p116
      %s181 = smul.u32 8, %s19
      %p182 = scmp.lt.s32.totalorder %s18, 1
      %s183 = scalar_select %p182, %s18, 1
      %p184 = scmp.lt.s32.totalorder %s181, 7
      %s185 = scalar_select %p184, %s181, 7
      %s186 = smul.addr %s183, 8
      %s187 = sadd.s32 %s185, %s186
      %s188 = smul.addr %s187, 4
      %s189 = scalar_lea.vmem %s3, %s188
      %s190 = smul.u32 8, %s19
      %p191 = scmp.lt.s32.totalorder %s18, 1
      %s192 = scalar_select %p191, %s18, 1
      %p193 = scmp.lt.s32.totalorder %s190, 7
      %s194 = scalar_select %p193, %s190, 7
      %s195 = smul.addr %s192, 8
      %s196 = sadd.s32 %s194, %s195
      %s197 = smul.addr %s196, 4
      %s198 = scalar_lea.vmem %s0, %s197
      %s199 = smul.u32 8, %s19
      %s200 = smul.u32 8, %s19
      %p201 = scmp.lt.s32.totalorder %s18, 1
      %s202 = scalar_select %p201, %s18, 1
      %p203 = scmp.lt.s32.totalorder %s200, 7
      %s204 = scalar_select %p203, %s200, 7
      %s205 = smul.addr %s202, 8
      %s206 = sadd.s32 %s204, %s205
      %s207 = smul.addr %s206, 4
      %s208 = scalar_lea.vmem %s3, %s207
      %s209 = smul.u32 8, %s19
      %v210 = vld [vmem:[%s198] sm:$0xf]
      %v211 = vld [vmem:[%s198 + $0x4] sm:$0xf]
      %v212 = vld [vmem:[%s198 + $0x8] sm:$0xf]
      %v213 = vld [vmem:[%s198 + $0xc] sm:$0xf]
      %v214 = vld [vmem:[%s198 + $0x10] sm:$0xf]
      %v215 = vld [vmem:[%s198 + $0x14] sm:$0xf]
      %v216 = vld [vmem:[%s198 + $0x18] sm:$0xf]
      %v217 = vld [vmem:[%s198 + $0x1c] sm:$0xf]
      %v218 = vunpack.c.l.bf16 %v210
      %v219 = vunpack.c.l.bf16 %v211
      %v220 = vunpack.c.l.bf16 %v212
      %v221 = vunpack.c.l.bf16 %v213
      %v222 = vunpack.c.l.bf16 %v214
      %v223 = vunpack.c.l.bf16 %v215
      %v224 = vunpack.c.l.bf16 %v216
      %v225 = vunpack.c.l.bf16 %v217
      %v226 = vld [vmem:[%s1] sm:$0x1]
      %v228 = vlaneseq
      %v229 = vshrl.u32 %v228, 7
      %v230 = vsub.s32 0, %v229
      %v231 = vrot.slane %v226, %v230
      %v233 = vmul.f32 %v218, %v231
      %v234 = vmul.f32 %v219, %v231
      %v235 = vmul.f32 %v220, %v231
      %v236 = vmul.f32 %v221, %v231
      %v237 = vmul.f32 %v222, %v231
      %v238 = vmul.f32 %v223, %v231
      %v239 = vmul.f32 %v224, %v231
      %v240 = vmul.f32 %v225, %v231
      %v241 = vld [vmem:[%s2] sm:$0x1]
      %v243 = vlaneseq
      %v244 = vshrl.u32 %v243, 7
      %v245 = vsub.s32 0, %v244
      %v246 = vrot.slane %v241, %v245
      %v248 = vadd.f32 %v233, %v246
      %v249 = vadd.f32 %v234, %v246
      %v250 = vadd.f32 %v235, %v246
      %v251 = vadd.f32 %v236, %v246
      %v252 = vadd.f32 %v237, %v246
      %v253 = vadd.f32 %v238, %v246
      %v254 = vadd.f32 %v239, %v246
      %v255 = vadd.f32 %v240, %v246
      %vm256 = vcmp.ge.f32.partialorder %v248, 0.0
      %vm257 = vcmp.ge.f32.partialorder %v249, 0.0
      %vm258 = vcmp.ge.f32.partialorder %v250, 0.0
      %vm259 = vcmp.ge.f32.partialorder %v251, 0.0
      %vm260 = vcmp.ge.f32.partialorder %v252, 0.0
      %vm261 = vcmp.ge.f32.partialorder %v253, 0.0
      %vm262 = vcmp.ge.f32.partialorder %v254, 0.0
      %vm263 = vcmp.ge.f32.partialorder %v255, 0.0
      %v264 = vmul.f32 %v248, 0.2
      %v265 = vmul.f32 %v249, 0.2
      %v266 = vmul.f32 %v250, 0.2
      %v267 = vmul.f32 %v251, 0.2
      %v268 = vmul.f32 %v252, 0.2
      %v269 = vmul.f32 %v253, 0.2
      %v270 = vmul.f32 %v254, 0.2
      %v271 = vmul.f32 %v255, 0.2
      %v272 = vsel %vm256, %v248, %v264
      %v273 = vsel %vm257, %v249, %v265
      %v274 = vsel %vm258, %v250, %v266
      %v275 = vsel %vm259, %v251, %v267
      %v276 = vsel %vm260, %v252, %v268
      %v277 = vsel %vm261, %v253, %v269
      %v278 = vsel %vm262, %v254, %v270
      %v279 = vsel %vm263, %v255, %v271
      %v280 = vpack.c.bf16 %v272, %v272
      %v281 = vpack.c.bf16 %v273, %v273
      %v282 = vpack.c.bf16 %v274, %v274
      %v283 = vpack.c.bf16 %v275, %v275
      %v284 = vpack.c.bf16 %v276, %v276
      %v285 = vpack.c.bf16 %v277, %v277
      %v286 = vpack.c.bf16 %v278, %v278
      %v287 = vpack.c.bf16 %v279, %v279
      %vm288 = vcmask 60416
      %289 = vst.msk [vmem:[%s208] sm:$0xf] %vm288, %v280
      %290 = vst.msk [vmem:[%s208 + $0x4] sm:$0xf] %vm288, %v281
      %291 = vst.msk [vmem:[%s208 + $0x8] sm:$0xf] %vm288, %v282
      %292 = vst.msk [vmem:[%s208 + $0xc] sm:$0xf] %vm288, %v283
      %293 = vst.msk [vmem:[%s208 + $0x10] sm:$0xf] %vm288, %v284
      %294 = vst.msk [vmem:[%s208 + $0x14] sm:$0xf] %vm288, %v285
      %295 = vst.msk [vmem:[%s208 + $0x18] sm:$0xf] %vm288, %v286
      %296 = vst.msk [vmem:[%s208 + $0x1c] sm:$0xf] %vm288, %v287
      %s297 = smul.u32 8, %s19
      %p298 = scmp.lt.s32.totalorder %s18, 1
      %s299 = scalar_select %p298, %s18, 1
      %p300 = scmp.lt.s32.totalorder %s297, 7
      %s301 = scalar_select %p300, %s297, 7
      %s302 = smul.addr %s299, 8
      %s303 = sadd.s32 %s301, %s302
      %s304 = smul.addr %s303, 4
      %s305 = scalar_lea.vmem %s3, %s304
      // Predicated region
      $region33: #{downblock_forward.3} parent=31 // pred_check
        %p306 = pneg %p116
      $region34: #{downblock_forward.3} parent=31 // pred_check_branch
        %308 = sbr.rel (%p306) target = $region36
      $region35: #{downblock_forward.3} parent=31 // pred_region
        %s309 = smul.u32 8, %s19
      $region36: #{downblock_forward.3} parent=31 // pred_fallthru
        _
    $region32: #{downblock_forward.3} parent=5 // pred_fallthru
      _
    %p310 = scmp.le.s32.totalorder 2, %s9
    // Predicated region
    $region37: #{downblock_forward.3} parent=5 // pred_check
      %p311 = pneg %p310
    $region38: #{downblock_forward.3} parent=5 // pred_check_branch
      %313 = sbr.rel (%p311) target = $region40
    $region39: #{downblock_forward.3} parent=5 // pred_region
      %s314 = ssub.s32 %s9, 2
      // Predicated region
      $region41: #{downblock_forward.3} parent=39 // pred_check
        %p315 = pneg %p122
      $region42: #{downblock_forward.3} parent=39 // pred_check_branch
        %317 = sbr.rel (%p315) target = $region44
      $region43: #{downblock_forward.3} parent=39 // pred_region
        %s318 = smul.u32 8, %s21
        %p319 = scmp.lt.s32.totalorder %s20, 1
        %s320 = scalar_select %p319, %s20, 1
        %p321 = scmp.lt.s32.totalorder %s318, 7
        %s322 = scalar_select %p321, %s318, 7
        %s323 = smul.addr %s320, 8
        %s324 = sadd.s32 %s322, %s323
        %s325 = smul.addr %s324, 4
        %s326 = scalar_lea.vmem %s3, %s325
      $region44: #{downblock_forward.3} parent=39 // pred_fallthru
        _
    $region40: #{downblock_forward.3} parent=5 // pred_fallthru
      _
  $region6: #{downblock_forward.3} parent=0 // loop_footer
    %s13 = sadd.s32 1, %s9
  $region7: #{downblock_forward.3} parent=0 // loop_footer_branch
    %8 = sbr.rel target = $region3
  $region8: #{downblock_forward.3} parent=0 // loop_exit
    _

// kernel: downblock_forward.2
$region0: #{downblock_forward.2}
  #allocation0 [shape = 'u32[]', space=smem, size = 0x4, offset = 0x4, fixed_abs, tag = 'smem constant byte address 0x4 - core index']
  #allocation1 [shape = 'u32[144,128]{1,0:T(1,128)}', space=vmem, size = 0x12000, scoped, tag = 'internal scratch']
  #allocation2 [shape = 'f32[64,8]{1,0:T(8,128)}', space=vmem, size = 0x8000, scoped, tag = 'scratch operand']
  %s0 = inlined_call_operand.vmem [shape: bf16[2,9,9,4], index: 0, kind: input, shape index: {}]
  %s1 = inlined_call_operand.vmem [shape: bf16[2,9,9,4], index: 1, kind: input, shape index: {}]
  %s2 = inlined_call_operand.vmem [shape: bf16[2,9,9,4], index: 2, kind: input, shape index: {}]
  %s3 = inlined_call_operand.vmem [shape: bf16[2,9,9,4], index: 3, kind: input, shape index: {}]
  %s4 = inlined_call_operand.vmem [shape: bf16[4,4,4,8], index: 4, kind: input, shape index: {}]
  %s5 = inlined_call_operand.vmem [shape: bf16[2,8,8,8], index: 5, kind: output, shape index: {0}]
  %s6 = inlined_call_operand.vmem [shape: f32[2,1,8], index: 6, kind: output, shape index: {1}]
  %s7 = inlined_call_operand.vmem [shape: f32[2,1,8], index: 7, kind: output, shape index: {2}]
  %8 = xla_tuple %s5, %s6, %s7
  %s9 = sld [smem:[#allocation0]]
  $region73: #{downblock_forward.2} parent=0
    _
  %s11 = ssub.s32 1, %s9
  %s12 = scalar_select 0, %s11, %s9
  loop: start=0, step=1, limit=4
  $region2: #{downblock_forward.2} parent=0 // loop_pre_header
    _
  $region3: #{downblock_forward.2} parent=0 // loop_header
    %s14 = sphi 0, %s18
    %p15 = scmp.ge.s32.totalorder %s14, 4
    %s21 = sphi 0, %s33
    %s22 = sphi 0, %s29
    %s23 = sphi 0, %s21
    %s24 = sphi 0, %s22
    %s25 = sphi 0, %s23
    %s26 = sphi 0, %s24
    %s36 = sphi 0, %s38
    %s39 = sphi 0, %s36
    %s40 = sphi 0, %s39
    %s56 = sphi 0, %s40
    %s62 = sphi 0, %s64
    %s65 = sphi 0, %s62
    %s66 = sphi 0, %s65
    %s82 = sphi 0, %s66
    %s88 = sphi 0, %s90
    %s91 = sphi 0, %s88
    %s92 = sphi 0, %s91
    %s108 = sphi 0, %s92
    %s114 = sphi 0, %s116
    %s117 = sphi 0, %s114
    %s118 = sphi 0, %s117
    %s134 = sphi 0, %s118
    %s138 = sphi 0, %s138
    %s140 = sphi 0, %s138
    %s141 = sphi 0, %s140
    %s155 = sphi 0, %s141
    %s163 = sphi 0, %s165
    %s166 = sphi 0, %s163
    %s167 = sphi 0, %s166
    %s183 = sphi 0, %s167
    %s189 = sphi 0, %s191
    %s192 = sphi 0, %s189
    %s193 = sphi 0, %s192
    %s209 = sphi 0, %s193
    %s215 = sphi 0, %s217
    %s218 = sphi 0, %s215
    %s219 = sphi 0, %s218
    %s235 = sphi 0, %s219
  $region4: #{downblock_forward.2} parent=0 // loop_header_branch
    %17 = sbr.rel (%p15) target = $region8
  $region5: #{downblock_forward.2} parent=0 // loop_body
    %s19 = ssub.s32 %s14, 1
    %s20 = ssub.s32 %s14, 2
    %s27 = sadd.s32 1, %s22
    %p28 = scmp.ge.s32.totalorder %s27, 1
    %s29 = scalar_select %p28, 0, %s27
    %s30 = sadd.s32 1, %s21
    %s31 = scalar_select %p28, %s30, %s21
    %p32 = scmp.ge.s32.totalorder %s31, 2
    %s33 = scalar_select %p32, 0, %s31
    %s34 = ssub.s32 %s21, %s33
    %p35 = scmp.eq.s32.totalorder %s34, 0
    %s37 = sadd.s32 %s36, 1
    %s38 = scalar_select %p35, %s36, %s37
    %p41 = pneg %p35
    %p42 = scmp.eq.s32.totalorder %s14, 1
    %p43 = por %p41, %p42
    %p44 = scmp.ne.s32.totalorder %s36, %s39
    %p45 = scmp.eq.s32.totalorder %s14, 0
    %p46 = por %p44, %p45
    %p47 = scmp.ne.s32.totalorder %s36, %s39
    %p48 = scmp.eq.s32.totalorder %s19, 1
    %p49 = por %p47, %p48
    %p50 = scmp.ne.s32.totalorder %s39, %s40
    %p51 = scmp.eq.s32.totalorder %s19, 0
    %p52 = por %p50, %p51
    %p53 = scmp.ne.s32.totalorder %s39, %s40
    %p54 = scmp.eq.s32.totalorder %s20, 1
    %p55 = por %p53, %p54
    %p57 = scmp.ne.s32.totalorder %s40, %s56
    %p58 = scmp.eq.s32.totalorder %s20, 0
    %p59 = por %p57, %p58
    %s60 = ssub.s32 %s21, %s33
    %p61 = scmp.eq.s32.totalorder %s60, 0
    %s63 = sadd.s32 %s62, 1
    %s64 = scalar_select %p61, %s62, %s63
    %p67 = pneg %p61
    %p68 = scmp.eq.s32.totalorder %s14, 1
    %p69 = por %p67, %p68
    %p70 = scmp.ne.s32.totalorder %s62, %s65
    %p71 = scmp.eq.s32.totalorder %s14, 0
    %p72 = por %p70, %p71
    %p73 = scmp.ne.s32.totalorder %s62, %s65
    %p74 = scmp.eq.s32.totalorder %s19, 1
    %p75 = por %p73, %p74
    %p76 = scmp.ne.s32.totalorder %s65, %s66
    %p77 = scmp.eq.s32.totalorder %s19, 0
    %p78 = por %p76, %p77
    %p79 = scmp.ne.s32.totalorder %s65, %s66
    %p80 = scmp.eq.s32.totalorder %s20, 1
    %p81 = por %p79, %p80
    %p83 = scmp.ne.s32.totalorder %s66, %s82
    %p84 = scmp.eq.s32.totalorder %s20, 0
    %p85 = por %p83, %p84
    %s86 = ssub.s32 %s21, %s33
    %p87 = scmp.eq.s32.totalorder %s86, 0
    %s89 = sadd.s32 %s88, 1
    %s90 = scalar_select %p87, %s88, %s89
    %p93 = pneg %p87
    %p94 = scmp.eq.s32.totalorder %s14, 1
    %p95 = por %p93, %p94
    %p96 = scmp.ne.s32.totalorder %s88, %s91
    %p97 = scmp.eq.s32.totalorder %s14, 0
    %p98 = por %p96, %p97
    %p99 = scmp.ne.s32.totalorder %s88, %s91
    %p100 = scmp.eq.s32.totalorder %s19, 1
    %p101 = por %p99, %p100
    %p102 = scmp.ne.s32.totalorder %s91, %s92
    %p103 = scmp.eq.s32.totalorder %s19, 0
    %p104 = por %p102, %p103
    %p105 = scmp.ne.s32.totalorder %s91, %s92
    %p106 = scmp.eq.s32.totalorder %s20, 1
    %p107 = por %p105, %p106
    %p109 = scmp.ne.s32.totalorder %s92, %s108
    %p110 = scmp.eq.s32.totalorder %s20, 0
    %p111 = por %p109, %p110
    %s112 = ssub.s32 %s21, %s33
    %p113 = scmp.eq.s32.totalorder %s112, 0
    %s115 = sadd.s32 %s114, 1
    %s116 = scalar_select %p113, %s114, %s115
    %p119 = pneg %p113
    %p120 = scmp.eq.s32.totalorder %s14, 1
    %p121 = por %p119, %p120
    %p122 = scmp.ne.s32.totalorder %s114, %s117
    %p123 = scmp.eq.s32.totalorder %s14, 0
    %p124 = por %p122, %p123
    %p125 = scmp.ne.s32.totalorder %s114, %s117
    %p126 = scmp.eq.s32.totalorder %s19, 1
    %p127 = por %p125, %p126
    %p128 = scmp.ne.s32.totalorder %s117, %s118
    %p129 = scmp.eq.s32.totalorder %s19, 0
    %p130 = por %p128, %p129
    %p131 = scmp.ne.s32.totalorder %s117, %s118
    %p132 = scmp.eq.s32.totalorder %s20, 1
    %p133 = por %p131, %p132
    %p135 = scmp.ne.s32.totalorder %s118, %s134
    %p136 = scmp.eq.s32.totalorder %s20, 0
    %p137 = por %p135, %p136
    %s139 = sadd.s32 %s138, 1
    %p142 = scmp.eq.s32.totalorder %s14, 1
    %p143 = scmp.ne.s32.totalorder %s138, %s140
    %p144 = scmp.eq.s32.totalorder %s14, 0
    %p145 = por %p143, %p144
    %p146 = scmp.ne.s32.totalorder %s138, %s140
    %p147 = scmp.eq.s32.totalorder %s19, 1
    %p148 = por %p146, %p147
    %p149 = scmp.ne.s32.totalorder %s140, %s141
    %p150 = scmp.eq.s32.totalorder %s19, 0
    %p151 = por %p149, %p150
    %p152 = scmp.ne.s32.totalorder %s140, %s141
    %p153 = scmp.eq.s32.totalorder %s20, 1
    %p154 = por %p152, %p153
    %p156 = scmp.ne.s32.totalorder %s141, %s155
    %p157 = scmp.eq.s32.totalorder %s20, 0
    %p158 = por %p156, %p157
    %s159 = ssub.s32 %s21, %s33
    %s160 = ssub.s32 %s22, %s29
    %s161 = sor.u32 %s159, %s160
    %p162 = scmp.eq.s32.totalorder %s161, 0
    %s164 = sadd.s32 %s163, 1
    %s165 = scalar_select %p162, %s163, %s164
    %p168 = pneg %p162
    %p169 = scmp.eq.s32.totalorder %s14, 1
    %p170 = por %p168, %p169
    %p171 = scmp.ne.s32.totalorder %s163, %s166
    %p172 = scmp.eq.s32.totalorder %s14, 0
    %p173 = por %p171, %p172
    %p174 = scmp.ne.s32.totalorder %s163, %s166
    %p175 = scmp.eq.s32.totalorder %s19, 1
    %p176 = por %p174, %p175
    %p177 = scmp.ne.s32.totalorder %s166, %s167
    %p178 = scmp.eq.s32.totalorder %s19, 0
    %p179 = por %p177, %p178
    %p180 = scmp.ne.s32.totalorder %s166, %s167
    %p181 = scmp.eq.s32.totalorder %s20, 1
    %p182 = por %p180, %p181
    %p184 = scmp.ne.s32.totalorder %s167, %s183
    %p185 = scmp.eq.s32.totalorder %s20, 0
    %p186 = por %p184, %p185
    %s187 = ssub.s32 %s21, %s33
    %p188 = scmp.eq.s32.totalorder %s187, 0
    %s190 = sadd.s32 %s189, 1
    %s191 = scalar_select %p188, %s189, %s190
    %p194 = pneg %p188
    %p195 = scmp.eq.s32.totalorder %s14, 1
    %p196 = por %p194, %p195
    %p197 = scmp.ne.s32.totalorder %s189, %s192
    %p198 = scmp.eq.s32.totalorder %s14, 0
    %p199 = por %p197, %p198
    %p200 = scmp.ne.s32.totalorder %s189, %s192
    %p201 = scmp.eq.s32.totalorder %s19, 1
    %p202 = por %p200, %p201
    %p203 = scmp.ne.s32.totalorder %s192, %s193
    %p204 = scmp.eq.s32.totalorder %s19, 0
    %p205 = por %p203, %p204
    %p206 = scmp.ne.s32.totalorder %s192, %s193
    %p207 = scmp.eq.s32.totalorder %s20, 1
    %p208 = por %p206, %p207
    %p210 = scmp.ne.s32.totalorder %s193, %s209
    %p211 = scmp.eq.s32.totalorder %s20, 0
    %p212 = por %p210, %p211
    %s213 = ssub.s32 %s21, %s33
    %p214 = scmp.eq.s32.totalorder %s213, 0
    %s216 = sadd.s32 %s215, 1
    %s217 = scalar_select %p214, %s215, %s216
    %p220 = pneg %p214
    %p221 = scmp.eq.s32.totalorder %s14, 1
    %p222 = por %p220, %p221
    %p223 = scmp.ne.s32.totalorder %s215, %s218
    %p224 = scmp.eq.s32.totalorder %s14, 0
    %p225 = por %p223, %p224
    %p226 = scmp.ne.s32.totalorder %s215, %s218
    %p227 = scmp.eq.s32.totalorder %s19, 1
    %p228 = por %p226, %p227
    %p229 = scmp.ne.s32.totalorder %s218, %s219
    %p230 = scmp.eq.s32.totalorder %s19, 0
    %p231 = por %p229, %p230
    %p232 = scmp.ne.s32.totalorder %s218, %s219
    %p233 = scmp.eq.s32.totalorder %s20, 1
    %p234 = por %p232, %p233
    %p236 = scmp.ne.s32.totalorder %s219, %s235
    %p237 = scmp.eq.s32.totalorder %s20, 0
    %p238 = por %p236, %p237
    %p239 = scmp.le.s32.totalorder 1, %s14
    %p240 = scmp.lt.s32.totalorder %s14, 3
    %p241 = pnand %p239, %p240
    %p242 = pneg %p241
    // Predicated region
    $region9: #{downblock_forward.2} parent=5 // pred_check
      _
    $region10: #{downblock_forward.2} parent=5 // pred_check_branch
      %244 = sbr.rel (%p241) target = $region12
    $region11: #{downblock_forward.2} parent=5 // pred_region
      %s245 = ssub.s32 %s14, 1
      // Predicated region
      $region13: #{downblock_forward.2} parent=11 // pred_check
        %p246 = pneg %p151
      $region14: #{downblock_forward.2} parent=11 // pred_check_branch
        %248 = sbr.rel (%p246) target = $region16
      $region15: #{downblock_forward.2} parent=11 // pred_region
        _
      $region16: #{downblock_forward.2} parent=11 // pred_fallthru
        _
    $region12: #{downblock_forward.2} parent=5 // pred_fallthru
      _
    %p249 = scmp.lt.s32.totalorder %s14, 2
    // Predicated region
    $region17: #{downblock_forward.2} parent=5 // pred_check
      %p250 = pneg %p249
    $region18: #{downblock_forward.2} parent=5 // pred_check_branch
      %252 = sbr.rel (%p250) target = $region20
    $region19: #{downblock_forward.2} parent=5 // pred_region
      // Predicated region
      $region21: #{downblock_forward.2} parent=19 // pred_check
        %p253 = pneg %p46
      $region22: #{downblock_forward.2} parent=19 // pred_check_branch
        %255 = sbr.rel (%p253) target = $region24
      $region23: #{downblock_forward.2} parent=19 // pred_region
        %p256 = scmp.lt.s32.totalorder %s21, 1
        %s257 = scalar_select %p256, %s21, 1
        %s258 = smul.addr %s257, 18
        %s259 = smul.addr %s258, 4
        %s260 = scalar_lea.vmem %s0, %s259
      $region24: #{downblock_forward.2} parent=19 // pred_fallthru
        _
      // Predicated region
      $region25: #{downblock_forward.2} parent=19 // pred_check
        %p261 = pneg %p72
      $region26: #{downblock_forward.2} parent=19 // pred_check_branch
        %263 = sbr.rel (%p261) target = $region28
      $region27: #{downblock_forward.2} parent=19 // pred_region
        %p264 = scmp.lt.s32.totalorder %s21, 1
        %s265 = scalar_select %p264, %s21, 1
        %s266 = smul.addr %s265, 18
        %s267 = smul.addr %s266, 4
        %s268 = scalar_lea.vmem %s1, %s267
      $region28: #{downblock_forward.2} parent=19 // pred_fallthru
        _
      // Predicated region
      $region29: #{downblock_forward.2} parent=19 // pred_check
        %p269 = pneg %p98
      $region30: #{downblock_forward.2} parent=19 // pred_check_branch
        %271 = sbr.rel (%p269) target = $region32
      $region31: #{downblock_forward.2} parent=19 // pred_region
        %p272 = scmp.lt.s32.totalorder %s21, 1
        %s273 = scalar_select %p272, %s21, 1
        %s274 = smul.addr %s273, 18
        %s275 = smul.addr %s274, 4
        %s276 = scalar_lea.vmem %s2, %s275
      $region32: #{downblock_forward.2} parent=19 // pred_fallthru
        _
      // Predicated region
      $region33: #{downblock_forward.2} parent=19 // pred_check
        %p277 = pneg %p124
      $region34: #{downblock_forward.2} parent=19 // pred_check_branch
        %279 = sbr.rel (%p277) target = $region36
      $region35: #{downblock_forward.2} parent=19 // pred_region
        %p280 = scmp.lt.s32.totalorder %s21, 1
        %s281 = scalar_select %p280, %s21, 1
        %s282 = smul.addr %s281, 18
        %s283 = smul.addr %s282, 4
        %s284 = scalar_lea.vmem %s3, %s283
      $region36: #{downblock_forward.2} parent=19 // pred_fallthru
        _
    $region20: #{downblock_forward.2} parent=5 // pred_fallthru
      _
    %p285 = scmp.le.s32.totalorder 1, %s14
    %p286 = scmp.lt.s32.totalorder %s14, 3
    %p287 = pnand %p285, %p286
    %p288 = pneg %p287
    // Predicated region
    $region37: #{downblock_forward.2} parent=5 // pred_check
      _
    $region38: #{downblock_forward.2} parent=5 // pred_check_branch
      %290 = sbr.rel (%p287) target = $region40
    $region39: #{downblock_forward.2} parent=5 // pred_region
      %s291 = ssub.s32 %s14, 1
      %p292 = scmp.lt.s32.totalorder %s23, 1
      %s293 = scalar_select %p292, %s23, 1
      %s294 = smul.addr %s293, 18
      %s295 = smul.addr %s294, 4
      %s296 = scalar_lea.vmem %s0, %s295
      %p297 = pneg %p52
      %p298 = pneg %p49
      %p299 = scmp.lt.s32.totalorder %s23, 1
      %s300 = scalar_select %p299, %s23, 1
      %s301 = smul.addr %s300, 18
      %s302 = smul.addr %s301, 4
      %s303 = scalar_lea.vmem %s1, %s302
      %p304 = pneg %p78
      %p305 = pneg %p75
      %p306 = scmp.lt.s32.totalorder %s23, 1
      %s307 = scalar_select %p306, %s23, 1
      %s308 = smul.addr %s307, 18
      %s309 = smul.addr %s308, 4
      %s310 = scalar_lea.vmem %s2, %s309
      %p311 = pneg %p104
      %p312 = pneg %p101
      %p313 = scmp.lt.s32.totalorder %s23, 1
      %s314 = scalar_select %p313, %s23, 1
      %s315 = smul.addr %s314, 18
      %s316 = smul.addr %s315, 4
      %s317 = scalar_lea.vmem %s3, %s316
      %p318 = pneg %p130
      %p319 = pneg %p127
      %p320 = pneg %p151
      %p321 = pneg %p148
      %p322 = pneg %p179
      %p323 = pneg %p176
      %s324 = smul.u32 8, %s24
      %p325 = scmp.lt.s32.totalorder %s23, 1
      %s326 = scalar_select %p325, %s23, 1
      %p327 = scmp.lt.s32.totalorder %s324, 7
      %s328 = scalar_select %p327, %s324, 7
      %s329 = smul.addr %s326, 8
      %s330 = sadd.s32 %s328, %s329
      %s331 = smul.addr %s330, 4
      %s332 = scalar_lea.vmem %s5, %s331
      %p333 = pneg %p205
      %p334 = pneg %p202
      %p335 = scmp.lt.s32.totalorder %s23, 1
      %s336 = scalar_select %p335, %s23, 1
      %s337 = scalar_lea.vmem %s6, %s336
      %p338 = pneg %p231
      %p339 = pneg %p228
      %p340 = scmp.lt.s32.totalorder %s23, 1
      %s341 = scalar_select %p340, %s23, 1
      %s342 = scalar_lea.vmem %s7, %s341
      %p343 = scmp.lt.s32.totalorder %s23, 1
      %s344 = scalar_select %p343, %s23, 1
      %s345 = smul.addr %s344, 18
      %s346 = smul.addr %s345, 4
      %s347 = scalar_lea.vmem %s0, %s346
      %p348 = scmp.lt.s32.totalorder %s23, 1
      %s349 = scalar_select %p348, %s23, 1
      %s350 = smul.addr %s349, 18
      %s351 = smul.addr %s350, 4
      %s352 = scalar_lea.vmem %s1, %s351
      %p353 = scmp.lt.s32.totalorder %s23, 1
      %s354 = scalar_select %p353, %s23, 1
      %s355 = smul.addr %s354, 18
      %s356 = smul.addr %s355, 4
      %s357 = scalar_lea.vmem %s2, %s356
      %p358 = scmp.lt.s32.totalorder %s23, 1
      %s359 = scalar_select %p358, %s23, 1
      %s360 = smul.addr %s359, 18
      %s361 = smul.addr %s360, 4
      %s362 = scalar_lea.vmem %s3, %s361
      %s363 = smul.u32 8, %s24
      %p364 = scmp.lt.s32.totalorder %s23, 1
      %s365 = scalar_select %p364, %s23, 1
      %p366 = scmp.lt.s32.totalorder %s363, 7
      %s367 = scalar_select %p366, %s363, 7
      %s368 = smul.addr %s365, 8
      %s369 = sadd.s32 %s367, %s368
      %s370 = smul.addr %s369, 4
      %s371 = scalar_lea.vmem %s5, %s370
      %s372 = smul.u32 8, %s24
      %p373 = scmp.lt.s32.totalorder %s23, 1
      %s374 = scalar_select %p373, %s23, 1
      %s375 = scalar_lea.vmem %s6, %s374
      %p376 = scmp.lt.s32.totalorder %s23, 1
      %s377 = scalar_select %p376, %s23, 1
      %s378 = scalar_lea.vmem %s7, %s377
      %p380 = scmp.eq.s32.totalorder %s24, 0
      // Predicated region
      $region41: #{downblock_forward.2} parent=39 // pred_check
        %p381 = pneg %p380
      $region42: #{downblock_forward.2} parent=39 // pred_check_branch
        %383 = sbr.rel (%p381) target = $region44
      $region43: #{downblock_forward.2} parent=39 // pred_region
        %vm384 = vcmask 57344
        %385 = vst.msk [vmem:[%s375] sm:$0x1] %vm384, 0.0
        %386 = vst.msk [vmem:[%s378] sm:$0x1] %vm384, 0.0
      $region44: #{downblock_forward.2} parent=39 // pred_fallthru
        _
      %s387 = smul.u32 %s24, 8
      %s388 = smul.u32 %s387, 2
      %s389 = smul.addr %s388, 4
      %s390 = scalar_lea.vmem %s347, %s389
      %v391 = vld [vmem:[%s390] sm:$0xf]
      %v392 = vld [vmem:[%s390 + $0x8] sm:$0xf]
      %v393 = vld [vmem:[%s390 + $0x10] sm:$0xf]
      %v394 = vld [vmem:[%s390 + $0x18] sm:$0xf]
      %v395 = vld [vmem:[%s390 + $0x20] sm:$0xf]
      %v396 = vld [vmem:[%s390 + $0x28] sm:$0xf]
      %v397 = vld [vmem:[%s390 + $0x30] sm:$0xf]
      %v398 = vld [vmem:[%s390 + $0x38] sm:$0xf]
      %v399 = vld [vmem:[%s4] sm:$0x3]
      %v408 = vunpack.c.l.b16 %v391
      %v409 = vunpack.c.l.b16 %v392
      %v410 = vunpack.c.l.b16 %v393
      %v411 = vunpack.c.l.b16 %v394
      %v412 = vunpack.c.l.b16 %v395
      %v413 = vunpack.c.l.b16 %v396
      %v414 = vunpack.c.l.b16 %v397
      %v415 = vunpack.c.l.b16 %v398
      %v416 = vpack.c.b16 %v409, %v408
      %v417 = vpack.c.b16 %v411, %v410
      %v418 = vpack.c.b16 %v413, %v412
      %v419 = vpack.c.b16 %v415, %v414
      %vm420 = vcmask 31744
      %v422 = vsel %vm420, %v416, 0
      %v425 = vsel %vm420, %v417, 0
      %v428 = vsel %vm420, %v418, 0
      %v431 = vsel %vm420, %v419, 0
      %vm433 = vcmask 1041408
      %v435 = vsel %vm433, %v399, 0
      %437 = vmatprep.subr.bf16.mxu0 0
      %438 = vmatpush1.bf16.msra.mxu0 0
      %439 = vmatprep.subr.bf16.mxu0 0
      %440 = vmatpush1.bf16.msra.mxu0 0
      %441 = vmatprep.subr.bf16.mxu0 0
      %442 = vmatpush1.bf16.msra.mxu0 0
      %443 = vmatprep.subr.bf16.mxu0 0
      %444 = vmatpush1.bf16.msra.mxu0 0
      %445 = vmatprep.subr.bf16.mxu0 0
      %446 = vmatpush1.bf16.msra.mxu0 0
      %447 = vmatprep.subr.bf16.mxu0 0
      %448 = vmatpush1.bf16.msra.mxu0 0
      %449 = vmatprep.subr.bf16.mxu0 0
      %450 = vmatpush1.bf16.msra.mxu0 0
      %451 = vmatprep.subr.bf16.mxu0 0
      %452 = vmatpush1.bf16.msra.mxu0 %v435
      %453 = vmatprep.subr.bf16.mxu0 0
      %454 = vmatpush2.bf16.msra.mxu0 0
      %455 = vmatprep.subr.bf16.mxu0 0
      %456 = vmatpush2.bf16.msra.mxu0 0
      %457 = vmatprep.subr.bf16.mxu0 0
      %458 = vmatpush2.bf16.msra.mxu0 0
      %459 = vmatprep.subr.bf16.mxu0 0
      %460 = vmatpush2.bf16.msra.mxu0 0
      %461 = vmatprep.subr.bf16.mxu0 0
      %462 = vmatpush2.bf16.msra.mxu0 0
      %463 = vmatprep.subr.bf16.mxu0 0
      %464 = vmatpush2.bf16.msra.mxu0 0
      %465 = vmatprep.subr.bf16.mxu0 0
      %466 = vmatpush2.bf16.msra.mxu0 0
      %467 = vmatprep.subr.bf16.mxu0 0
      %468 = vmatpush2.bf16.msra.mxu0 0
      %469 = vmatprep.mubr.bf16.mxu0 0
      %470 = vmatmul.mubr.bf16.gmra.mxu0 %v422
      %v471 = vpop.f32.mrf.mxu0
      %v472 = vadd.f32 0.0, %v471
      %v473 = vpop.f32.mrf.mxu0
      %v474 = vpop.f32.mrf.mxu0
      %v475 = vadd.f32 0.0, %v474
      %v476 = vpop.f32.mrf.mxu0
      %477 = vmatprep.mubr.bf16.mxu0 0
      %478 = vmatmul.mubr.bf16.gmra.mxu0 %v425
      %v479 = vpop.f32.mrf.mxu0
      %v480 = vadd.f32 0.0, %v479
      %v481 = vpop.f32.mrf.mxu0
      %v482 = vpop.f32.mrf.mxu0
      %v483 = vadd.f32 0.0, %v482
      %v484 = vpop.f32.mrf.mxu0
      %485 = vmatprep.mubr.bf16.mxu0 0
      %486 = vmatmul.mubr.bf16.gmra.mxu0 %v428
      %v487 = vpop.f32.mrf.mxu0
      %v488 = vadd.f32 0.0, %v487
      %v489 = vpop.f32.mrf.mxu0
      %v490 = vpop.f32.mrf.mxu0
      %v491 = vadd.f32 0.0, %v490
      %v492 = vpop.f32.mrf.mxu0
      %493 = vmatprep.mubr.bf16.mxu0 0
      %494 = vmatmul.mubr.bf16.gmra.mxu0 %v431
      %v495 = vpop.f32.mrf.mxu0
      %v496 = vadd.f32 0.0, %v495
      %v497 = vpop.f32.mrf.mxu0
      %v498 = vpop.f32.mrf.mxu0
      %v499 = vadd.f32 0.0, %v498
      %v500 = vpop.f32.mrf.mxu0
      %501 = vdwg.mxu0
      %vm502 = vcmask 64512
      %503 = vst.msk [vmem:[#allocation2] sm:$0xff] %vm502, %v472
      %504 = vst.msk [vmem:[#allocation2 + $0x8] sm:$0xff] %vm502, %v475
      %505 = vst.msk [vmem:[#allocation2 + $0x10] sm:$0xff] %vm502, %v480
      %506 = vst.msk [vmem:[#allocation2 + $0x18] sm:$0xff] %vm502, %v483
      %507 = vst.msk [vmem:[#allocation2 + $0x20] sm:$0xff] %vm502, %v488
      %508 = vst.msk [vmem:[#allocation2 + $0x28] sm:$0xff] %vm502, %v491
      %509 = vst.msk [vmem:[#allocation2 + $0x30] sm:$0xff] %vm502, %v496
      %510 = vst.msk [vmem:[#allocation2 + $0x38] sm:$0xff] %vm502, %v499
      %s511 = smul.addr %s388, 4
      %s512 = scalar_lea.vmem %s352, %s511
      %v513 = vld [vmem:[%s512] sm:$0xf]
      %v514 = vld [vmem:[%s512 + $0x8] sm:$0xf]
      %v515 = vld [vmem:[%s512 + $0x10] sm:$0xf]
      %v516 = vld [vmem:[%s512 + $0x18] sm:$0xf]
      %v517 = vld [vmem:[%s512 + $0x20] sm:$0xf]
      %v518 = vld [vmem:[%s512 + $0x28] sm:$0xf]
      %v519 = vld [vmem:[%s512 + $0x30] sm:$0xf]
      %v520 = vld [vmem:[%s512 + $0x38] sm:$0xf]
      %s521 = scalar_lea.vmem %s4, 2
      %v522 = vld [vmem:[%s521] sm:$0x3]
      %v531 = vunpack.c.l.b16 %v513
      %v532 = vunpack.c.l.b16 %v514
      %v533 = vunpack.c.l.b16 %v515
      %v534 = vunpack.c.l.b16 %v516
      %v535 = vunpack.c.l.b16 %v517
      %v536 = vunpack.c.l.b16 %v518
      %v537 = vunpack.c.l.b16 %v519
      %v538 = vunpack.c.l.b16 %v520
      %v539 = vpack.c.b16 %v532, %v531
      %v540 = vpack.c.b16 %v534, %v533
      %v541 = vpack.c.b16 %v536, %v535
      %v542 = vpack.c.b16 %v538, %v537
      %v544 = vsel %vm420, %v539, 0
      %v547 = vsel %vm420, %v540, 0
      %v550 = vsel %vm420, %v541, 0
      %v553 = vsel %vm420, %v542, 0
      %v556 = vsel %vm433, %v522, 0
      %558 = vmatprep.subr.bf16.mxu0 0
      %559 = vmatpush1.bf16.msra.mxu0 0
      %560 = vmatprep.subr.bf16.mxu0 0
      %561 = vmatpush1.bf16.msra.mxu0 0
      %562 = vmatprep.subr.bf16.mxu0 0
      %563 = vmatpush1.bf16.msra.mxu0 0
      %564 = vmatprep.subr.bf16.mxu0 0
      %565 = vmatpush1.bf16.msra.mxu0 0
      %566 = vmatprep.subr.bf16.mxu0 0
      %567 = vmatpush1.bf16.msra.mxu0 0
      %568 = vmatprep.subr.bf16.mxu0 0
      %569 = vmatpush1.bf16.msra.mxu0 0
      %570 = vmatprep.subr.bf16.mxu0 0
      %571 = vmatpush1.bf16.msra.mxu0 0
      %572 = vmatprep.subr.bf16.mxu0 0
      %573 = vmatpush1.bf16.msra.mxu0 %v556
      %574 = vmatprep.subr.bf16.mxu0 0
      %575 = vmatpush2.bf16.msra.mxu0 0
      %576 = vmatprep.subr.bf16.mxu0 0
      %577 = vmatpush2.bf16.msra.mxu0 0
      %578 = vmatprep.subr.bf16.mxu0 0
      %579 = vmatpush2.bf16.msra.mxu0 0
      %580 = vmatprep.subr.bf16.mxu0 0
      %581 = vmatpush2.bf16.msra.mxu0 0
      %582 = vmatprep.subr.bf16.mxu0 0
      %583 = vmatpush2.bf16.msra.mxu0 0
      %584 = vmatprep.subr.bf16.mxu0 0
      %585 = vmatpush2.bf16.msra.mxu0 0
      %586 = vmatprep.subr.bf16.mxu0 0
      %587 = vmatpush2.bf16.msra.mxu0 0
      %588 = vmatprep.subr.bf16.mxu0 0
      %589 = vmatpush2.bf16.msra.mxu0 0
      %590 = vmatprep.mubr.bf16.mxu0 0
      %591 = vmatmul.mubr.bf16.gmra.mxu0 %v544
      %v592 = vpop.f32.mrf.mxu0
      %v593 = vadd.f32 0.0, %v592
      %v594 = vpop.f32.mrf.mxu0
      %v595 = vpop.f32.mrf.mxu0
      %v596 = vadd.f32 0.0, %v595
      %v597 = vpop.f32.mrf.mxu0
      %598 = vmatprep.mubr.bf16.mxu0 0
      %599 = vmatmul.mubr.bf16.gmra.mxu0 %v547
      %v600 = vpop.f32.mrf.mxu0
      %v601 = vadd.f32 0.0, %v600
      %v602 = vpop.f32.mrf.mxu0
      %v603 = vpop.f32.mrf.mxu0
      %v604 = vadd.f32 0.0, %v603
      %v605 = vpop.f32.mrf.mxu0
      %606 = vmatprep.mubr.bf16.mxu0 0
      %607 = vmatmul.mubr.bf16.gmra.mxu0 %v550
      %v608 = vpop.f32.mrf.mxu0
      %v609 = vadd.f32 0.0, %v608
      %v610 = vpop.f32.mrf.mxu0
      %v611 = vpop.f32.mrf.mxu0
      %v612 = vadd.f32 0.0, %v611
      %v613 = vpop.f32.mrf.mxu0
      %614 = vmatprep.mubr.bf16.mxu0 0
      %615 = vmatmul.mubr.bf16.gmra.mxu0 %v553
      %v616 = vpop.f32.mrf.mxu0
      %v617 = vadd.f32 0.0, %v616
      %v618 = vpop.f32.mrf.mxu0
      %v619 = vpop.f32.mrf.mxu0
      %v620 = vadd.f32 0.0, %v619
      %v621 = vpop.f32.mrf.mxu0
      %622 = vdwg.mxu0
      %v623 = vld [vmem:[#allocation2] sm:$0xff]
      %v624 = vld [vmem:[#allocation2 + $0x8] sm:$0xff]
      %v625 = vld [vmem:[#allocation2 + $0x10] sm:$0xff]
      %v626 = vld [vmem:[#allocation2 + $0x18] sm:$0xff]
      %v627 = vld [vmem:[#allocation2 + $0x20] sm:$0xff]
      %v628 = vld [vmem:[#allocation2 + $0x28] sm:$0xff]
      %v629 = vld [vmem:[#allocation2 + $0x30] sm:$0xff]
      %v630 = vld [vmem:[#allocation2 + $0x38] sm:$0xff]
      %v631 = vadd.f32 %v623, %v593
      %v632 = vadd.f32 %v624, %v596
      %v633 = vadd.f32 %v625, %v601
      %v634 = vadd.f32 %v626, %v604
      %v635 = vadd.f32 %v627, %v609
      %v636 = vadd.f32 %v628, %v612
      %v637 = vadd.f32 %v629, %v617
      %v638 = vadd.f32 %v630, %v620
      %639 = vst.msk [vmem:[#allocation2] sm:$0xff] %vm502, %v631
      %640 = vst.msk [vmem:[#allocation2 + $0x8] sm:$0xff] %vm502, %v632
      %641 = vst.msk [vmem:[#allocation2 + $0x10] sm:$0xff] %vm502, %v633
      %642 = vst.msk [vmem:[#allocation2 + $0x18] sm:$0xff] %vm502, %v634
      %643 = vst.msk [vmem:[#allocation2 + $0x20] sm:$0xff] %vm502, %v635
      %644 = vst.msk [vmem:[#allocation2 + $0x28] sm:$0xff] %vm502, %v636
      %645 = vst.msk [vmem:[#allocation2 + $0x30] sm:$0xff] %vm502, %v637
      %646 = vst.msk [vmem:[#allocation2 + $0x38] sm:$0xff] %vm502, %v638
      %v647 = vld [vmem:[%s390] sm:$0xf]
      %v648 = vld [vmem:[%s390 + $0x4] sm:$0x1]
      %v649 = vld [vmem:[%s390 + $0x8] sm:$0xf]
      %v650 = vld [vmem:[%s390 + $0xc] sm:$0x1]
      %v651 = vld [vmem:[%s390 + $0x10] sm:$0xf]
      %v652 = vld [vmem:[%s390 + $0x14] sm:$0x1]
      %v653 = vld [vmem:[%s390 + $0x18] sm:$0xf]
      %v654 = vld [vmem:[%s390 + $0x1c] sm:$0x1]
      %v655 = vld [vmem:[%s390 + $0x20] sm:$0xf]
      %v656 = vld [vmem:[%s390 + $0x24] sm:$0x1]
      %v657 = vld [vmem:[%s390 + $0x28] sm:$0xf]
      %v658 = vld [vmem:[%s390 + $0x2c] sm:$0x1]
      %v659 = vld [vmem:[%s390 + $0x30] sm:$0xf]
      %v660 = vld [vmem:[%s390 + $0x34] sm:$0x1]
      %v661 = vld [vmem:[%s390 + $0x38] sm:$0xf]
      %v662 = vld [vmem:[%s390 + $0x3c] sm:$0x1]
      %vm663 = vsmask.f32 3328
      %vm664 = vsmask.f32 7440
      %vm665 = vmor %vm663, %vm664
      %v667 = vshrl.u32 %v647, 16
      %v669 = vrot.slane %v667, 4
      %v670 = vshll.u32 %v647, 16
      %v672 = vrot.slane %v670, 5
      %v673 = vor.u32 %v669, %v672
      %v674 = vrot.slane %v673, 4
      %v676 = vshll.u32 %v648, 16
      %v678 = vrot.slane %v676, 5
      %v679 = vsel %vm665, %v674, %v678
      %v681 = vshrl.u32 %v649, 16
      %v683 = vrot.slane %v681, 4
      %v684 = vshll.u32 %v649, 16
      %v686 = vrot.slane %v684, 5
      %v687 = vor.u32 %v683, %v686
      %v688 = vrot.slane %v687, 4
      %v690 = vshll.u32 %v650, 16
      %v692 = vrot.slane %v690, 5
      %v693 = vsel %vm665, %v688, %v692
      %v695 = vshrl.u32 %v651, 16
      %v697 = vrot.slane %v695, 4
      %v698 = vshll.u32 %v651, 16
      %v700 = vrot.slane %v698, 5
      %v701 = vor.u32 %v697, %v700
      %v702 = vrot.slane %v701, 4
      %v704 = vshll.u32 %v652, 16
      %v706 = vrot.slane %v704, 5
      %v707 = vsel %vm665, %v702, %v706
      %v709 = vshrl.u32 %v653, 16
      %v711 = vrot.slane %v709, 4
      %v712 = vshll.u32 %v653, 16
      %v714 = vrot.slane %v712, 5
      %v715 = vor.u32 %v711, %v714
      %v716 = vrot.slane %v715, 4
      %v718 = vshll.u32 %v654, 16
      %v720 = vrot.slane %v718, 5
      %v721 = vsel %vm665, %v716, %v720
      %v723 = vshrl.u32 %v655, 16
      %v725 = vrot.slane %v723, 4
      %v726 = vshll.u32 %v655, 16
      %v728 = vrot.slane %v726, 5
      %v729 = vor.u32 %v725, %v728
      %v730 = vrot.slane %v729, 4
      %v732 = vshll.u32 %v656, 16
      %v734 = vrot.slane %v732, 5
      %v735 = vsel %vm665, %v730, %v734
      %v737 = vshrl.u32 %v657, 16
      %v739 = vrot.slane %v737, 4
      %v740 = vshll.u32 %v657, 16
      %v742 = vrot.slane %v740, 5
      %v743 = vor.u32 %v739, %v742
      %v744 = vrot.slane %v743, 4
      %v746 = vshll.u32 %v658, 16
      %v748 = vrot.slane %v746, 5
      %v749 = vsel %vm665, %v744, %v748
      %v751 = vshrl.u32 %v659, 16
      %v753 = vrot.slane %v751, 4
      %v754 = vshll.u32 %v659, 16
      %v756 = vrot.slane %v754, 5
      %v757 = vor.u32 %v753, %v756
      %v758 = vrot.slane %v757, 4
      %v760 = vshll.u32 %v660, 16
      %v762 = vrot.slane %v760, 5
      %v763 = vsel %vm665, %v758, %v762
      %v765 = vshrl.u32 %v661, 16
      %v767 = vrot.slane %v765, 4
      %v768 = vshll.u32 %v661, 16
      %v770 = vrot.slane %v768, 5
      %v771 = vor.u32 %v767, %v770
      %v772 = vrot.slane %v771, 4
      %v774 = vshll.u32 %v662, 16
      %v776 = vrot.slane %v774, 5
      %v777 = vsel %vm665, %v772, %v776
      %s778 = scalar_lea.vmem %s4, 4
      %v779 = vld [vmem:[%s778] sm:$0x3]
      %v780 = vunpack.c.l.b16 %v679
      %v781 = vunpack.c.l.b16 %v693
      %v782 = vunpack.c.l.b16 %v707
      %v783 = vunpack.c.l.b16 %v721
      %v784 = vunpack.c.l.b16 %v735
      %v785 = vunpack.c.l.b16 %v749
      %v786 = vunpack.c.l.b16 %v763
      %v787 = vunpack.c.l.b16 %v777
      %v788 = vpack.c.b16 %v781, %v780
      %v789 = vpack.c.b16 %v783, %v782
      %v790 = vpack.c.b16 %v785, %v784
      %v791 = vpack.c.b16 %v787, %v786
      %v793 = vsel %vm420, %v788, 0
      %v796 = vsel %vm420, %v789, 0
      %v799 = vsel %vm420, %v790, 0
      %v802 = vsel %vm420, %v791, 0
      %v805 = vsel %vm433, %v779, 0
      %807 = vmatprep.subr.bf16.mxu0 0
      %808 = vmatpush1.bf16.msra.mxu0 0
      %809 = vmatprep.subr.bf16.mxu0 0
      %810 = vmatpush1.bf16.msra.mxu0 0
      %811 = vmatprep.subr.bf16.mxu0 0
      %812 = vmatpush1.bf16.msra.mxu0 0
      %813 = vmatprep.subr.bf16.mxu0 0
      %814 = vmatpush1.bf16.msra.mxu0 0
      %815 = vmatprep.subr.bf16.mxu0 0
      %816 = vmatpush1.bf16.msra.mxu0 0
      %817 = vmatprep.subr.bf16.mxu0 0
      %818 = vmatpush1.bf16.msra.mxu0 0
      %819 = vmatprep.subr.bf16.mxu0 0
      %820 = vmatpush1.bf16.msra.mxu0 0
      %821 = vmatprep.subr.bf16.mxu0 0
      %822 = vmatpush1.bf16.msra.mxu0 %v805
      %823 = vmatprep.subr.bf16.mxu0 0
      %824 = vmatpush2.bf16.msra.mxu0 0
      %825 = vmatprep.subr.bf16.mxu0 0
      %826 = vmatpush2.bf16.msra.mxu0 0
      %827 = vmatprep.subr.bf16.mxu0 0
      %828 = vmatpush2.bf16.msra.mxu0 0
      %829 = vmatprep.subr.bf16.mxu0 0
      %830 = vmatpush2.bf16.msra.mxu0 0
      %831 = vmatprep.subr.bf16.mxu0 0
      %832 = vmatpush2.bf16.msra.mxu0 0
      %833 = vmatprep.subr.bf16.mxu0 0
      %834 = vmatpush2.bf16.msra.mxu0 0
      %835 = vmatprep.subr.bf16.mxu0 0
      %836 = vmatpush2.bf16.msra.mxu0 0
      %837 = vmatprep.subr.bf16.mxu0 0
      %838 = vmatpush2.bf16.msra.mxu0 0
      %839 = vmatprep.mubr.bf16.mxu0 0
      %840 = vmatmul.mubr.bf16.gmra.mxu0 %v793
      %v841 = vpop.f32.mrf.mxu0
      %v842 = vadd.f32 0.0, %v841
      %v843 = vpop.f32.mrf.mxu0
      %v844 = vpop.f32.mrf.mxu0
      %v845 = vadd.f32 0.0, %v844
      %v846 = vpop.f32.mrf.mxu0
      %847 = vmatprep.mubr.bf16.mxu0 0
      %848 = vmatmul.mubr.bf16.gmra.mxu0 %v796
      %v849 = vpop.f32.mrf.mxu0
      %v850 = vadd.f32 0.0, %v849
      %v851 = vpop.f32.mrf.mxu0
      %v852 = vpop.f32.mrf.mxu0
      %v853 = vadd.f32 0.0, %v852
      %v854 = vpop.f32.mrf.mxu0
      %855 = vmatprep.mubr.bf16.mxu0 0
      %856 = vmatmul.mubr.bf16.gmra.mxu0 %v799
      %v857 = vpop.f32.mrf.mxu0
      %v858 = vadd.f32 0.0, %v857
      %v859 = vpop.f32.mrf.mxu0
      %v860 = vpop.f32.mrf.mxu0
      %v861 = vadd.f32 0.0, %v860
      %v862 = vpop.f32.mrf.mxu0
      %863 = vmatprep.mubr.bf16.mxu0 0
      %864 = vmatmul.mubr.bf16.gmra.mxu0 %v802
      %v865 = vpop.f32.mrf.mxu0
      %v866 = vadd.f32 0.0, %v865
      %v867 = vpop.f32.mrf.mxu0
      %v868 = vpop.f32.mrf.mxu0
      %v869 = vadd.f32 0.0, %v868
      %v870 = vpop.f32.mrf.mxu0
      %871 = vdwg.mxu0
      %v872 = vld [vmem:[#allocation2] sm:$0xff]
      %v873 = vld [vmem:[#allocation2 + $0x8] sm:$0xff]
      %v874 = vld [vmem:[#allocation2 + $0x10] sm:$0xff]
      %v875 = vld [vmem:[#allocation2 + $0x18] sm:$0xff]
      %v876 = vld [vmem:[#allocation2 + $0x20] sm:$0xff]
      %v877 = vld [vmem:[#allocation2 + $0x28] sm:$0xff]
      %v878 = vld [vmem:[#allocation2 + $0x30] sm:$0xff]
      %v879 = vld [vmem:[#allocation2 + $0x38] sm:$0xff]
      %v880 = vadd.f32 %v872, %v842
      %v881 = vadd.f32 %v873, %v845
      %v882 = vadd.f32 %v874, %v850
      %v883 = vadd.f32 %v875, %v853
      %v884 = vadd.f32 %v876, %v858
      %v885 = vadd.f32 %v877, %v861
      %v886 = vadd.f32 %v878, %v866
      %v887 = vadd.f32 %v879, %v869
      %888 = vst.msk [vmem:[#allocation2] sm:$0xff] %vm502, %v880
      %889 = vst.msk [vmem:[#allocation2 + $0x8] sm:$0xff] %vm502, %v881
      %890 = vst.msk [vmem:[#allocation2 + $0x10] sm:$0xff] %vm502, %v882
      %891 = vst.msk [vmem:[#allocation2 + $0x18] sm:$0xff] %vm502, %v883
      %892 = vst.msk [vmem:[#allocation2 + $0x20] sm:$0xff] %vm502, %v884
      %893 = vst.msk [vmem:[#allocation2 + $0x28] sm:$0xff] %vm502, %v885
      %894 = vst.msk [vmem:[#allocation2 + $0x30] sm:$0xff] %vm502, %v886
      %895 = vst.msk [vmem:[#allocation2 + $0x38] sm:$0xff] %vm502, %v887
      %v896 = vld [vmem:[%s512] sm:$0xf]
      %v897 = vld [vmem:[%s512 + $0x4] sm:$0x1]
      %v898 = vld [vmem:[%s512 + $0x8] sm:$0xf]
      %v899 = vld [vmem:[%s512 + $0xc] sm:$0x1]
      %v900 = vld [vmem:[%s512 + $0x10] sm:$0xf]
      %v901 = vld [vmem:[%s512 + $0x14] sm:$0x1]
      %v902 = vld [vmem:[%s512 + $0x18] sm:$0xf]
      %v903 = vld [vmem:[%s512 + $0x1c] sm:$0x1]
      %v904 = vld [vmem:[%s512 + $0x20] sm:$0xf]
      %v905 = vld [vmem:[%s512 + $0x24] sm:$0x1]
      %v906 = vld [vmem:[%s512 + $0x28] sm:$0xf]
      %v907 = vld [vmem:[%s512 + $0x2c] sm:$0x1]
      %v908 = vld [vmem:[%s512 + $0x30] sm:$0xf]
      %v909 = vld [vmem:[%s512 + $0x34] sm:$0x1]
      %v910 = vld [vmem:[%s512 + $0x38] sm:$0xf]
      %v911 = vld [vmem:[%s512 + $0x3c] sm:$0x1]
      %v913 = vshrl.u32 %v896, 16
      %v915 = vrot.slane %v913, 4
      %v916 = vshll.u32 %v896, 16
      %v918 = vrot.slane %v916, 5
      %v919 = vor.u32 %v915, %v918
      %v920 = vrot.slane %v919, 4
      %v922 = vshll.u32 %v897, 16
      %v924 = vrot.slane %v922, 5
      %v925 = vsel %vm665, %v920, %v924
      %v927 = vshrl.u32 %v898, 16
      %v929 = vrot.slane %v927, 4
      %v930 = vshll.u32 %v898, 16
      %v932 = vrot.slane %v930, 5
      %v933 = vor.u32 %v929, %v932
      %v934 = vrot.slane %v933, 4
      %v936 = vshll.u32 %v899, 16
      %v938 = vrot.slane %v936, 5
      %v939 = vsel %vm665, %v934, %v938
      %v941 = vshrl.u32 %v900, 16
      %v943 = vrot.slane %v941, 4
      %v944 = vshll.u32 %v900, 16
      %v946 = vrot.slane %v944, 5
      %v947 = vor.u32 %v943, %v946
      %v948 = vrot.slane %v947, 4
      %v950 = vshll.u32 %v901, 16
      %v952 = vrot.slane %v950, 5
      %v953 = vsel %vm665, %v948, %v952
      %v955 = vshrl.u32 %v902, 16
      %v957 = vrot.slane %v955, 4
      %v958 = vshll.u32 %v902, 16
      %v960 = vrot.slane %v958, 5
      %v961 = vor.u32 %v957, %v960
      %v962 = vrot.slane %v961, 4
      %v964 = vshll.u32 %v903, 16
      %v966 = vrot.slane %v964, 5
      %v967 = vsel %vm665, %v962, %v966
      %v969 = vshrl.u32 %v904, 16
      %v971 = vrot.slane %v969, 4
      %v972 = vshll.u32 %v904, 16
      %v974 = vrot.slane %v972, 5
      %v975 = vor.u32 %v971, %v974
      %v976 = vrot.slane %v975, 4
      %v978 = vshll.u32 %v905, 16
      %v980 = vrot.slane %v978, 5
      %v981 = vsel %vm665, %v976, %v980
      %v983 = vshrl.u32 %v906, 16
      %v985 = vrot.slane %v983, 4
      %v986 = vshll.u32 %v906, 16
      %v988 = vrot.slane %v986, 5
      %v989 = vor.u32 %v985, %v988
      %v990 = vrot.slane %v989, 4
      %v992 = vshll.u32 %v907, 16
      %v994 = vrot.slane %v992, 5
      %v995 = vsel %vm665, %v990, %v994
      %v997 = vshrl.u32 %v908, 16
      %v999 = vrot.slane %v997, 4
      %v1000 = vshll.u32 %v908, 16
      %v1002 = vrot.slane %v1000, 5
      %v1003 = vor.u32 %v999, %v1002
      %v1004 = vrot.slane %v1003, 4
      %v1006 = vshll.u32 %v909, 16
      %v1008 = vrot.slane %v1006, 5
      %v1009 = vsel %vm665, %v1004, %v1008
      %v1011 = vshrl.u32 %v910, 16
      %v1013 = vrot.slane %v1011, 4
      %v1014 = vshll.u32 %v910, 16
      %v1016 = vrot.slane %v1014, 5
      %v1017 = vor.u32 %v1013, %v1016
      %v1018 = vrot.slane %v1017, 4
      %v1020 = vshll.u32 %v911, 16
      %v1022 = vrot.slane %v1020, 5
      %v1023 = vsel %vm665, %v1018, %v1022
      %s1024 = scalar_lea.vmem %s4, 6
      %v1025 = vld [vmem:[%s1024] sm:$0x3]
      %v1026 = vunpack.c.l.b16 %v925
      %v1027 = vunpack.c.l.b16 %v939
      %v1028 = vunpack.c.l.b16 %v953
      %v1029 = vunpack.c.l.b16 %v967
      %v1030 = vunpack.c.l.b16 %v981
      %v1031 = vunpack.c.l.b16 %v995
      %v1032 = vunpack.c.l.b16 %v1009
      %v1033 = vunpack.c.l.b16 %v1023
      %v1034 = vpack.c.b16 %v1027, %v1026
      %v1035 = vpack.c.b16 %v1029, %v1028
      %v1036 = vpack.c.b16 %v1031, %v1030
      %v1037 = vpack.c.b16 %v1033, %v1032
      %v1039 = vsel %vm420, %v1034, 0
      %v1042 = vsel %vm420, %v1035, 0
      %v1045 = vsel %vm420, %v1036, 0
      %v1048 = vsel %vm420, %v1037, 0
      %v1051 = vsel %vm433, %v1025, 0
      %1053 = vmatprep.subr.bf16.mxu0 0
      %1054 = vmatpush1.bf16.msra.mxu0 0
      %1055 = vmatprep.subr.bf16.mxu0 0
      %1056 = vmatpush1.bf16.msra.mxu0 0
      %1057 = vmatprep.subr.bf16.mxu0 0
      %1058 = vmatpush1.bf16.msra.mxu0 0
      %1059 = vmatprep.subr.bf16.mxu0 0
      %1060 = vmatpush1.bf16.msra.mxu0 0
      %1061 = vmatprep.subr.bf16.mxu0 0
      %1062 = vmatpush1.bf16.msra.mxu0 0
      %1063 = vmatprep.subr.bf16.mxu0 0
      %1064 = vmatpush1.bf16.msra.mxu0 0
      %1065 = vmatprep.subr.bf16.mxu0 0
      %1066 = vmatpush1.bf16.msra.mxu0 0
      %1067 = vmatprep.subr.bf16.mxu0 0
      %1068 = vmatpush1.bf16.msra.mxu0 %v1051
      %1069 = vmatprep.subr.bf16.mxu0 0
      %1070 = vmatpush2.bf16.msra.mxu0 0
      %1071 = vmatprep.subr.bf16.mxu0 0
      %1072 = vmatpush2.bf16.msra.mxu0 0
      %1073 = vmatprep.subr.bf16.mxu0 0
      %1074 = vmatpush2.bf16.msra.mxu0 0
      %1075 = vmatprep.subr.bf16.mxu0 0
      %1076 = vmatpush2.bf16.msra.mxu0 0
      %1077 = vmatprep.subr.bf16.mxu0 0
      %1078 = vmatpush2.bf16.msra.mxu0 0
      %1079 = vmatprep.subr.bf16.mxu0 0
      %1080 = vmatpush2.bf16.msra.mxu0 0
      %1081 = vmatprep.subr.bf16.mxu0 0
      %1082 = vmatpush2.bf16.msra.mxu0 0
      %1083 = vmatprep.subr.bf16.mxu0 0
      %1084 = vmatpush2.bf16.msra.mxu0 0
      %1085 = vmatprep.mubr.bf16.mxu0 0
      %1086 = vmatmul.mubr.bf16.gmra.mxu0 %v1039
      %v1087 = vpop.f32.mrf.mxu0
      %v1088 = vadd.f32 0.0, %v1087
      %v1089 = vpop.f32.mrf.mxu0
      %v1090 = vpop.f32.mrf.mxu0
      %v1091 = vadd.f32 0.0, %v1090
      %v1092 = vpop.f32.mrf.mxu0
      %1093 = vmatprep.mubr.bf16.mxu0 0
      %1094 = vmatmul.mubr.bf16.gmra.mxu0 %v1042
      %v1095 = vpop.f32.mrf.mxu0
      %v1096 = vadd.f32 0.0, %v1095
      %v1097 = vpop.f32.mrf.mxu0
      %v1098 = vpop.f32.mrf.mxu0
      %v1099 = vadd.f32 0.0, %v1098
      %v1100 = vpop.f32.mrf.mxu0
      %1101 = vmatprep.mubr.bf16.mxu0 0
      %1102 = vmatmul.mubr.bf16.gmra.mxu0 %v1045
      %v1103 = vpop.f32.mrf.mxu0
      %v1104 = vadd.f32 0.0, %v1103
      %v1105 = vpop.f32.mrf.mxu0
      %v1106 = vpop.f32.mrf.mxu0
      %v1107 = vadd.f32 0.0, %v1106
      %v1108 = vpop.f32.mrf.mxu0
      %1109 = vmatprep.mubr.bf16.mxu0 0
      %1110 = vmatmul.mubr.bf16.gmra.mxu0 %v1048
      %v1111 = vpop.f32.mrf.mxu0
      %v1112 = vadd.f32 0.0, %v1111
      %v1113 = vpop.f32.mrf.mxu0
      %v1114 = vpop.f32.mrf.mxu0
      %v1115 = vadd.f32 0.0, %v1114
      %v1116 = vpop.f32.mrf.mxu0
      %1117 = vdwg.mxu0
      %v1118 = vld [vmem:[#allocation2] sm:$0xff]
      %v1119 = vld [vmem:[#allocation2 + $0x8] sm:$0xff]
      %v1120 = vld [vmem:[#allocation2 + $0x10] sm:$0xff]
      %v1121 = vld [vmem:[#allocation2 + $0x18] sm:$0xff]
      %v1122 = vld [vmem:[#allocation2 + $0x20] sm:$0xff]
      %v1123 = vld [vmem:[#allocation2 + $0x28] sm:$0xff]
      %v1124 = vld [vmem:[#allocation2 + $0x30] sm:$0xff]
      %v1125 = vld [vmem:[#allocation2 + $0x38] sm:$0xff]
      %v1126 = vadd.f32 %v1118, %v1088
      %v1127 = vadd.f32 %v1119, %v1091
      %v1128 = vadd.f32 %v1120, %v1096
      %v1129 = vadd.f32 %v1121, %v1099
      %v1130 = vadd.f32 %v1122, %v1104
      %v1131 = vadd.f32 %v1123, %v1107
      %v1132 = vadd.f32 %v1124, %v1112
      %v1133 = vadd.f32 %v1125, %v1115
      %1134 = vst.msk [vmem:[#allocation2] sm:$0xff] %vm502, %v1126
      %1135 = vst.msk [vmem:[#allocation2 + $0x8] sm:$0xff] %vm502, %v1127
      %1136 = vst.msk [vmem:[#allocation2 + $0x10] sm:$0xff] %vm502, %v1128
      %1137 = vst.msk [vmem:[#allocation2 + $0x18] sm:$0xff] %vm502, %v1129
      %1138 = vst.msk [vmem:[#allocation2 + $0x20] sm:$0xff] %vm502, %v1130
      %1139 = vst.msk [vmem:[#allocation2 + $0x28] sm:$0xff] %vm502, %v1131
      %1140 = vst.msk [vmem:[#allocation2 + $0x30] sm:$0xff] %vm502, %v1132
      %1141 = vst.msk [vmem:[#allocation2 + $0x38] sm:$0xff] %vm502, %v1133
      %s1142 = smul.addr %s388, 4
      %s1143 = scalar_lea.vmem %s357, %s1142
      %v1144 = vld [vmem:[%s1143] sm:$0xf]
      %v1145 = vld [vmem:[%s1143 + $0x8] sm:$0xf]
      %v1146 = vld [vmem:[%s1143 + $0x10] sm:$0xf]
      %v1147 = vld [vmem:[%s1143 + $0x18] sm:$0xf]
      %v1148 = vld [vmem:[%s1143 + $0x20] sm:$0xf]
      %v1149 = vld [vmem:[%s1143 + $0x28] sm:$0xf]
      %v1150 = vld [vmem:[%s1143 + $0x30] sm:$0xf]
      %v1151 = vld [vmem:[%s1143 + $0x38] sm:$0xf]
      %s1152 = scalar_lea.vmem %s4, 8
      %v1153 = vld [vmem:[%s1152] sm:$0x3]
      %v1162 = vunpack.c.l.b16 %v1144
      %v1163 = vunpack.c.l.b16 %v1145
      %v1164 = vunpack.c.l.b16 %v1146
      %v1165 = vunpack.c.l.b16 %v1147
      %v1166 = vunpack.c.l.b16 %v1148
      %v1167 = vunpack.c.l.b16 %v1149
      %v1168 = vunpack.c.l.b16 %v1150
      %v1169 = vunpack.c.l.b16 %v1151
      %v1170 = vpack.c.b16 %v1163, %v1162
      %v1171 = vpack.c.b16 %v1165, %v1164
      %v1172 = vpack.c.b16 %v1167, %v1166
      %v1173 = vpack.c.b16 %v1169, %v1168
      %v1175 = vsel %vm420, %v1170, 0
      %v1178 = vsel %vm420, %v1171, 0
      %v1181 = vsel %vm420, %v1172, 0
      %v1184 = vsel %vm420, %v1173, 0
      %v1187 = vsel %vm433, %v1153, 0
      %1189 = vmatprep.subr.bf16.mxu0 0
      %1190 = vmatpush1.bf16.msra.mxu0 0
      %1191 = vmatprep.subr.bf16.mxu0 0
      %1192 = vmatpush1.bf16.msra.mxu0 0
      %1193 = vmatprep.subr.bf16.mxu0 0
      %1194 = vmatpush1.bf16.msra.mxu0 0
      %1195 = vmatprep.subr.bf16.mxu0 0
      %1196 = vmatpush1.bf16.msra.mxu0 0
      %1197 = vmatprep.subr.bf16.mxu0 0
      %1198 = vmatpush1.bf16.msra.mxu0 0
      %1199 = vmatprep.subr.bf16.mxu0 0
      %1200 = vmatpush1.bf16.msra.mxu0 0
      %1201 = vmatprep.subr.bf16.mxu0 0
      %1202 = vmatpush1.bf16.msra.mxu0 0
      %1203 = vmatprep.subr.bf16.mxu0 0
      %1204 = vmatpush1.bf16.msra.mxu0 %v1187
      %1205 = vmatprep.subr.bf16.mxu0 0
      %1206 = vmatpush2.bf16.msra.mxu0 0
      %1207 = vmatprep.subr.bf16.mxu0 0
      %1208 = vmatpush2.bf16.msra.mxu0 0
      %1209 = vmatprep.subr.bf16.mxu0 0
      %1210 = vmatpush2.bf16.msra.mxu0 0
      %1211 = vmatprep.subr.bf16.mxu0 0
      %1212 = vmatpush2.bf16.msra.mxu0 0
      %1213 = vmatprep.subr.bf16.mxu0 0
      %1214 = vmatpush2.bf16.msra.mxu0 0
      %1215 = vmatprep.subr.bf16.mxu0 0
      %1216 = vmatpush2.bf16.msra.mxu0 0
      %1217 = vmatprep.subr.bf16.mxu0 0
      %1218 = vmatpush2.bf16.msra.mxu0 0
      %1219 = vmatprep.subr.bf16.mxu0 0
      %1220 = vmatpush2.bf16.msra.mxu0 0
      %1221 = vmatprep.mubr.bf16.mxu0 0
      %1222 = vmatmul.mubr.bf16.gmra.mxu0 %v1175
      %v1223 = vpop.f32.mrf.mxu0
      %v1224 = vadd.f32 0.0, %v1223
      %v1225 = vpop.f32.mrf.mxu0
      %v1226 = vpop.f32.mrf.mxu0
      %v1227 = vadd.f32 0.0, %v1226
      %v1228 = vpop.f32.mrf.mxu0
      %1229 = vmatprep.mubr.bf16.mxu0 0
      %1230 = vmatmul.mubr.bf16.gmra.mxu0 %v1178
      %v1231 = vpop.f32.mrf.mxu0
      %v1232 = vadd.f32 0.0, %v1231
      %v1233 = vpop.f32.mrf.mxu0
      %v1234 = vpop.f32.mrf.mxu0
      %v1235 = vadd.f32 0.0, %v1234
      %v1236 = vpop.f32.mrf.mxu0
      %1237 = vmatprep.mubr.bf16.mxu0 0
      %1238 = vmatmul.mubr.bf16.gmra.mxu0 %v1181
      %v1239 = vpop.f32.mrf.mxu0
      %v1240 = vadd.f32 0.0, %v1239
      %v1241 = vpop.f32.mrf.mxu0
      %v1242 = vpop.f32.mrf.mxu0
      %v1243 = vadd.f32 0.0, %v1242
      %v1244 = vpop.f32.mrf.mxu0
      %1245 = vmatprep.mubr.bf16.mxu0 0
      %1246 = vmatmul.mubr.bf16.gmra.mxu0 %v1184
      %v1247 = vpop.f32.mrf.mxu0
      %v1248 = vadd.f32 0.0, %v1247
      %v1249 = vpop.f32.mrf.mxu0
      %v1250 = vpop.f32.mrf.mxu0
      %v1251 = vadd.f32 0.0, %v1250
      %v1252 = vpop.f32.mrf.mxu0
      %1253 = vdwg.mxu0
      %v1254 = vld [vmem:[#allocation2] sm:$0xff]
      %v1255 = vld [vmem:[#allocation2 + $0x8] sm:$0xff]
      %v1256 = vld [vmem:[#allocation2 + $0x10] sm:$0xff]
      %v1257 = vld [vmem:[#allocation2 + $0x18] sm:$0xff]
      %v1258 = vld [vmem:[#allocation2 + $0x20] sm:$0xff]
      %v1259 = vld [vmem:[#allocation2 + $0x28] sm:$0xff]
      %v1260 = vld [vmem:[#allocation2 + $0x30] sm:$0xff]
      %v1261 = vld [vmem:[#allocation2 + $0x38] sm:$0xff]
      %v1262 = vadd.f32 %v1254, %v1224
      %v1263 = vadd.f32 %v1255, %v1227
      %v1264 = vadd.f32 %v1256, %v1232
      %v1265 = vadd.f32 %v1257, %v1235
      %v1266 = vadd.f32 %v1258, %v1240
      %v1267 = vadd.f32 %v1259, %v1243
      %v1268 = vadd.f32 %v1260, %v1248
      %v1269 = vadd.f32 %v1261, %v1251
      %1270 = vst.msk [vmem:[#allocation2] sm:$0xff] %vm502, %v1262
      %1271 = vst.msk [vmem:[#allocation2 + $0x8] sm:$0xff] %vm502, %v1263
      %1272 = vst.msk [vmem:[#allocation2 + $0x10] sm:$0xff] %vm502, %v1264
      %1273 = vst.msk [vmem:[#allocation2 + $0x18] sm:$0xff] %vm502, %v1265
      %1274 = vst.msk [vmem:[#allocation2 + $0x20] sm:$0xff] %vm502, %v1266
      %1275 = vst.msk [vmem:[#allocation2 + $0x28] sm:$0xff] %vm502, %v1267
      %1276 = vst.msk [vmem:[#allocation2 + $0x30] sm:$0xff] %vm502, %v1268
      %1277 = vst.msk [vmem:[#allocation2 + $0x38] sm:$0xff] %vm502, %v1269
      %s1278 = smul.addr %s388, 4
      %s1279 = scalar_lea.vmem %s362, %s1278
      %v1280 = vld [vmem:[%s1279] sm:$0xf]
      %v1281 = vld [vmem:[%s1279 + $0x8] sm:$0xf]
      %v1282 = vld [vmem:[%s1279 + $0x10] sm:$0xf]
      %v1283 = vld [vmem:[%s1279 + $0x18] sm:$0xf]
      %v1284 = vld [vmem:[%s1279 + $0x20] sm:$0xf]
      %v1285 = vld [vmem:[%s1279 + $0x28] sm:$0xf]
      %v1286 = vld [vmem:[%s1279 + $0x30] sm:$0xf]
      %v1287 = vld [vmem:[%s1279 + $0x38] sm:$0xf]
      %s1288 = scalar_lea.vmem %s4, 10
      %v1289 = vld [vmem:[%s1288] sm:$0x3]
      %v1298 = vunpack.c.l.b16 %v1280
      %v1299 = vunpack.c.l.b16 %v1281
      %v1300 = vunpack.c.l.b16 %v1282
      %v1301 = vunpack.c.l.b16 %v1283
      %v1302 = vunpack.c.l.b16 %v1284
      %v1303 = vunpack.c.l.b16 %v1285
      %v1304 = vunpack.c.l.b16 %v1286
      %v1305 = vunpack.c.l.b16 %v1287
      %v1306 = vpack.c.b16 %v1299, %v1298
      %v1307 = vpack.c.b16 %v1301, %v1300
      %v1308 = vpack.c.b16 %v1303, %v1302
      %v1309 = vpack.c.b16 %v1305, %v1304
      %v1311 = vsel %vm420, %v1306, 0
      %v1314 = vsel %vm420, %v1307, 0
      %v1317 = vsel %vm420, %v1308, 0
      %v1320 = vsel %vm420, %v1309, 0
      %v1323 = vsel %vm433, %v1289, 0
      %1325 = vmatprep.subr.bf16.mxu0 0
      %1326 = vmatpush1.bf16.msra.mxu0 0
      %1327 = vmatprep.subr.bf16.mxu0 0
      %1328 = vmatpush1.bf16.msra.mxu0 0
      %1329 = vmatprep.subr.bf16.mxu0 0
      %1330 = vmatpush1.bf16.msra.mxu0 0
      %1331 = vmatprep.subr.bf16.mxu0 0
      %1332 = vmatpush1.bf16.msra.mxu0 0
      %1333 = vmatprep.subr.bf16.mxu0 0
      %1334 = vmatpush1.bf16.msra.mxu0 0
      %1335 = vmatprep.subr.bf16.mxu0 0
      %1336 = vmatpush1.bf16.msra.mxu0 0
      %1337 = vmatprep.subr.bf16.mxu0 0
      %1338 = vmatpush1.bf16.msra.mxu0 0
      %1339 = vmatprep.subr.bf16.mxu0 0
      %1340 = vmatpush1.bf16.msra.mxu0 %v1323
      %1341 = vmatprep.subr.bf16.mxu0 0
      %1342 = vmatpush2.bf16.msra.mxu0 0
      %1343 = vmatprep.subr.bf16.mxu0 0
      %1344 = vmatpush2.bf16.msra.mxu0 0
      %1345 = vmatprep.subr.bf16.mxu0 0
      %1346 = vmatpush2.bf16.msra.mxu0 0
      %1347 = vmatprep.subr.bf16.mxu0 0
      %1348 = vmatpush2.bf16.msra.mxu0 0
      %1349 = vmatprep.subr.bf16.mxu0 0
      %1350 = vmatpush2.bf16.msra.mxu0 0
      %1351 = vmatprep.subr.bf16.mxu0 0
      %1352 = vmatpush2.bf16.msra.mxu0 0
      %1353 = vmatprep.subr.bf16.mxu0 0
      %1354 = vmatpush2.bf16.msra.mxu0 0
      %1355 = vmatprep.subr.bf16.mxu0 0
      %1356 = vmatpush2.bf16.msra.mxu0 0
      %1357 = vmatprep.mubr.bf16.mxu0 0
      %1358 = vmatmul.mubr.bf16.gmra.mxu0 %v1311
      %v1359 = vpop.f32.mrf.mxu0
      %v1360 = vadd.f32 0.0, %v1359
      %v1361 = vpop.f32.mrf.mxu0
      %v1362 = vpop.f32.mrf.mxu0
      %v1363 = vadd.f32 0.0, %v1362
      %v1364 = vpop.f32.mrf.mxu0
      %1365 = vmatprep.mubr.bf16.mxu0 0
      %1366 = vmatmul.mubr.bf16.gmra.mxu0 %v1314
      %v1367 = vpop.f32.mrf.mxu0
      %v1368 = vadd.f32 0.0, %v1367
      %v1369 = vpop.f32.mrf.mxu0
      %v1370 = vpop.f32.mrf.mxu0
      %v1371 = vadd.f32 0.0, %v1370
      %v1372 = vpop.f32.mrf.mxu0
      %1373 = vmatprep.mubr.bf16.mxu0 0
      %1374 = vmatmul.mubr.bf16.gmra.mxu0 %v1317
      %v1375 = vpop.f32.mrf.mxu0
      %v1376 = vadd.f32 0.0, %v1375
      %v1377 = vpop.f32.mrf.mxu0
      %v1378 = vpop.f32.mrf.mxu0
      %v1379 = vadd.f32 0.0, %v1378
      %v1380 = vpop.f32.mrf.mxu0
      %1381 = vmatprep.mubr.bf16.mxu0 0
      %1382 = vmatmul.mubr.bf16.gmra.mxu0 %v1320
      %v1383 = vpop.f32.mrf.mxu0
      %v1384 = vadd.f32 0.0, %v1383
      %v1385 = vpop.f32.mrf.mxu0
      %v1386 = vpop.f32.mrf.mxu0
      %v1387 = vadd.f32 0.0, %v1386
      %v1388 = vpop.f32.mrf.mxu0
      %1389 = vdwg.mxu0
      %v1390 = vld [vmem:[#allocation2] sm:$0xff]
      %v1391 = vld [vmem:[#allocation2 + $0x8] sm:$0xff]
      %v1392 = vld [vmem:[#allocation2 + $0x10] sm:$0xff]
      %v1393 = vld [vmem:[#allocation2 + $0x18] sm:$0xff]
      %v1394 = vld [vmem:[#allocation2 + $0x20] sm:$0xff]
      %v1395 = vld [vmem:[#allocation2 + $0x28] sm:$0xff]
      %v1396 = vld [vmem:[#allocation2 + $0x30] sm:$0xff]
      %v1397 = vld [vmem:[#allocation2 + $0x38] sm:$0xff]
      %v1398 = vadd.f32 %v1390, %v1360
      %v1399 = vadd.f32 %v1391, %v1363
      %v1400 = vadd.f32 %v1392, %v1368
      %v1401 = vadd.f32 %v1393, %v1371
      %v1402 = vadd.f32 %v1394, %v1376
      %v1403 = vadd.f32 %v1395, %v1379
      %v1404 = vadd.f32 %v1396, %v1384
      %v1405 = vadd.f32 %v1397, %v1387
      %1406 = vst.msk [vmem:[#allocation2] sm:$0xff] %vm502, %v1398
      %1407 = vst.msk [vmem:[#allocation2 + $0x8] sm:$0xff] %vm502, %v1399
      %1408 = vst.msk [vmem:[#allocation2 + $0x10] sm:$0xff] %vm502, %v1400
      %1409 = vst.msk [vmem:[#allocation2 + $0x18] sm:$0xff] %vm502, %v1401
      %1410 = vst.msk [vmem:[#allocation2 + $0x20] sm:$0xff] %vm502, %v1402
      %1411 = vst.msk [vmem:[#allocation2 + $0x28] sm:$0xff] %vm502, %v1403
      %1412 = vst.msk [vmem:[#allocation2 + $0x30] sm:$0xff] %vm502, %v1404
      %1413 = vst.msk [vmem:[#allocation2 + $0x38] sm:$0xff] %vm502, %v1405
      %v1414 = vld [vmem:[%s1143] sm:$0xf]
      %v1415 = vld [vmem:[%s1143 + $0x4] sm:$0x1]
      %v1416 = vld [vmem:[%s1143 + $0x8] sm:$0xf]
      %v1417 = vld [vmem:[%s1143 + $0xc] sm:$0x1]
      %v1418 = vld [vmem:[%s1143 + $0x10] sm:$0xf]
      %v1419 = vld [vmem:[%s1143 + $0x14] sm:$0x1]
      %v1420 = vld [vmem:[%s1143 + $0x18] sm:$0xf]
      %v1421 = vld [vmem:[%s1143 + $0x1c] sm:$0x1]
      %v1422 = vld [vmem:[%s1143 + $0x20] sm:$0xf]
      %v1423 = vld [vmem:[%s1143 + $0x24] sm:$0x1]
      %v1424 = vld [vmem:[%s1143 + $0x28] sm:$0xf]
      %v1425 = vld [vmem:[%s1143 + $0x2c] sm:$0x1]
      %v1426 = vld [vmem:[%s1143 + $0x30] sm:$0xf]
      %v1427 = vld [vmem:[%s1143 + $0x34] sm:$0x1]
      %v1428 = vld [vmem:[%s1143 + $0x38] sm:$0xf]
      %v1429 = vld [vmem:[%s1143 + $0x3c] sm:$0x1]
      %v1431 = vshrl.u32 %v1414, 16
      %v1433 = vrot.slane %v1431, 4
      %v1434 = vshll.u32 %v1414, 16
      %v1436 = vrot.slane %v1434, 5
      %v1437 = vor.u32 %v1433, %v1436
      %v1438 = vrot.slane %v1437, 4
      %v1440 = vshll.u32 %v1415, 16
      %v1442 = vrot.slane %v1440, 5
      %v1443 = vsel %vm665, %v1438, %v1442
      %v1445 = vshrl.u32 %v1416, 16
      %v1447 = vrot.slane %v1445, 4
      %v1448 = vshll.u32 %v1416, 16
      %v1450 = vrot.slane %v1448, 5
      %v1451 = vor.u32 %v1447, %v1450
      %v1452 = vrot.slane %v1451, 4
      %v1454 = vshll.u32 %v1417, 16
      %v1456 = vrot.slane %v1454, 5
      %v1457 = vsel %vm665, %v1452, %v1456
      %v1459 = vshrl.u32 %v1418, 16
      %v1461 = vrot.slane %v1459, 4
      %v1462 = vshll.u32 %v1418, 16
      %v1464 = vrot.slane %v1462, 5
      %v1465 = vor.u32 %v1461, %v1464
      %v1466 = vrot.slane %v1465, 4
      %v1468 = vshll.u32 %v1419, 16
      %v1470 = vrot.slane %v1468, 5
      %v1471 = vsel %vm665, %v1466, %v1470
      %v1473 = vshrl.u32 %v1420, 16
      %v1475 = vrot.slane %v1473, 4
      %v1476 = vshll.u32 %v1420, 16
      %v1478 = vrot.slane %v1476, 5
      %v1479 = vor.u32 %v1475, %v1478
      %v1480 = vrot.slane %v1479, 4
      %v1482 = vshll.u32 %v1421, 16
      %v1484 = vrot.slane %v1482, 5
      %v1485 = vsel %vm665, %v1480, %v1484
      %v1487 = vshrl.u32 %v1422, 16
      %v1489 = vrot.slane %v1487, 4
      %v1490 = vshll.u32 %v1422, 16
      %v1492 = vrot.slane %v1490, 5
      %v1493 = vor.u32 %v1489, %v1492
      %v1494 = vrot.slane %v1493, 4
      %v1496 = vshll.u32 %v1423, 16
      %v1498 = vrot.slane %v1496, 5
      %v1499 = vsel %vm665, %v1494, %v1498
      %v1501 = vshrl.u32 %v1424, 16
      %v1503 = vrot.slane %v1501, 4
      %v1504 = vshll.u32 %v1424, 16
      %v1506 = vrot.slane %v1504, 5
      %v1507 = vor.u32 %v1503, %v1506
      %v1508 = vrot.slane %v1507, 4
      %v1510 = vshll.u32 %v1425, 16
      %v1512 = vrot.slane %v1510, 5
      %v1513 = vsel %vm665, %v1508, %v1512
      %v1515 = vshrl.u32 %v1426, 16
      %v1517 = vrot.slane %v1515, 4
      %v1518 = vshll.u32 %v1426, 16
      %v1520 = vrot.slane %v1518, 5
      %v1521 = vor.u32 %v1517, %v1520
      %v1522 = vrot.slane %v1521, 4
      %v1524 = vshll.u32 %v1427, 16
      %v1526 = vrot.slane %v1524, 5
      %v1527 = vsel %vm665, %v1522, %v1526
      %v1529 = vshrl.u32 %v1428, 16
      %v1531 = vrot.slane %v1529, 4
      %v1532 = vshll.u32 %v1428, 16
      %v1534 = vrot.slane %v1532, 5
      %v1535 = vor.u32 %v1531, %v1534
      %v1536 = vrot.slane %v1535, 4
      %v1538 = vshll.u32 %v1429, 16
      %v1540 = vrot.slane %v1538, 5
      %v1541 = vsel %vm665, %v1536, %v1540
      %s1542 = scalar_lea.vmem %s4, 12
      %v1543 = vld [vmem:[%s1542] sm:$0x3]
      %v1544 = vunpack.c.l.b16 %v1443
      %v1545 = vunpack.c.l.b16 %v1457
      %v1546 = vunpack.c.l.b16 %v1471
      %v1547 = vunpack.c.l.b16 %v1485
      %v1548 = vunpack.c.l.b16 %v1499
      %v1549 = vunpack.c.l.b16 %v1513
      %v1550 = vunpack.c.l.b16 %v1527
      %v1551 = vunpack.c.l.b16 %v1541
      %v1552 = vpack.c.b16 %v1545, %v1544
      %v1553 = vpack.c.b16 %v1547, %v1546
      %v1554 = vpack.c.b16 %v1549, %v1548
      %v1555 = vpack.c.b16 %v1551, %v1550
      %v1557 = vsel %vm420, %v1552, 0
      %v1560 = vsel %vm420, %v1553, 0
      %v1563 = vsel %vm420, %v1554, 0
      %v1566 = vsel %vm420, %v1555, 0
      %v1569 = vsel %vm433, %v1543, 0
      %1571 = vmatprep.subr.bf16.mxu0 0
      %1572 = vmatpush1.bf16.msra.mxu0 0
      %1573 = vmatprep.subr.bf16.mxu0 0
      %1574 = vmatpush1.bf16.msra.mxu0 0
      %1575 = vmatprep.subr.bf16.mxu0 0
      %1576 = vmatpush1.bf16.msra.mxu0 0
      %1577 = vmatprep.subr.bf16.mxu0 0
      %1578 = vmatpush1.bf16.msra.mxu0 0
      %1579 = vmatprep.subr.bf16.mxu0 0
      %1580 = vmatpush1.bf16.msra.mxu0 0
      %1581 = vmatprep.subr.bf16.mxu0 0
      %1582 = vmatpush1.bf16.msra.mxu0 0
      %1583 = vmatprep.subr.bf16.mxu0 0
      %1584 = vmatpush1.bf16.msra.mxu0 0
      %1585 = vmatprep.subr.bf16.mxu0 0
      %1586 = vmatpush1.bf16.msra.mxu0 %v1569
      %1587 = vmatprep.subr.bf16.mxu0 0
      %1588 = vmatpush2.bf16.msra.mxu0 0
      %1589 = vmatprep.subr.bf16.mxu0 0
      %1590 = vmatpush2.bf16.msra.mxu0 0
      %1591 = vmatprep.subr.bf16.mxu0 0
      %1592 = vmatpush2.bf16.msra.mxu0 0
      %1593 = vmatprep.subr.bf16.mxu0 0
      %1594 = vmatpush2.bf16.msra.mxu0 0
      %1595 = vmatprep.subr.bf16.mxu0 0
      %1596 = vmatpush2.bf16.msra.mxu0 0
      %1597 = vmatprep.subr.bf16.mxu0 0
      %1598 = vmatpush2.bf16.msra.mxu0 0
      %1599 = vmatprep.subr.bf16.mxu0 0
      %1600 = vmatpush2.bf16.msra.mxu0 0
      %1601 = vmatprep.subr.bf16.mxu0 0
      %1602 = vmatpush2.bf16.msra.mxu0 0
      %1603 = vmatprep.mubr.bf16.mxu0 0
      %1604 = vmatmul.mubr.bf16.gmra.mxu0 %v1557
      %v1605 = vpop.f32.mrf.mxu0
      %v1606 = vadd.f32 0.0, %v1605
      %v1607 = vpop.f32.mrf.mxu0
      %v1608 = vpop.f32.mrf.mxu0
      %v1609 = vadd.f32 0.0, %v1608
      %v1610 = vpop.f32.mrf.mxu0
      %1611 = vmatprep.mubr.bf16.mxu0 0
      %1612 = vmatmul.mubr.bf16.gmra.mxu0 %v1560
      %v1613 = vpop.f32.mrf.mxu0
      %v1614 = vadd.f32 0.0, %v1613
      %v1615 = vpop.f32.mrf.mxu0
      %v1616 = vpop.f32.mrf.mxu0
      %v1617 = vadd.f32 0.0, %v1616
      %v1618 = vpop.f32.mrf.mxu0
      %1619 = vmatprep.mubr.bf16.mxu0 0
      %1620 = vmatmul.mubr.bf16.gmra.mxu0 %v1563
      %v1621 = vpop.f32.mrf.mxu0
      %v1622 = vadd.f32 0.0, %v1621
      %v1623 = vpop.f32.mrf.mxu0
      %v1624 = vpop.f32.mrf.mxu0
      %v1625 = vadd.f32 0.0, %v1624
      %v1626 = vpop.f32.mrf.mxu0
      %1627 = vmatprep.mubr.bf16.mxu0 0
      %1628 = vmatmul.mubr.bf16.gmra.mxu0 %v1566
      %v1629 = vpop.f32.mrf.mxu0
      %v1630 = vadd.f32 0.0, %v1629
      %v1631 = vpop.f32.mrf.mxu0
      %v1632 = vpop.f32.mrf.mxu0
      %v1633 = vadd.f32 0.0, %v1632
      %v1634 = vpop.f32.mrf.mxu0
      %1635 = vdwg.mxu0
      %v1636 = vld [vmem:[#allocation2] sm:$0xff]
      %v1637 = vld [vmem:[#allocation2 + $0x8] sm:$0xff]
      %v1638 = vld [vmem:[#allocation2 + $0x10] sm:$0xff]
      %v1639 = vld [vmem:[#allocation2 + $0x18] sm:$0xff]
      %v1640 = vld [vmem:[#allocation2 + $0x20] sm:$0xff]
      %v1641 = vld [vmem:[#allocation2 + $0x28] sm:$0xff]
      %v1642 = vld [vmem:[#allocation2 + $0x30] sm:$0xff]
      %v1643 = vld [vmem:[#allocation2 + $0x38] sm:$0xff]
      %v1644 = vadd.f32 %v1636, %v1606
      %v1645 = vadd.f32 %v1637, %v1609
      %v1646 = vadd.f32 %v1638, %v1614
      %v1647 = vadd.f32 %v1639, %v1617
      %v1648 = vadd.f32 %v1640, %v1622
      %v1649 = vadd.f32 %v1641, %v1625
      %v1650 = vadd.f32 %v1642, %v1630
      %v1651 = vadd.f32 %v1643, %v1633
      %1652 = vst.msk [vmem:[#allocation2] sm:$0xff] %vm502, %v1644
      %1653 = vst.msk [vmem:[#allocation2 + $0x8] sm:$0xff] %vm502, %v1645
      %1654 = vst.msk [vmem:[#allocation2 + $0x10] sm:$0xff] %vm502, %v1646
      %1655 = vst.msk [vmem:[#allocation2 + $0x18] sm:$0xff] %vm502, %v1647
      %1656 = vst.msk [vmem:[#allocation2 + $0x20] sm:$0xff] %vm502, %v1648
      %1657 = vst.msk [vmem:[#allocation2 + $0x28] sm:$0xff] %vm502, %v1649
      %1658 = vst.msk [vmem:[#allocation2 + $0x30] sm:$0xff] %vm502, %v1650
      %1659 = vst.msk [vmem:[#allocation2 + $0x38] sm:$0xff] %vm502, %v1651
      %v1660 = vld [vmem:[%s1279] sm:$0xf]
      %v1661 = vld [vmem:[%s1279 + $0x4] sm:$0x1]
      %v1662 = vld [vmem:[%s1279 + $0x8] sm:$0xf]
      %v1663 = vld [vmem:[%s1279 + $0xc] sm:$0x1]
      %v1664 = vld [vmem:[%s1279 + $0x10] sm:$0xf]
      %v1665 = vld [vmem:[%s1279 + $0x14] sm:$0x1]
      %v1666 = vld [vmem:[%s1279 + $0x18] sm:$0xf]
      %v1667 = vld [vmem:[%s1279 + $0x1c] sm:$0x1]
      %v1668 = vld [vmem:[%s1279 + $0x20] sm:$0xf]
      %v1669 = vld [vmem:[%s1279 + $0x24] sm:$0x1]
      %v1670 = vld [vmem:[%s1279 + $0x28] sm:$0xf]
      %v1671 = vld [vmem:[%s1279 + $0x2c] sm:$0x1]
      %v1672 = vld [vmem:[%s1279 + $0x30] sm:$0xf]
      %v1673 = vld [vmem:[%s1279 + $0x34] sm:$0x1]
      %v1674 = vld [vmem:[%s1279 + $0x38] sm:$0xf]
      %v1675 = vld [vmem:[%s1279 + $0x3c] sm:$0x1]
      %v1677 = vshrl.u32 %v1660, 16
      %v1679 = vrot.slane %v1677, 4
      %v1680 = vshll.u32 %v1660, 16
      %v1682 = vrot.slane %v1680, 5
      %v1683 = vor.u32 %v1679, %v1682
      %v1684 = vrot.slane %v1683, 4
      %v1686 = vshll.u32 %v1661, 16
      %v1688 = vrot.slane %v1686, 5
      %v1689 = vsel %vm665, %v1684, %v1688
      %v1691 = vshrl.u32 %v1662, 16
      %v1693 = vrot.slane %v1691, 4
      %v1694 = vshll.u32 %v1662, 16
      %v1696 = vrot.slane %v1694, 5
      %v1697 = vor.u32 %v1693, %v1696
      %v1698 = vrot.slane %v1697, 4
      %v1700 = vshll.u32 %v1663, 16
      %v1702 = vrot.slane %v1700, 5
      %v1703 = vsel %vm665, %v1698, %v1702
      %v1705 = vshrl.u32 %v1664, 16
      %v1707 = vrot.slane %v1705, 4
      %v1708 = vshll.u32 %v1664, 16
      %v1710 = vrot.slane %v1708, 5
      %v1711 = vor.u32 %v1707, %v1710
      %v1712 = vrot.slane %v1711, 4
      %v1714 = vshll.u32 %v1665, 16
      %v1716 = vrot.slane %v1714, 5
      %v1717 = vsel %vm665, %v1712, %v1716
      %v1719 = vshrl.u32 %v1666, 16
      %v1721 = vrot.slane %v1719, 4
      %v1722 = vshll.u32 %v1666, 16
      %v1724 = vrot.slane %v1722, 5
      %v1725 = vor.u32 %v1721, %v1724
      %v1726 = vrot.slane %v1725, 4
      %v1728 = vshll.u32 %v1667, 16
      %v1730 = vrot.slane %v1728, 5
      %v1731 = vsel %vm665, %v1726, %v1730
      %v1733 = vshrl.u32 %v1668, 16
      %v1735 = vrot.slane %v1733, 4
      %v1736 = vshll.u32 %v1668, 16
      %v1738 = vrot.slane %v1736, 5
      %v1739 = vor.u32 %v1735, %v1738
      %v1740 = vrot.slane %v1739, 4
      %v1742 = vshll.u32 %v1669, 16
      %v1744 = vrot.slane %v1742, 5
      %v1745 = vsel %vm665, %v1740, %v1744
      %v1747 = vshrl.u32 %v1670, 16
      %v1749 = vrot.slane %v1747, 4
      %v1750 = vshll.u32 %v1670, 16
      %v1752 = vrot.slane %v1750, 5
      %v1753 = vor.u32 %v1749, %v1752
      %v1754 = vrot.slane %v1753, 4
      %v1756 = vshll.u32 %v1671, 16
      %v1758 = vrot.slane %v1756, 5
      %v1759 = vsel %vm665, %v1754, %v1758
      %v1761 = vshrl.u32 %v1672, 16
      %v1763 = vrot.slane %v1761, 4
      %v1764 = vshll.u32 %v1672, 16
      %v1766 = vrot.slane %v1764, 5
      %v1767 = vor.u32 %v1763, %v1766
      %v1768 = vrot.slane %v1767, 4
      %v1770 = vshll.u32 %v1673, 16
      %v1772 = vrot.slane %v1770, 5
      %v1773 = vsel %vm665, %v1768, %v1772
      %v1775 = vshrl.u32 %v1674, 16
      %v1777 = vrot.slane %v1775, 4
      %v1778 = vshll.u32 %v1674, 16
      %v1780 = vrot.slane %v1778, 5
      %v1781 = vor.u32 %v1777, %v1780
      %v1782 = vrot.slane %v1781, 4
      %v1784 = vshll.u32 %v1675, 16
      %v1786 = vrot.slane %v1784, 5
      %v1787 = vsel %vm665, %v1782, %v1786
      %s1788 = scalar_lea.vmem %s4, 14
      %v1789 = vld [vmem:[%s1788] sm:$0x3]
      %v1790 = vunpack.c.l.b16 %v1689
      %v1791 = vunpack.c.l.b16 %v1703
      %v1792 = vunpack.c.l.b16 %v1717
      %v1793 = vunpack.c.l.b16 %v1731
      %v1794 = vunpack.c.l.b16 %v1745
      %v1795 = vunpack.c.l.b16 %v1759
      %v1796 = vunpack.c.l.b16 %v1773
      %v1797 = vunpack.c.l.b16 %v1787
      %v1798 = vpack.c.b16 %v1791, %v1790
      %v1799 = vpack.c.b16 %v1793, %v1792
      %v1800 = vpack.c.b16 %v1795, %v1794
      %v1801 = vpack.c.b16 %v1797, %v1796
      %v1803 = vsel %vm420, %v1798, 0
      %v1806 = vsel %vm420, %v1799, 0
      %v1809 = vsel %vm420, %v1800, 0
      %v1812 = vsel %vm420, %v1801, 0
      %v1815 = vsel %vm433, %v1789, 0
      %1817 = vmatprep.subr.bf16.mxu0 0
      %1818 = vmatpush1.bf16.msra.mxu0 0
      %1819 = vmatprep.subr.bf16.mxu0 0
      %1820 = vmatpush1.bf16.msra.mxu0 0
      %1821 = vmatprep.subr.bf16.mxu0 0
      %1822 = vmatpush1.bf16.msra.mxu0 0
      %1823 = vmatprep.subr.bf16.mxu0 0
      %1824 = vmatpush1.bf16.msra.mxu0 0
      %1825 = vmatprep.subr.bf16.mxu0 0
      %1826 = vmatpush1.bf16.msra.mxu0 0
      %1827 = vmatprep.subr.bf16.mxu0 0
      %1828 = vmatpush1.bf16.msra.mxu0 0
      %1829 = vmatprep.subr.bf16.mxu0 0
      %1830 = vmatpush1.bf16.msra.mxu0 0
      %1831 = vmatprep.subr.bf16.mxu0 0
      %1832 = vmatpush1.bf16.msra.mxu0 %v1815
      %1833 = vmatprep.subr.bf16.mxu0 0
      %1834 = vmatpush2.bf16.msra.mxu0 0
      %1835 = vmatprep.subr.bf16.mxu0 0
      %1836 = vmatpush2.bf16.msra.mxu0 0
      %1837 = vmatprep.subr.bf16.mxu0 0
      %1838 = vmatpush2.bf16.msra.mxu0 0
      %1839 = vmatprep.subr.bf16.mxu0 0
      %1840 = vmatpush2.bf16.msra.mxu0 0
      %1841 = vmatprep.subr.bf16.mxu0 0
      %1842 = vmatpush2.bf16.msra.mxu0 0
      %1843 = vmatprep.subr.bf16.mxu0 0
      %1844 = vmatpush2.bf16.msra.mxu0 0
      %1845 = vmatprep.subr.bf16.mxu0 0
      %1846 = vmatpush2.bf16.msra.mxu0 0
      %1847 = vmatprep.subr.bf16.mxu0 0
      %1848 = vmatpush2.bf16.msra.mxu0 0
      %1849 = vmatprep.mubr.bf16.mxu0 0
      %1850 = vmatmul.mubr.bf16.gmra.mxu0 %v1803
      %v1851 = vpop.f32.mrf.mxu0
      %v1852 = vadd.f32 0.0, %v1851
      %v1853 = vpop.f32.mrf.mxu0
      %v1854 = vpop.f32.mrf.mxu0
      %v1855 = vadd.f32 0.0, %v1854
      %v1856 = vpop.f32.mrf.mxu0
      %1857 = vmatprep.mubr.bf16.mxu0 0
      %1858 = vmatmul.mubr.bf16.gmra.mxu0 %v1806
      %v1859 = vpop.f32.mrf.mxu0
      %v1860 = vadd.f32 0.0, %v1859
      %v1861 = vpop.f32.mrf.mxu0
      %v1862 = vpop.f32.mrf.mxu0
      %v1863 = vadd.f32 0.0, %v1862
      %v1864 = vpop.f32.mrf.mxu0
      %1865 = vmatprep.mubr.bf16.mxu0 0
      %1866 = vmatmul.mubr.bf16.gmra.mxu0 %v1809
      %v1867 = vpop.f32.mrf.mxu0
      %v1868 = vadd.f32 0.0, %v1867
      %v1869 = vpop.f32.mrf.mxu0
      %v1870 = vpop.f32.mrf.mxu0
      %v1871 = vadd.f32 0.0, %v1870
      %v1872 = vpop.f32.mrf.mxu0
      %1873 = vmatprep.mubr.bf16.mxu0 0
      %1874 = vmatmul.mubr.bf16.gmra.mxu0 %v1812
      %v1875 = vpop.f32.mrf.mxu0
      %v1876 = vadd.f32 0.0, %v1875
      %v1877 = vpop.f32.mrf.mxu0
      %v1878 = vpop.f32.mrf.mxu0
      %v1879 = vadd.f32 0.0, %v1878
      %v1880 = vpop.f32.mrf.mxu0
      %1881 = vdwg.mxu0
      %v1882 = vld [vmem:[#allocation2] sm:$0xff]
      %v1883 = vld [vmem:[#allocation2 + $0x8] sm:$0xff]
      %v1884 = vld [vmem:[#allocation2 + $0x10] sm:$0xff]
      %v1885 = vld [vmem:[#allocation2 + $0x18] sm:$0xff]
      %v1886 = vld [vmem:[#allocation2 + $0x20] sm:$0xff]
      %v1887 = vld [vmem:[#allocation2 + $0x28] sm:$0xff]
      %v1888 = vld [vmem:[#allocation2 + $0x30] sm:$0xff]
      %v1889 = vld [vmem:[#allocation2 + $0x38] sm:$0xff]
      %v1890 = vadd.f32 %v1882, %v1852
      %v1891 = vadd.f32 %v1883, %v1855
      %v1892 = vadd.f32 %v1884, %v1860
      %v1893 = vadd.f32 %v1885, %v1863
      %v1894 = vadd.f32 %v1886, %v1868
      %v1895 = vadd.f32 %v1887, %v1871
      %v1896 = vadd.f32 %v1888, %v1876
      %v1897 = vadd.f32 %v1889, %v1879
      %1898 = vst.msk [vmem:[#allocation2] sm:$0xff] %vm502, %v1890
      %1899 = vst.msk [vmem:[#allocation2 + $0x8] sm:$0xff] %vm502, %v1891
      %1900 = vst.msk [vmem:[#allocation2 + $0x10] sm:$0xff] %vm502, %v1892
      %1901 = vst.msk [vmem:[#allocation2 + $0x18] sm:$0xff] %vm502, %v1893
      %1902 = vst.msk [vmem:[#allocation2 + $0x20] sm:$0xff] %vm502, %v1894
      %1903 = vst.msk [vmem:[#allocation2 + $0x28] sm:$0xff] %vm502, %v1895
      %1904 = vst.msk [vmem:[#allocation2 + $0x30] sm:$0xff] %vm502, %v1896
      %1905 = vst.msk [vmem:[#allocation2 + $0x38] sm:$0xff] %vm502, %v1897
      %s1906 = sadd.s32 %s387, 1
      %s1907 = smul.u32 %s1906, 2
      %s1908 = smul.addr %s1907, 4
      %s1909 = scalar_lea.vmem %s347, %s1908
      %v1910 = vld [vmem:[%s1909] sm:$0xf]
      %v1911 = vld [vmem:[%s1909 + $0x8] sm:$0xf]
      %v1912 = vld [vmem:[%s1909 + $0x10] sm:$0xf]
      %v1913 = vld [vmem:[%s1909 + $0x18] sm:$0xf]
      %v1914 = vld [vmem:[%s1909 + $0x20] sm:$0xf]
      %v1915 = vld [vmem:[%s1909 + $0x28] sm:$0xf]
      %v1916 = vld [vmem:[%s1909 + $0x30] sm:$0xf]
      %v1917 = vld [vmem:[%s1909 + $0x38] sm:$0xf]
      %s1918 = scalar_lea.vmem %s4, 16
      %v1919 = vld [vmem:[%s1918] sm:$0x3]
      %v1928 = vunpack.c.l.b16 %v1910
      %v1929 = vunpack.c.l.b16 %v1911
      %v1930 = vunpack.c.l.b16 %v1912
      %v1931 = vunpack.c.l.b16 %v1913
      %v1932 = vunpack.c.l.b16 %v1914
      %v1933 = vunpack.c.l.b16 %v1915
      %v1934 = vunpack.c.l.b16 %v1916
      %v1935 = vunpack.c.l.b16 %v1917
      %v1936 = vpack.c.b16 %v1929, %v1928
      %v1937 = vpack.c.b16 %v1931, %v1930
      %v1938 = vpack.c.b16 %v1933, %v1932
      %v1939 = vpack.c.b16 %v1935, %v1934
      %v1941 = vsel %vm420, %v1936, 0
      %v1944 = vsel %vm420, %v1937, 0
      %v1947 = vsel %vm420, %v1938, 0
      %v1950 = vsel %vm420, %v1939, 0
      %v1953 = vsel %vm433, %v1919, 0
      %1955 = vmatprep.subr.bf16.mxu0 0
      %1956 = vmatpush1.bf16.msra.mxu0 0
      %1957 = vmatprep.subr.bf16.mxu0 0
      %1958 = vmatpush1.bf16.msra.mxu0 0
      %1959 = vmatprep.subr.bf16.mxu0 0
      %1960 = vmatpush1.bf16.msra.mxu0 0
      %1961 = vmatprep.subr.bf16.mxu0 0
      %1962 = vmatpush1.bf16.msra.mxu0 0
      %1963 = vmatprep.subr.bf16.mxu0 0
      %1964 = vmatpush1.bf16.msra.mxu0 0
      %1965 = vmatprep.subr.bf16.mxu0 0
      %1966 = vmatpush1.bf16.msra.mxu0 0
      %1967 = vmatprep.subr.bf16.mxu0 0
      %1968 = vmatpush1.bf16.msra.mxu0 0
      %1969 = vmatprep.subr.bf16.mxu0 0
      %1970 = vmatpush1.bf16.msra.mxu0 %v1953
      %1971 = vmatprep.subr.bf16.mxu0 0
      %1972 = vmatpush2.bf16.msra.mxu0 0
      %1973 = vmatprep.subr.bf16.mxu0 0
      %1974 = vmatpush2.bf16.msra.mxu0 0
      %1975 = vmatprep.subr.bf16.mxu0 0
      %1976 = vmatpush2.bf16.msra.mxu0 0
      %1977 = vmatprep.subr.bf16.mxu0 0
      %1978 = vmatpush2.bf16.msra.mxu0 0
      %1979 = vmatprep.subr.bf16.mxu0 0
      %1980 = vmatpush2.bf16.msra.mxu0 0
      %1981 = vmatprep.subr.bf16.mxu0 0
      %1982 = vmatpush2.bf16.msra.mxu0 0
      %1983 = vmatprep.subr.bf16.mxu0 0
      %1984 = vmatpush2.bf16.msra.mxu0 0
      %1985 = vmatprep.subr.bf16.mxu0 0
      %1986 = vmatpush2.bf16.msra.mxu0 0
      %1987 = vmatprep.mubr.bf16.mxu0 0
      %1988 = vmatmul.mubr.bf16.gmra.mxu0 %v1941
      %v1989 = vpop.f32.mrf.mxu0
      %v1990 = vadd.f32 0.0, %v1989
      %v1991 = vpop.f32.mrf.mxu0
      %v1992 = vpop.f32.mrf.mxu0
      %v1993 = vadd.f32 0.0, %v1992
      %v1994 = vpop.f32.mrf.mxu0
      %1995 = vmatprep.mubr.bf16.mxu0 0
      %1996 = vmatmul.mubr.bf16.gmra.mxu0 %v1944
      %v1997 = vpop.f32.mrf.mxu0
      %v1998 = vadd.f32 0.0, %v1997
      %v1999 = vpop.f32.mrf.mxu0
      %v2000 = vpop.f32.mrf.mxu0
      %v2001 = vadd.f32 0.0, %v2000
      %v2002 = vpop.f32.mrf.mxu0
      %2003 = vmatprep.mubr.bf16.mxu0 0
      %2004 = vmatmul.mubr.bf16.gmra.mxu0 %v1947
      %v2005 = vpop.f32.mrf.mxu0
      %v2006 = vadd.f32 0.0, %v2005
      %v2007 = vpop.f32.mrf.mxu0
      %v2008 = vpop.f32.mrf.mxu0
      %v2009 = vadd.f32 0.0, %v2008
      %v2010 = vpop.f32.mrf.mxu0
      %2011 = vmatprep.mubr.bf16.mxu0 0
      %2012 = vmatmul.mubr.bf16.gmra.mxu0 %v1950
      %v2013 = vpop.f32.mrf.mxu0
      %v2014 = vadd.f32 0.0, %v2013
      %v2015 = vpop.f32.mrf.mxu0
      %v2016 = vpop.f32.mrf.mxu0
      %v2017 = vadd.f32 0.0, %v2016
      %v2018 = vpop.f32.mrf.mxu0
      %2019 = vdwg.mxu0
      %v2020 = vld [vmem:[#allocation2] sm:$0xff]
      %v2021 = vld [vmem:[#allocation2 + $0x8] sm:$0xff]
      %v2022 = vld [vmem:[#allocation2 + $0x10] sm:$0xff]
      %v2023 = vld [vmem:[#allocation2 + $0x18] sm:$0xff]
      %v2024 = vld [vmem:[#allocation2 + $0x20] sm:$0xff]
      %v2025 = vld [vmem:[#allocation2 + $0x28] sm:$0xff]
      %v2026 = vld [vmem:[#allocation2 + $0x30] sm:$0xff]
      %v2027 = vld [vmem:[#allocation2 + $0x38] sm:$0xff]
      %v2028 = vadd.f32 %v2020, %v1990
      %v2029 = vadd.f32 %v2021, %v1993
      %v2030 = vadd.f32 %v2022, %v1998
      %v2031 = vadd.f32 %v2023, %v2001
      %v2032 = vadd.f32 %v2024, %v2006
      %v2033 = vadd.f32 %v2025, %v2009
      %v2034 = vadd.f32 %v2026, %v2014
      %v2035 = vadd.f32 %v2027, %v2017
      %2036 = vst.msk [vmem:[#allocation2] sm:$0xff] %vm502, %v2028
      %2037 = vst.msk [vmem:[#allocation2 + $0x8] sm:$0xff] %vm502, %v2029
      %2038 = vst.msk [vmem:[#allocation2 + $0x10] sm:$0xff] %vm502, %v2030
      %2039 = vst.msk [vmem:[#allocation2 + $0x18] sm:$0xff] %vm502, %v2031
      %2040 = vst.msk [vmem:[#allocation2 + $0x20] sm:$0xff] %vm502, %v2032
      %2041 = vst.msk [vmem:[#allocation2 + $0x28] sm:$0xff] %vm502, %v2033
      %2042 = vst.msk [vmem:[#allocation2 + $0x30] sm:$0xff] %vm502, %v2034
      %2043 = vst.msk [vmem:[#allocation2 + $0x38] sm:$0xff] %vm502, %v2035
      %s2044 = smul.addr %s1907, 4
      %s2045 = scalar_lea.vmem %s352, %s2044
      %v2046 = vld [vmem:[%s2045] sm:$0xf]
      %v2047 = vld [vmem:[%s2045 + $0x8] sm:$0xf]
      %v2048 = vld [vmem:[%s2045 + $0x10] sm:$0xf]
      %v2049 = vld [vmem:[%s2045 + $0x18] sm:$0xf]
      %v2050 = vld [vmem:[%s2045 + $0x20] sm:$0xf]
      %v2051 = vld [vmem:[%s2045 + $0x28] sm:$0xf]
      %v2052 = vld [vmem:[%s2045 + $0x30] sm:$0xf]
      %v2053 = vld [vmem:[%s2045 + $0x38] sm:$0xf]
      %s2054 = scalar_lea.vmem %s4, 18
      %v2055 = vld [vmem:[%s2054] sm:$0x3]
      %v2064 = vunpack.c.l.b16 %v2046
      %v2065 = vunpack.c.l.b16 %v2047
      %v2066 = vunpack.c.l.b16 %v2048
      %v2067 = vunpack.c.l.b16 %v2049
      %v2068 = vunpack.c.l.b16 %v2050
      %v2069 = vunpack.c.l.b16 %v2051
      %v2070 = vunpack.c.l.b16 %v2052
      %v2071 = vunpack.c.l.b16 %v2053
      %v2072 = vpack.c.b16 %v2065, %v2064
      %v2073 = vpack.c.b16 %v2067, %v2066
      %v2074 = vpack.c.b16 %v2069, %v2068
      %v2075 = vpack.c.b16 %v2071, %v2070
      %v2077 = vsel %vm420, %v2072, 0
      %v2080 = vsel %vm420, %v2073, 0
      %v2083 = vsel %vm420, %v2074, 0
      %v2086 = vsel %vm420, %v2075, 0
      %v2089 = vsel %vm433, %v2055, 0
      %2091 = vmatprep.subr.bf16.mxu0 0
      %2092 = vmatpush1.bf16.msra.mxu0 0
      %2093 = vmatprep.subr.bf16.mxu0 0
      %2094 = vmatpush1.bf16.msra.mxu0 0
      %2095 = vmatprep.subr.bf16.mxu0 0
      %2096 = vmatpush1.bf16.msra.mxu0 0
      %2097 = vmatprep.subr.bf16.mxu0 0
      %2098 = vmatpush1.bf16.msra.mxu0 0
      %2099 = vmatprep.subr.bf16.mxu0 0
      %2100 = vmatpush1.bf16.msra.mxu0 0
      %2101 = vmatprep.subr.bf16.mxu0 0
      %2102 = vmatpush1.bf16.msra.mxu0 0
      %2103 = vmatprep.subr.bf16.mxu0 0
      %2104 = vmatpush1.bf16.msra.mxu0 0
      %2105 = vmatprep.subr.bf16.mxu0 0
      %2106 = vmatpush1.bf16.msra.mxu0 %v2089
      %2107 = vmatprep.subr.bf16.mxu0 0
      %2108 = vmatpush2.bf16.msra.mxu0 0
      %2109 = vmatprep.subr.bf16.mxu0 0
      %2110 = vmatpush2.bf16.msra.mxu0 0
      %2111 = vmatprep.subr.bf16.mxu0 0
      %2112 = vmatpush2.bf16.msra.mxu0 0
      %2113 = vmatprep.subr.bf16.mxu0 0
      %2114 = vmatpush2.bf16.msra.mxu0 0
      %2115 = vmatprep.subr.bf16.mxu0 0
      %2116 = vmatpush2.bf16.msra.mxu0 0
      %2117 = vmatprep.subr.bf16.mxu0 0
      %2118 = vmatpush2.bf16.msra.mxu0 0
      %2119 = vmatprep.subr.bf16.mxu0 0
      %2120 = vmatpush2.bf16.msra.mxu0 0
      %2121 = vmatprep.subr.bf16.mxu0 0
      %2122 = vmatpush2.bf16.msra.mxu0 0
      %2123 = vmatprep.mubr.bf16.mxu0 0
      %2124 = vmatmul.mubr.bf16.gmra.mxu0 %v2077
      %v2125 = vpop.f32.mrf.mxu0
      %v2126 = vadd.f32 0.0, %v2125
      %v2127 = vpop.f32.mrf.mxu0
      %v2128 = vpop.f32.mrf.mxu0
      %v2129 = vadd.f32 0.0, %v2128
      %v2130 = vpop.f32.mrf.mxu0
      %2131 = vmatprep.mubr.bf16.mxu0 0
      %2132 = vmatmul.mubr.bf16.gmra.mxu0 %v2080
      %v2133 = vpop.f32.mrf.mxu0
      %v2134 = vadd.f32 0.0, %v2133
      %v2135 = vpop.f32.mrf.mxu0
      %v2136 = vpop.f32.mrf.mxu0
      %v2137 = vadd.f32 0.0, %v2136
      %v2138 = vpop.f32.mrf.mxu0
      %2139 = vmatprep.mubr.bf16.mxu0 0
      %2140 = vmatmul.mubr.bf16.gmra.mxu0 %v2083
      %v2141 = vpop.f32.mrf.mxu0
      %v2142 = vadd.f32 0.0, %v2141
      %v2143 = vpop.f32.mrf.mxu0
      %v2144 = vpop.f32.mrf.mxu0
      %v2145 = vadd.f32 0.0, %v2144
      %v2146 = vpop.f32.mrf.mxu0
      %2147 = vmatprep.mubr.bf16.mxu0 0
      %2148 = vmatmul.mubr.bf16.gmra.mxu0 %v2086
      %v2149 = vpop.f32.mrf.mxu0
      %v2150 = vadd.f32 0.0, %v2149
      %v2151 = vpop.f32.mrf.mxu0
      %v2152 = vpop.f32.mrf.mxu0
      %v2153 = vadd.f32 0.0, %v2152
      %v2154 = vpop.f32.mrf.mxu0
      %2155 = vdwg.mxu0
      %v2156 = vld [vmem:[#allocation2] sm:$0xff]
      %v2157 = vld [vmem:[#allocation2 + $0x8] sm:$0xff]
      %v2158 = vld [vmem:[#allocation2 + $0x10] sm:$0xff]
      %v2159 = vld [vmem:[#allocation2 + $0x18] sm:$0xff]
      %v2160 = vld [vmem:[#allocation2 + $0x20] sm:$0xff]
      %v2161 = vld [vmem:[#allocation2 + $0x28] sm:$0xff]
      %v2162 = vld [vmem:[#allocation2 + $0x30] sm:$0xff]
      %v2163 = vld [vmem:[#allocation2 + $0x38] sm:$0xff]
      %v2164 = vadd.f32 %v2156, %v2126
      %v2165 = vadd.f32 %v2157, %v2129
      %v2166 = vadd.f32 %v2158, %v2134
      %v2167 = vadd.f32 %v2159, %v2137
      %v2168 = vadd.f32 %v2160, %v2142
      %v2169 = vadd.f32 %v2161, %v2145
      %v2170 = vadd.f32 %v2162, %v2150
      %v2171 = vadd.f32 %v2163, %v2153
      %2172 = vst.msk [vmem:[#allocation2] sm:$0xff] %vm502, %v2164
      %2173 = vst.msk [vmem:[#allocation2 + $0x8] sm:$0xff] %vm502, %v2165
      %2174 = vst.msk [vmem:[#allocation2 + $0x10] sm:$0xff] %vm502, %v2166
      %2175 = vst.msk [vmem:[#allocation2 + $0x18] sm:$0xff] %vm502, %v2167
      %2176 = vst.msk [vmem:[#allocation2 + $0x20] sm:$0xff] %vm502, %v2168
      %2177 = vst.msk [vmem:[#allocation2 + $0x28] sm:$0xff] %vm502, %v2169
      %2178 = vst.msk [vmem:[#allocation2 + $0x30] sm:$0xff] %vm502, %v2170
      %2179 = vst.msk [vmem:[#allocation2 + $0x38] sm:$0xff] %vm502, %v2171
      %v2180 = vld [vmem:[%s1909] sm:$0xf]
      %v2181 = vld [vmem:[%s1909 + $0x4] sm:$0x1]
      %v2182 = vld [vmem:[%s1909 + $0x8] sm:$0xf]
      %v2183 = vld [vmem:[%s1909 + $0xc] sm:$0x1]
      %v2184 = vld [vmem:[%s1909 + $0x10] sm:$0xf]
      %v2185 = vld [vmem:[%s1909 + $0x14] sm:$0x1]
      %v2186 = vld [vmem:[%s1909 + $0x18] sm:$0xf]
      %v2187 = vld [vmem:[%s1909 + $0x1c] sm:$0x1]
      %v2188 = vld [vmem:[%s1909 + $0x20] sm:$0xf]
      %v2189 = vld [vmem:[%s1909 + $0x24] sm:$0x1]
      %v2190 = vld [vmem:[%s1909 + $0x28] sm:$0xf]
      %v2191 = vld [vmem:[%s1909 + $0x2c] sm:$0x1]
      %v2192 = vld [vmem:[%s1909 + $0x30] sm:$0xf]
      %v2193 = vld [vmem:[%s1909 + $0x34] sm:$0x1]
      %v2194 = vld [vmem:[%s1909 + $0x38] sm:$0xf]
      %v2195 = vld [vmem:[%s1909 + $0x3c] sm:$0x1]
      %v2197 = vshrl.u32 %v2180, 16
      %v2199 = vrot.slane %v2197, 4
      %v2200 = vshll.u32 %v2180, 16
      %v2202 = vrot.slane %v2200, 5
      %v2203 = vor.u32 %v2199, %v2202
      %v2204 = vrot.slane %v2203, 4
      %v2206 = vshll.u32 %v2181, 16
      %v2208 = vrot.slane %v2206, 5
      %v2209 = vsel %vm665, %v2204, %v2208
      %v2211 = vshrl.u32 %v2182, 16
      %v2213 = vrot.slane %v2211, 4
      %v2214 = vshll.u32 %v2182, 16
      %v2216 = vrot.slane %v2214, 5
      %v2217 = vor.u32 %v2213, %v2216
      %v2218 = vrot.slane %v2217, 4
      %v2220 = vshll.u32 %v2183, 16
      %v2222 = vrot.slane %v2220, 5
      %v2223 = vsel %vm665, %v2218, %v2222
      %v2225 = vshrl.u32 %v2184, 16
      %v2227 = vrot.slane %v2225, 4
      %v2228 = vshll.u32 %v2184, 16
      %v2230 = vrot.slane %v2228, 5
      %v2231 = vor.u32 %v2227, %v2230
      %v2232 = vrot.slane %v2231, 4
      %v2234 = vshll.u32 %v2185, 16
      %v2236 = vrot.slane %v2234, 5
      %v2237 = vsel %vm665, %v2232, %v2236
      %v2239 = vshrl.u32 %v2186, 16
      %v2241 = vrot.slane %v2239, 4
      %v2242 = vshll.u32 %v2186, 16
      %v2244 = vrot.slane %v2242, 5
      %v2245 = vor.u32 %v2241, %v2244
      %v2246 = vrot.slane %v2245, 4
      %v2248 = vshll.u32 %v2187, 16
      %v2250 = vrot.slane %v2248, 5
      %v2251 = vsel %vm665, %v2246, %v2250
      %v2253 = vshrl.u32 %v2188, 16
      %v2255 = vrot.slane %v2253, 4
      %v2256 = vshll.u32 %v2188, 16
      %v2258 = vrot.slane %v2256, 5
      %v2259 = vor.u32 %v2255, %v2258
      %v2260 = vrot.slane %v2259, 4
      %v2262 = vshll.u32 %v2189, 16
      %v2264 = vrot.slane %v2262, 5
      %v2265 = vsel %vm665, %v2260, %v2264
      %v2267 = vshrl.u32 %v2190, 16
      %v2269 = vrot.slane %v2267, 4
      %v2270 = vshll.u32 %v2190, 16
      %v2272 = vrot.slane %v2270, 5
      %v2273 = vor.u32 %v2269, %v2272
      %v2274 = vrot.slane %v2273, 4
      %v2276 = vshll.u32 %v2191, 16
      %v2278 = vrot.slane %v2276, 5
      %v2279 = vsel %vm665, %v2274, %v2278
      %v2281 = vshrl.u32 %v2192, 16
      %v2283 = vrot.slane %v2281, 4
      %v2284 = vshll.u32 %v2192, 16
      %v2286 = vrot.slane %v2284, 5
      %v2287 = vor.u32 %v2283, %v2286
      %v2288 = vrot.slane %v2287, 4
      %v2290 = vshll.u32 %v2193, 16
      %v2292 = vrot.slane %v2290, 5
      %v2293 = vsel %vm665, %v2288, %v2292
      %v2295 = vshrl.u32 %v2194, 16
      %v2297 = vrot.slane %v2295, 4
      %v2298 = vshll.u32 %v2194, 16
      %v2300 = vrot.slane %v2298, 5
      %v2301 = vor.u32 %v2297, %v2300
      %v2302 = vrot.slane %v2301, 4
      %v2304 = vshll.u32 %v2195, 16
      %v2306 = vrot.slane %v2304, 5
      %v2307 = vsel %vm665, %v2302, %v2306
      %s2308 = scalar_lea.vmem %s4, 20
      %v2309 = vld [vmem:[%s2308] sm:$0x3]
      %v2310 = vunpack.c.l.b16 %v2209
      %v2311 = vunpack.c.l.b16 %v2223
      %v2312 = vunpack.c.l.b16 %v2237
      %v2313 = vunpack.c.l.b16 %v2251
      %v2314 = vunpack.c.l.b16 %v2265
      %v2315 = vunpack.c.l.b16 %v2279
      %v2316 = vunpack.c.l.b16 %v2293
      %v2317 = vunpack.c.l.b16 %v2307
      %v2318 = vpack.c.b16 %v2311, %v2310
      %v2319 = vpack.c.b16 %v2313, %v2312
      %v2320 = vpack.c.b16 %v2315, %v2314
      %v2321 = vpack.c.b16 %v2317, %v2316
      %v2323 = vsel %vm420, %v2318, 0
      %v2326 = vsel %vm420, %v2319, 0
      %v2329 = vsel %vm420, %v2320, 0
      %v2332 = vsel %vm420, %v2321, 0
      %v2335 = vsel %vm433, %v2309, 0
      %2337 = vmatprep.subr.bf16.mxu0 0
      %2338 = vmatpush1.bf16.msra.mxu0 0
      %2339 = vmatprep.subr.bf16.mxu0 0
      %2340 = vmatpush1.bf16.msra.mxu0 0
      %2341 = vmatprep.subr.bf16.mxu0 0
      %2342 = vmatpush1.bf16.msra.mxu0 0
      %2343 = vmatprep.subr.bf16.mxu0 0
      %2344 = vmatpush1.bf16.msra.mxu0 0
      %2345 = vmatprep.subr.bf16.mxu0 0
      %2346 = vmatpush1.bf16.msra.mxu0 0
      %2347 = vmatprep.subr.bf16.mxu0 0
      %2348 = vmatpush1.bf16.msra.mxu0 0
      %2349 = vmatprep.subr.bf16.mxu0 0
      %2350 = vmatpush1.bf16.msra.mxu0 0
      %2351 = vmatprep.subr.bf16.mxu0 0
      %2352 = vmatpush1.bf16.msra.mxu0 %v2335
      %2353 = vmatprep.subr.bf16.mxu0 0
      %2354 = vmatpush2.bf16.msra.mxu0 0
      %2355 = vmatprep.subr.bf16.mxu0 0
      %2356 = vmatpush2.bf16.msra.mxu0 0
      %2357 = vmatprep.subr.bf16.mxu0 0
      %2358 = vmatpush2.bf16.msra.mxu0 0
      %2359 = vmatprep.subr.bf16.mxu0 0
      %2360 = vmatpush2.bf16.msra.mxu0 0
      %2361 = vmatprep.subr.bf16.mxu0 0
      %2362 = vmatpush2.bf16.msra.mxu0 0
      %2363 = vmatprep.subr.bf16.mxu0 0
      %2364 = vmatpush2.bf16.msra.mxu0 0
      %2365 = vmatprep.subr.bf16.mxu0 0
      %2366 = vmatpush2.bf16.msra.mxu0 0
      %2367 = vmatprep.subr.bf16.mxu0 0
      %2368 = vmatpush2.bf16.msra.mxu0 0
      %2369 = vmatprep.mubr.bf16.mxu0 0
      %2370 = vmatmul.mubr.bf16.gmra.mxu0 %v2323
      %v2371 = vpop.f32.mrf.mxu0
      %v2372 = vadd.f32 0.0, %v2371
      %v2373 = vpop.f32.mrf.mxu0
      %v2374 = vpop.f32.mrf.mxu0
      %v2375 = vadd.f32 0.0, %v2374
      %v2376 = vpop.f32.mrf.mxu0
      %2377 = vmatprep.mubr.bf16.mxu0 0
      %2378 = vmatmul.mubr.bf16.gmra.mxu0 %v2326
      %v2379 = vpop.f32.mrf.mxu0
      %v2380 = vadd.f32 0.0, %v2379
      %v2381 = vpop.f32.mrf.mxu0
      %v2382 = vpop.f32.mrf.mxu0
      %v2383 = vadd.f32 0.0, %v2382
      %v2384 = vpop.f32.mrf.mxu0
      %2385 = vmatprep.mubr.bf16.mxu0 0
      %2386 = vmatmul.mubr.bf16.gmra.mxu0 %v2329
      %v2387 = vpop.f32.mrf.mxu0
      %v2388 = vadd.f32 0.0, %v2387
      %v2389 = vpop.f32.mrf.mxu0
      %v2390 = vpop.f32.mrf.mxu0
      %v2391 = vadd.f32 0.0, %v2390
      %v2392 = vpop.f32.mrf.mxu0
      %2393 = vmatprep.mubr.bf16.mxu0 0
      %2394 = vmatmul.mubr.bf16.gmra.mxu0 %v2332
      %v2395 = vpop.f32.mrf.mxu0
      %v2396 = vadd.f32 0.0, %v2395
      %v2397 = vpop.f32.mrf.mxu0
      %v2398 = vpop.f32.mrf.mxu0
      %v2399 = vadd.f32 0.0, %v2398
      %v2400 = vpop.f32.mrf.mxu0
      %2401 = vdwg.mxu0
      %v2402 = vld [vmem:[#allocation2] sm:$0xff]
      %v2403 = vld [vmem:[#allocation2 + $0x8] sm:$0xff]
      %v2404 = vld [vmem:[#allocation2 + $0x10] sm:$0xff]
      %v2405 = vld [vmem:[#allocation2 + $0x18] sm:$0xff]
      %v2406 = vld [vmem:[#allocation2 + $0x20] sm:$0xff]
      %v2407 = vld [vmem:[#allocation2 + $0x28] sm:$0xff]
      %v2408 = vld [vmem:[#allocation2 + $0x30] sm:$0xff]
      %v2409 = vld [vmem:[#allocation2 + $0x38] sm:$0xff]
      %v2410 = vadd.f32 %v2402, %v2372
      %v2411 = vadd.f32 %v2403, %v2375
      %v2412 = vadd.f32 %v2404, %v2380
      %v2413 = vadd.f32 %v2405, %v2383
      %v2414 = vadd.f32 %v2406, %v2388
      %v2415 = vadd.f32 %v2407, %v2391
      %v2416 = vadd.f32 %v2408, %v2396
      %v2417 = vadd.f32 %v2409, %v2399
      %2418 = vst.msk [vmem:[#allocation2] sm:$0xff] %vm502, %v2410
      %2419 = vst.msk [vmem:[#allocation2 + $0x8] sm:$0xff] %vm502, %v2411
      %2420 = vst.msk [vmem:[#allocation2 + $0x10] sm:$0xff] %vm502, %v2412
      %2421 = vst.msk [vmem:[#allocation2 + $0x18] sm:$0xff] %vm502, %v2413
      %2422 = vst.msk [vmem:[#allocation2 + $0x20] sm:$0xff] %vm502, %v2414
      %2423 = vst.msk [vmem:[#allocation2 + $0x28] sm:$0xff] %vm502, %v2415
      %2424 = vst.msk [vmem:[#allocation2 + $0x30] sm:$0xff] %vm502, %v2416
      %2425 = vst.msk [vmem:[#allocation2 + $0x38] sm:$0xff] %vm502, %v2417
      %v2426 = vld [vmem:[%s2045] sm:$0xf]
      %v2427 = vld [vmem:[%s2045 + $0x4] sm:$0x1]
      %v2428 = vld [vmem:[%s2045 + $0x8] sm:$0xf]
      %v2429 = vld [vmem:[%s2045 + $0xc] sm:$0x1]
      %v2430 = vld [vmem:[%s2045 + $0x10] sm:$0xf]
      %v2431 = vld [vmem:[%s2045 + $0x14] sm:$0x1]
      %v2432 = vld [vmem:[%s2045 + $0x18] sm:$0xf]
      %v2433 = vld [vmem:[%s2045 + $0x1c] sm:$0x1]
      %v2434 = vld [vmem:[%s2045 + $0x20] sm:$0xf]
      %v2435 = vld [vmem:[%s2045 + $0x24] sm:$0x1]
      %v2436 = vld [vmem:[%s2045 + $0x28] sm:$0xf]
      %v2437 = vld [vmem:[%s2045 + $0x2c] sm:$0x1]
      %v2438 = vld [vmem:[%s2045 + $0x30] sm:$0xf]
      %v2439 = vld [vmem:[%s2045 + $0x34] sm:$0x1]
      %v2440 = vld [vmem:[%s2045 + $0x38] sm:$0xf]
      %v2441 = vld [vmem:[%s2045 + $0x3c] sm:$0x1]
      %v2443 = vshrl.u32 %v2426, 16
      %v2445 = vrot.slane %v2443, 4
      %v2446 = vshll.u32 %v2426, 16
      %v2448 = vrot.slane %v2446, 5
      %v2449 = vor.u32 %v2445, %v2448
      %v2450 = vrot.slane %v2449, 4
      %v2452 = vshll.u32 %v2427, 16
      %v2454 = vrot.slane %v2452, 5
      %v2455 = vsel %vm665, %v2450, %v2454
      %v2457 = vshrl.u32 %v2428, 16
      %v2459 = vrot.slane %v2457, 4
      %v2460 = vshll.u32 %v2428, 16
      %v2462 = vrot.slane %v2460, 5
      %v2463 = vor.u32 %v2459, %v2462
      %v2464 = vrot.slane %v2463, 4
      %v2466 = vshll.u32 %v2429, 16
      %v2468 = vrot.slane %v2466, 5
      %v2469 = vsel %vm665, %v2464, %v2468
      %v2471 = vshrl.u32 %v2430, 16
      %v2473 = vrot.slane %v2471, 4
      %v2474 = vshll.u32 %v2430, 16
      %v2476 = vrot.slane %v2474, 5
      %v2477 = vor.u32 %v2473, %v2476
      %v2478 = vrot.slane %v2477, 4
      %v2480 = vshll.u32 %v2431, 16
      %v2482 = vrot.slane %v2480, 5
      %v2483 = vsel %vm665, %v2478, %v2482
      %v2485 = vshrl.u32 %v2432, 16
      %v2487 = vrot.slane %v2485, 4
      %v2488 = vshll.u32 %v2432, 16
      %v2490 = vrot.slane %v2488, 5
      %v2491 = vor.u32 %v2487, %v2490
      %v2492 = vrot.slane %v2491, 4
      %v2494 = vshll.u32 %v2433, 16
      %v2496 = vrot.slane %v2494, 5
      %v2497 = vsel %vm665, %v2492, %v2496
      %v2499 = vshrl.u32 %v2434, 16
      %v2501 = vrot.slane %v2499, 4
      %v2502 = vshll.u32 %v2434, 16
      %v2504 = vrot.slane %v2502, 5
      %v2505 = vor.u32 %v2501, %v2504
      %v2506 = vrot.slane %v2505, 4
      %v2508 = vshll.u32 %v2435, 16
      %v2510 = vrot.slane %v2508, 5
      %v2511 = vsel %vm665, %v2506, %v2510
      %v2513 = vshrl.u32 %v2436, 16
      %v2515 = vrot.slane %v2513, 4
      %v2516 = vshll.u32 %v2436, 16
      %v2518 = vrot.slane %v2516, 5
      %v2519 = vor.u32 %v2515, %v2518
      %v2520 = vrot.slane %v2519, 4
      %v2522 = vshll.u32 %v2437, 16
      %v2524 = vrot.slane %v2522, 5
      %v2525 = vsel %vm665, %v2520, %v2524
      %v2527 = vshrl.u32 %v2438, 16
      %v2529 = vrot.slane %v2527, 4
      %v2530 = vshll.u32 %v2438, 16
      %v2532 = vrot.slane %v2530, 5
      %v2533 = vor.u32 %v2529, %v2532
      %v2534 = vrot.slane %v2533, 4
      %v2536 = vshll.u32 %v2439, 16
      %v2538 = vrot.slane %v2536, 5
      %v2539 = vsel %vm665, %v2534, %v2538
      %v2541 = vshrl.u32 %v2440, 16
      %v2543 = vrot.slane %v2541, 4
      %v2544 = vshll.u32 %v2440, 16
      %v2546 = vrot.slane %v2544, 5
      %v2547 = vor.u32 %v2543, %v2546
      %v2548 = vrot.slane %v2547, 4
      %v2550 = vshll.u32 %v2441, 16
      %v2552 = vrot.slane %v2550, 5
      %v2553 = vsel %vm665, %v2548, %v2552
      %s2554 = scalar_lea.vmem %s4, 22
      %v2555 = vld [vmem:[%s2554] sm:$0x3]
      %v2556 = vunpack.c.l.b16 %v2455
      %v2557 = vunpack.c.l.b16 %v2469
      %v2558 = vunpack.c.l.b16 %v2483
      %v2559 = vunpack.c.l.b16 %v2497
      %v2560 = vunpack.c.l.b16 %v2511
      %v2561 = vunpack.c.l.b16 %v2525
      %v2562 = vunpack.c.l.b16 %v2539
      %v2563 = vunpack.c.l.b16 %v2553
      %v2564 = vpack.c.b16 %v2557, %v2556
      %v2565 = vpack.c.b16 %v2559, %v2558
      %v2566 = vpack.c.b16 %v2561, %v2560
      %v2567 = vpack.c.b16 %v2563, %v2562
      %v2569 = vsel %vm420, %v2564, 0
      %v2572 = vsel %vm420, %v2565, 0
      %v2575 = vsel %vm420, %v2566, 0
      %v2578 = vsel %vm420, %v2567, 0
      %v2581 = vsel %vm433, %v2555, 0
      %2583 = vmatprep.subr.bf16.mxu0 0
      %2584 = vmatpush1.bf16.msra.mxu0 0
      %2585 = vmatprep.subr.bf16.mxu0 0
      %2586 = vmatpush1.bf16.msra.mxu0 0
      %2587 = vmatprep.subr.bf16.mxu0 0
      %2588 = vmatpush1.bf16.msra.mxu0 0
      %2589 = vmatprep.subr.bf16.mxu0 0
      %2590 = vmatpush1.bf16.msra.mxu0 0
      %2591 = vmatprep.subr.bf16.mxu0 0
      %2592 = vmatpush1.bf16.msra.mxu0 0
      %2593 = vmatprep.subr.bf16.mxu0 0
      %2594 = vmatpush1.bf16.msra.mxu0 0
      %2595 = vmatprep.subr.bf16.mxu0 0
      %2596 = vmatpush1.bf16.msra.mxu0 0
      %2597 = vmatprep.subr.bf16.mxu0 0
      %2598 = vmatpush1.bf16.msra.mxu0 %v2581
      %2599 = vmatprep.subr.bf16.mxu0 0
      %2600 = vmatpush2.bf16.msra.mxu0 0
      %2601 = vmatprep.subr.bf16.mxu0 0
      %2602 = vmatpush2.bf16.msra.mxu0 0
      %2603 = vmatprep.subr.bf16.mxu0 0
      %2604 = vmatpush2.bf16.msra.mxu0 0
      %2605 = vmatprep.subr.bf16.mxu0 0
      %2606 = vmatpush2.bf16.msra.mxu0 0
      %2607 = vmatprep.subr.bf16.mxu0 0
      %2608 = vmatpush2.bf16.msra.mxu0 0
      %2609 = vmatprep.subr.bf16.mxu0 0
      %2610 = vmatpush2.bf16.msra.mxu0 0
      %2611 = vmatprep.subr.bf16.mxu0 0
      %2612 = vmatpush2.bf16.msra.mxu0 0
      %2613 = vmatprep.subr.bf16.mxu0 0
      %2614 = vmatpush2.bf16.msra.mxu0 0
      %2615 = vmatprep.mubr.bf16.mxu0 0
      %2616 = vmatmul.mubr.bf16.gmra.mxu0 %v2569
      %v2617 = vpop.f32.mrf.mxu0
      %v2618 = vadd.f32 0.0, %v2617
      %v2619 = vpop.f32.mrf.mxu0
      %v2620 = vpop.f32.mrf.mxu0
      %v2621 = vadd.f32 0.0, %v2620
      %v2622 = vpop.f32.mrf.mxu0
      %2623 = vmatprep.mubr.bf16.mxu0 0
      %2624 = vmatmul.mubr.bf16.gmra.mxu0 %v2572
      %v2625 = vpop.f32.mrf.mxu0
      %v2626 = vadd.f32 0.0, %v2625
      %v2627 = vpop.f32.mrf.mxu0
      %v2628 = vpop.f32.mrf.mxu0
      %v2629 = vadd.f32 0.0, %v2628
      %v2630 = vpop.f32.mrf.mxu0
      %2631 = vmatprep.mubr.bf16.mxu0 0
      %2632 = vmatmul.mubr.bf16.gmra.mxu0 %v2575
      %v2633 = vpop.f32.mrf.mxu0
      %v2634 = vadd.f32 0.0, %v2633
      %v2635 = vpop.f32.mrf.mxu0
      %v2636 = vpop.f32.mrf.mxu0
      %v2637 = vadd.f32 0.0, %v2636
      %v2638 = vpop.f32.mrf.mxu0
      %2639 = vmatprep.mubr.bf16.mxu0 0
      %2640 = vmatmul.mubr.bf16.gmra.mxu0 %v2578
      %v2641 = vpop.f32.mrf.mxu0
      %v2642 = vadd.f32 0.0, %v2641
      %v2643 = vpop.f32.mrf.mxu0
      %v2644 = vpop.f32.mrf.mxu0
      %v2645 = vadd.f32 0.0, %v2644
      %v2646 = vpop.f32.mrf.mxu0
      %2647 = vdwg.mxu0
      %v2648 = vld [vmem:[#allocation2] sm:$0xff]
      %v2649 = vld [vmem:[#allocation2 + $0x8] sm:$0xff]
      %v2650 = vld [vmem:[#allocation2 + $0x10] sm:$0xff]
      %v2651 = vld [vmem:[#allocation2 + $0x18] sm:$0xff]
      %v2652 = vld [vmem:[#allocation2 + $0x20] sm:$0xff]
      %v2653 = vld [vmem:[#allocation2 + $0x28] sm:$0xff]
      %v2654 = vld [vmem:[#allocation2 + $0x30] sm:$0xff]
      %v2655 = vld [vmem:[#allocation2 + $0x38] sm:$0xff]
      %v2656 = vadd.f32 %v2648, %v2618
      %v2657 = vadd.f32 %v2649, %v2621
      %v2658 = vadd.f32 %v2650, %v2626
      %v2659 = vadd.f32 %v2651, %v2629
      %v2660 = vadd.f32 %v2652, %v2634
      %v2661 = vadd.f32 %v2653, %v2637
      %v2662 = vadd.f32 %v2654, %v2642
      %v2663 = vadd.f32 %v2655, %v2645
      %2664 = vst.msk [vmem:[#allocation2] sm:$0xff] %vm502, %v2656
      %2665 = vst.msk [vmem:[#allocation2 + $0x8] sm:$0xff] %vm502, %v2657
      %2666 = vst.msk [vmem:[#allocation2 + $0x10] sm:$0xff] %vm502, %v2658
      %2667 = vst.msk [vmem:[#allocation2 + $0x18] sm:$0xff] %vm502, %v2659
      %2668 = vst.msk [vmem:[#allocation2 + $0x20] sm:$0xff] %vm502, %v2660
      %2669 = vst.msk [vmem:[#allocation2 + $0x28] sm:$0xff] %vm502, %v2661
      %2670 = vst.msk [vmem:[#allocation2 + $0x30] sm:$0xff] %vm502, %v2662
      %2671 = vst.msk [vmem:[#allocation2 + $0x38] sm:$0xff] %vm502, %v2663
      %s2672 = smul.addr %s1907, 4
      %s2673 = scalar_lea.vmem %s357, %s2672
      %v2674 = vld [vmem:[%s2673] sm:$0xf]
      %v2675 = vld [vmem:[%s2673 + $0x8] sm:$0xf]
      %v2676 = vld [vmem:[%s2673 + $0x10] sm:$0xf]
      %v2677 = vld [vmem:[%s2673 + $0x18] sm:$0xf]
      %v2678 = vld [vmem:[%s2673 + $0x20] sm:$0xf]
      %v2679 = vld [vmem:[%s2673 + $0x28] sm:$0xf]
      %v2680 = vld [vmem:[%s2673 + $0x30] sm:$0xf]
      %v2681 = vld [vmem:[%s2673 + $0x38] sm:$0xf]
      %s2682 = scalar_lea.vmem %s4, 24
      %v2683 = vld [vmem:[%s2682] sm:$0x3]
      %v2692 = vunpack.c.l.b16 %v2674
      %v2693 = vunpack.c.l.b16 %v2675
      %v2694 = vunpack.c.l.b16 %v2676
      %v2695 = vunpack.c.l.b16 %v2677
      %v2696 = vunpack.c.l.b16 %v2678
      %v2697 = vunpack.c.l.b16 %v2679
      %v2698 = vunpack.c.l.b16 %v2680
      %v2699 = vunpack.c.l.b16 %v2681
      %v2700 = vpack.c.b16 %v2693, %v2692
      %v2701 = vpack.c.b16 %v2695, %v2694
      %v2702 = vpack.c.b16 %v2697, %v2696
      %v2703 = vpack.c.b16 %v2699, %v2698
      %v2705 = vsel %vm420, %v2700, 0
      %v2708 = vsel %vm420, %v2701, 0
      %v2711 = vsel %vm420, %v2702, 0
      %v2714 = vsel %vm420, %v2703, 0
      %v2717 = vsel %vm433, %v2683, 0
      %2719 = vmatprep.subr.bf16.mxu0 0
      %2720 = vmatpush1.bf16.msra.mxu0 0
      %2721 = vmatprep.subr.bf16.mxu0 0
      %2722 = vmatpush1.bf16.msra.mxu0 0
      %2723 = vmatprep.subr.bf16.mxu0 0
      %2724 = vmatpush1.bf16.msra.mxu0 0
      %2725 = vmatprep.subr.bf16.mxu0 0
      %2726 = vmatpush1.bf16.msra.mxu0 0
      %2727 = vmatprep.subr.bf16.mxu0 0
      %2728 = vmatpush1.bf16.msra.mxu0 0
      %2729 = vmatprep.subr.bf16.mxu0 0
      %2730 = vmatpush1.bf16.msra.mxu0 0
      %2731 = vmatprep.subr.bf16.mxu0 0
      %2732 = vmatpush1.bf16.msra.mxu0 0
      %2733 = vmatprep.subr.bf16.mxu0 0
      %2734 = vmatpush1.bf16.msra.mxu0 %v2717
      %2735 = vmatprep.subr.bf16.mxu0 0
      %2736 = vmatpush2.bf16.msra.mxu0 0
      %2737 = vmatprep.subr.bf16.mxu0 0
      %2738 = vmatpush2.bf16.msra.mxu0 0
      %2739 = vmatprep.subr.bf16.mxu0 0
      %2740 = vmatpush2.bf16.msra.mxu0 0
      %2741 = vmatprep.subr.bf16.mxu0 0
      %2742 = vmatpush2.bf16.msra.mxu0 0
      %2743 = vmatprep.subr.bf16.mxu0 0
      %2744 = vmatpush2.bf16.msra.mxu0 0
      %2745 = vmatprep.subr.bf16.mxu0 0
      %2746 = vmatpush2.bf16.msra.mxu0 0
      %2747 = vmatprep.subr.bf16.mxu0 0
      %2748 = vmatpush2.bf16.msra.mxu0 0
      %2749 = vmatprep.subr.bf16.mxu0 0
      %2750 = vmatpush2.bf16.msra.mxu0 0
      %2751 = vmatprep.mubr.bf16.mxu0 0
      %2752 = vmatmul.mubr.bf16.gmra.mxu0 %v2705
      %v2753 = vpop.f32.mrf.mxu0
      %v2754 = vadd.f32 0.0, %v2753
      %v2755 = vpop.f32.mrf.mxu0
      %v2756 = vpop.f32.mrf.mxu0
      %v2757 = vadd.f32 0.0, %v2756
      %v2758 = vpop.f32.mrf.mxu0
      %2759 = vmatprep.mubr.bf16.mxu0 0
      %2760 = vmatmul.mubr.bf16.gmra.mxu0 %v2708
      %v2761 = vpop.f32.mrf.mxu0
      %v2762 = vadd.f32 0.0, %v2761
      %v2763 = vpop.f32.mrf.mxu0
      %v2764 = vpop.f32.mrf.mxu0
      %v2765 = vadd.f32 0.0, %v2764
      %v2766 = vpop.f32.mrf.mxu0
      %2767 = vmatprep.mubr.bf16.mxu0 0
      %2768 = vmatmul.mubr.bf16.gmra.mxu0 %v2711
      %v2769 = vpop.f32.mrf.mxu0
      %v2770 = vadd.f32 0.0, %v2769
      %v2771 = vpop.f32.mrf.mxu0
      %v2772 = vpop.f32.mrf.mxu0
      %v2773 = vadd.f32 0.0, %v2772
      %v2774 = vpop.f32.mrf.mxu0
      %2775 = vmatprep.mubr.bf16.mxu0 0
      %2776 = vmatmul.mubr.bf16.gmra.mxu0 %v2714
      %v2777 = vpop.f32.mrf.mxu0
      %v2778 = vadd.f32 0.0, %v2777
      %v2779 = vpop.f32.mrf.mxu0
      %v2780 = vpop.f32.mrf.mxu0
      %v2781 = vadd.f32 0.0, %v2780
      %v2782 = vpop.f32.mrf.mxu0
      %2783 = vdwg.mxu0
      %v2784 = vld [vmem:[#allocation2] sm:$0xff]
      %v2785 = vld [vmem:[#allocation2 + $0x8] sm:$0xff]
      %v2786 = vld [vmem:[#allocation2 + $0x10] sm:$0xff]
      %v2787 = vld [vmem:[#allocation2 + $0x18] sm:$0xff]
      %v2788 = vld [vmem:[#allocation2 + $0x20] sm:$0xff]
      %v2789 = vld [vmem:[#allocation2 + $0x28] sm:$0xff]
      %v2790 = vld [vmem:[#allocation2 + $0x30] sm:$0xff]
      %v2791 = vld [vmem:[#allocation2 + $0x38] sm:$0xff]
      %v2792 = vadd.f32 %v2784, %v2754
      %v2793 = vadd.f32 %v2785, %v2757
      %v2794 = vadd.f32 %v2786, %v2762
      %v2795 = vadd.f32 %v2787, %v2765
      %v2796 = vadd.f32 %v2788, %v2770
      %v2797 = vadd.f32 %v2789, %v2773
      %v2798 = vadd.f32 %v2790, %v2778
      %v2799 = vadd.f32 %v2791, %v2781
      %2800 = vst.msk [vmem:[#allocation2] sm:$0xff] %vm502, %v2792
      %2801 = vst.msk [vmem:[#allocation2 + $0x8] sm:$0xff] %vm502, %v2793
      %2802 = vst.msk [vmem:[#allocation2 + $0x10] sm:$0xff] %vm502, %v2794
      %2803 = vst.msk [vmem:[#allocation2 + $0x18] sm:$0xff] %vm502, %v2795
      %2804 = vst.msk [vmem:[#allocation2 + $0x20] sm:$0xff] %vm502, %v2796
      %2805 = vst.msk [vmem:[#allocation2 + $0x28] sm:$0xff] %vm502, %v2797
      %2806 = vst.msk [vmem:[#allocation2 + $0x30] sm:$0xff] %vm502, %v2798
      %2807 = vst.msk [vmem:[#allocation2 + $0x38] sm:$0xff] %vm502, %v2799
      %s2808 = smul.addr %s1907, 4
      %s2809 = scalar_lea.vmem %s362, %s2808
      %v2810 = vld [vmem:[%s2809] sm:$0xf]
      %v2811 = vld [vmem:[%s2809 + $0x8] sm:$0xf]
      %v2812 = vld [vmem:[%s2809 + $0x10] sm:$0xf]
      %v2813 = vld [vmem:[%s2809 + $0x18] sm:$0xf]
      %v2814 = vld [vmem:[%s2809 + $0x20] sm:$0xf]
      %v2815 = vld [vmem:[%s2809 + $0x28] sm:$0xf]
      %v2816 = vld [vmem:[%s2809 + $0x30] sm:$0xf]
      %v2817 = vld [vmem:[%s2809 + $0x38] sm:$0xf]
      %s2818 = scalar_lea.vmem %s4, 26
      %v2819 = vld [vmem:[%s2818] sm:$0x3]
      %v2828 = vunpack.c.l.b16 %v2810
      %v2829 = vunpack.c.l.b16 %v2811
      %v2830 = vunpack.c.l.b16 %v2812
      %v2831 = vunpack.c.l.b16 %v2813
      %v2832 = vunpack.c.l.b16 %v2814
      %v2833 = vunpack.c.l.b16 %v2815
      %v2834 = vunpack.c.l.b16 %v2816
      %v2835 = vunpack.c.l.b16 %v2817
      %v2836 = vpack.c.b16 %v2829, %v2828
      %v2837 = vpack.c.b16 %v2831, %v2830
      %v2838 = vpack.c.b16 %v2833, %v2832
      %v2839 = vpack.c.b16 %v2835, %v2834
      %v2841 = vsel %vm420, %v2836, 0
      %v2844 = vsel %vm420, %v2837, 0
      %v2847 = vsel %vm420, %v2838, 0
      %v2850 = vsel %vm420, %v2839, 0
      %v2853 = vsel %vm433, %v2819, 0
      %2855 = vmatprep.subr.bf16.mxu0 0
      %2856 = vmatpush1.bf16.msra.mxu0 0
      %2857 = vmatprep.subr.bf16.mxu0 0
      %2858 = vmatpush1.bf16.msra.mxu0 0
      %2859 = vmatprep.subr.bf16.mxu0 0
      %2860 = vmatpush1.bf16.msra.mxu0 0
      %2861 = vmatprep.subr.bf16.mxu0 0
      %2862 = vmatpush1.bf16.msra.mxu0 0
      %2863 = vmatprep.subr.bf16.mxu0 0
      %2864 = vmatpush1.bf16.msra.mxu0 0
      %2865 = vmatprep.subr.bf16.mxu0 0
      %2866 = vmatpush1.bf16.msra.mxu0 0
      %2867 = vmatprep.subr.bf16.mxu0 0
      %2868 = vmatpush1.bf16.msra.mxu0 0
      %2869 = vmatprep.subr.bf16.mxu0 0
      %2870 = vmatpush1.bf16.msra.mxu0 %v2853
      %2871 = vmatprep.subr.bf16.mxu0 0
      %2872 = vmatpush2.bf16.msra.mxu0 0
      %2873 = vmatprep.subr.bf16.mxu0 0
      %2874 = vmatpush2.bf16.msra.mxu0 0
      %2875 = vmatprep.subr.bf16.mxu0 0
      %2876 = vmatpush2.bf16.msra.mxu0 0
      %2877 = vmatprep.subr.bf16.mxu0 0
      %2878 = vmatpush2.bf16.msra.mxu0 0
      %2879 = vmatprep.subr.bf16.mxu0 0
      %2880 = vmatpush2.bf16.msra.mxu0 0
      %2881 = vmatprep.subr.bf16.mxu0 0
      %2882 = vmatpush2.bf16.msra.mxu0 0
      %2883 = vmatprep.subr.bf16.mxu0 0
      %2884 = vmatpush2.bf16.msra.mxu0 0
      %2885 = vmatprep.subr.bf16.mxu0 0
      %2886 = vmatpush2.bf16.msra.mxu0 0
      %2887 = vmatprep.mubr.bf16.mxu0 0
      %2888 = vmatmul.mubr.bf16.gmra.mxu0 %v2841
      %v2889 = vpop.f32.mrf.mxu0
      %v2890 = vadd.f32 0.0, %v2889
      %v2891 = vpop.f32.mrf.mxu0
      %v2892 = vpop.f32.mrf.mxu0
      %v2893 = vadd.f32 0.0, %v2892
      %v2894 = vpop.f32.mrf.mxu0
      %2895 = vmatprep.mubr.bf16.mxu0 0
      %2896 = vmatmul.mubr.bf16.gmra.mxu0 %v2844
      %v2897 = vpop.f32.mrf.mxu0
      %v2898 = vadd.f32 0.0, %v2897
      %v2899 = vpop.f32.mrf.mxu0
      %v2900 = vpop.f32.mrf.mxu0
      %v2901 = vadd.f32 0.0, %v2900
      %v2902 = vpop.f32.mrf.mxu0
      %2903 = vmatprep.mubr.bf16.mxu0 0
      %2904 = vmatmul.mubr.bf16.gmra.mxu0 %v2847
      %v2905 = vpop.f32.mrf.mxu0
      %v2906 = vadd.f32 0.0, %v2905
      %v2907 = vpop.f32.mrf.mxu0
      %v2908 = vpop.f32.mrf.mxu0
      %v2909 = vadd.f32 0.0, %v2908
      %v2910 = vpop.f32.mrf.mxu0
      %2911 = vmatprep.mubr.bf16.mxu0 0
      %2912 = vmatmul.mubr.bf16.gmra.mxu0 %v2850
      %v2913 = vpop.f32.mrf.mxu0
      %v2914 = vadd.f32 0.0, %v2913
      %v2915 = vpop.f32.mrf.mxu0
      %v2916 = vpop.f32.mrf.mxu0
      %v2917 = vadd.f32 0.0, %v2916
      %v2918 = vpop.f32.mrf.mxu0
      %2919 = vdwg.mxu0
      %v2920 = vld [vmem:[#allocation2] sm:$0xff]
      %v2921 = vld [vmem:[#allocation2 + $0x8] sm:$0xff]
      %v2922 = vld [vmem:[#allocation2 + $0x10] sm:$0xff]
      %v2923 = vld [vmem:[#allocation2 + $0x18] sm:$0xff]
      %v2924 = vld [vmem:[#allocation2 + $0x20] sm:$0xff]
      %v2925 = vld [vmem:[#allocation2 + $0x28] sm:$0xff]
      %v2926 = vld [vmem:[#allocation2 + $0x30] sm:$0xff]
      %v2927 = vld [vmem:[#allocation2 + $0x38] sm:$0xff]
      %v2928 = vadd.f32 %v2920, %v2890
      %v2929 = vadd.f32 %v2921, %v2893
      %v2930 = vadd.f32 %v2922, %v2898
      %v2931 = vadd.f32 %v2923, %v2901
      %v2932 = vadd.f32 %v2924, %v2906
      %v2933 = vadd.f32 %v2925, %v2909
      %v2934 = vadd.f32 %v2926, %v2914
      %v2935 = vadd.f32 %v2927, %v2917
      %2936 = vst.msk [vmem:[#allocation2] sm:$0xff] %vm502, %v2928
      %2937 = vst.msk [vmem:[#allocation2 + $0x8] sm:$0xff] %vm502, %v2929
      %2938 = vst.msk [vmem:[#allocation2 + $0x10] sm:$0xff] %vm502, %v2930
      %2939 = vst.msk [vmem:[#allocation2 + $0x18] sm:$0xff] %vm502, %v2931
      %2940 = vst.msk [vmem:[#allocation2 + $0x20] sm:$0xff] %vm502, %v2932
      %2941 = vst.msk [vmem:[#allocation2 + $0x28] sm:$0xff] %vm502, %v2933
      %2942 = vst.msk [vmem:[#allocation2 + $0x30] sm:$0xff] %vm502, %v2934
      %2943 = vst.msk [vmem:[#allocation2 + $0x38] sm:$0xff] %vm502, %v2935
      %v2944 = vld [vmem:[%s2673] sm:$0xf]
      %v2945 = vld [vmem:[%s2673 + $0x4] sm:$0x1]
      %v2946 = vld [vmem:[%s2673 + $0x8] sm:$0xf]
      %v2947 = vld [vmem:[%s2673 + $0xc] sm:$0x1]
      %v2948 = vld [vmem:[%s2673 + $0x10] sm:$0xf]
      %v2949 = vld [vmem:[%s2673 + $0x14] sm:$0x1]
      %v2950 = vld [vmem:[%s2673 + $0x18] sm:$0xf]
      %v2951 = vld [vmem:[%s2673 + $0x1c] sm:$0x1]
      %v2952 = vld [vmem:[%s2673 + $0x20] sm:$0xf]
      %v2953 = vld [vmem:[%s2673 + $0x24] sm:$0x1]
      %v2954 = vld [vmem:[%s2673 + $0x28] sm:$0xf]
      %v2955 = vld [vmem:[%s2673 + $0x2c] sm:$0x1]
      %v2956 = vld [vmem:[%s2673 + $0x30] sm:$0xf]
      %v2957 = vld [vmem:[%s2673 + $0x34] sm:$0x1]
      %v2958 = vld [vmem:[%s2673 + $0x38] sm:$0xf]
      %v2959 = vld [vmem:[%s2673 + $0x3c] sm:$0x1]
      %v2961 = vshrl.u32 %v2944, 16
      %v2963 = vrot.slane %v2961, 4
      %v2964 = vshll.u32 %v2944, 16
      %v2966 = vrot.slane %v2964, 5
      %v2967 = vor.u32 %v2963, %v2966
      %v2968 = vrot.slane %v2967, 4
      %v2970 = vshll.u32 %v2945, 16
      %v2972 = vrot.slane %v2970, 5
      %v2973 = vsel %vm665, %v2968, %v2972
      %v2975 = vshrl.u32 %v2946, 16
      %v2977 = vrot.slane %v2975, 4
      %v2978 = vshll.u32 %v2946, 16
      %v2980 = vrot.slane %v2978, 5
      %v2981 = vor.u32 %v2977, %v2980
      %v2982 = vrot.slane %v2981, 4
      %v2984 = vshll.u32 %v2947, 16
      %v2986 = vrot.slane %v2984, 5
      %v2987 = vsel %vm665, %v2982, %v2986
      %v2989 = vshrl.u32 %v2948, 16
      %v2991 = vrot.slane %v2989, 4
      %v2992 = vshll.u32 %v2948, 16
      %v2994 = vrot.slane %v2992, 5
      %v2995 = vor.u32 %v2991, %v2994
      %v2996 = vrot.slane %v2995, 4
      %v2998 = vshll.u32 %v2949, 16
      %v3000 = vrot.slane %v2998, 5
      %v3001 = vsel %vm665, %v2996, %v3000
      %v3003 = vshrl.u32 %v2950, 16
      %v3005 = vrot.slane %v3003, 4
      %v3006 = vshll.u32 %v2950, 16
      %v3008 = vrot.slane %v3006, 5
      %v3009 = vor.u32 %v3005, %v3008
      %v3010 = vrot.slane %v3009, 4
      %v3012 = vshll.u32 %v2951, 16
      %v3014 = vrot.slane %v3012, 5
      %v3015 = vsel %vm665, %v3010, %v3014
      %v3017 = vshrl.u32 %v2952, 16
      %v3019 = vrot.slane %v3017, 4
      %v3020 = vshll.u32 %v2952, 16
      %v3022 = vrot.slane %v3020, 5
      %v3023 = vor.u32 %v3019, %v3022
      %v3024 = vrot.slane %v3023, 4
      %v3026 = vshll.u32 %v2953, 16
      %v3028 = vrot.slane %v3026, 5
      %v3029 = vsel %vm665, %v3024, %v3028
      %v3031 = vshrl.u32 %v2954, 16
      %v3033 = vrot.slane %v3031, 4
      %v3034 = vshll.u32 %v2954, 16
      %v3036 = vrot.slane %v3034, 5
      %v3037 = vor.u32 %v3033, %v3036
      %v3038 = vrot.slane %v3037, 4
      %v3040 = vshll.u32 %v2955, 16
      %v3042 = vrot.slane %v3040, 5
      %v3043 = vsel %vm665, %v3038, %v3042
      %v3045 = vshrl.u32 %v2956, 16
      %v3047 = vrot.slane %v3045, 4
      %v3048 = vshll.u32 %v2956, 16
      %v3050 = vrot.slane %v3048, 5
      %v3051 = vor.u32 %v3047, %v3050
      %v3052 = vrot.slane %v3051, 4
      %v3054 = vshll.u32 %v2957, 16
      %v3056 = vrot.slane %v3054, 5
      %v3057 = vsel %vm665, %v3052, %v3056
      %v3059 = vshrl.u32 %v2958, 16
      %v3061 = vrot.slane %v3059, 4
      %v3062 = vshll.u32 %v2958, 16
      %v3064 = vrot.slane %v3062, 5
      %v3065 = vor.u32 %v3061, %v3064
      %v3066 = vrot.slane %v3065, 4
      %v3068 = vshll.u32 %v2959, 16
      %v3070 = vrot.slane %v3068, 5
      %v3071 = vsel %vm665, %v3066, %v3070
      %s3072 = scalar_lea.vmem %s4, 28
      %v3073 = vld [vmem:[%s3072] sm:$0x3]
      %v3074 = vunpack.c.l.b16 %v2973
      %v3075 = vunpack.c.l.b16 %v2987
      %v3076 = vunpack.c.l.b16 %v3001
      %v3077 = vunpack.c.l.b16 %v3015
      %v3078 = vunpack.c.l.b16 %v3029
      %v3079 = vunpack.c.l.b16 %v3043
      %v3080 = vunpack.c.l.b16 %v3057
      %v3081 = vunpack.c.l.b16 %v3071
      %v3082 = vpack.c.b16 %v3075, %v3074
      %v3083 = vpack.c.b16 %v3077, %v3076
      %v3084 = vpack.c.b16 %v3079, %v3078
      %v3085 = vpack.c.b16 %v3081, %v3080
      %v3087 = vsel %vm420, %v3082, 0
      %v3090 = vsel %vm420, %v3083, 0
      %v3093 = vsel %vm420, %v3084, 0
      %v3096 = vsel %vm420, %v3085, 0
      %v3099 = vsel %vm433, %v3073, 0
      %3101 = vmatprep.subr.bf16.mxu0 0
      %3102 = vmatpush1.bf16.msra.mxu0 0
      %3103 = vmatprep.subr.bf16.mxu0 0
      %3104 = vmatpush1.bf16.msra.mxu0 0
      %3105 = vmatprep.subr.bf16.mxu0 0
      %3106 = vmatpush1.bf16.msra.mxu0 0
      %3107 = vmatprep.subr.bf16.mxu0 0
      %3108 = vmatpush1.bf16.msra.mxu0 0
      %3109 = vmatprep.subr.bf16.mxu0 0
      %3110 = vmatpush1.bf16.msra.mxu0 0
      %3111 = vmatprep.subr.bf16.mxu0 0
      %3112 = vmatpush1.bf16.msra.mxu0 0
      %3113 = vmatprep.subr.bf16.mxu0 0
      %3114 = vmatpush1.bf16.msra.mxu0 0
      %3115 = vmatprep.subr.bf16.mxu0 0
      %3116 = vmatpush1.bf16.msra.mxu0 %v3099
      %3117 = vmatprep.subr.bf16.mxu0 0
      %3118 = vmatpush2.bf16.msra.mxu0 0
      %3119 = vmatprep.subr.bf16.mxu0 0
      %3120 = vmatpush2.bf16.msra.mxu0 0
      %3121 = vmatprep.subr.bf16.mxu0 0
      %3122 = vmatpush2.bf16.msra.mxu0 0
      %3123 = vmatprep.subr.bf16.mxu0 0
      %3124 = vmatpush2.bf16.msra.mxu0 0
      %3125 = vmatprep.subr.bf16.mxu0 0
      %3126 = vmatpush2.bf16.msra.mxu0 0
      %3127 = vmatprep.subr.bf16.mxu0 0
      %3128 = vmatpush2.bf16.msra.mxu0 0
      %3129 = vmatprep.subr.bf16.mxu0 0
      %3130 = vmatpush2.bf16.msra.mxu0 0
      %3131 = vmatprep.subr.bf16.mxu0 0
      %3132 = vmatpush2.bf16.msra.mxu0 0
      %3133 = vmatprep.mubr.bf16.mxu0 0
      %3134 = vmatmul.mubr.bf16.gmra.mxu0 %v3087
      %v3135 = vpop.f32.mrf.mxu0
      %v3136 = vadd.f32 0.0, %v3135
      %v3137 = vpop.f32.mrf.mxu0
      %v3138 = vpop.f32.mrf.mxu0
      %v3139 = vadd.f32 0.0, %v3138
      %v3140 = vpop.f32.mrf.mxu0
      %3141 = vmatprep.mubr.bf16.mxu0 0
      %3142 = vmatmul.mubr.bf16.gmra.mxu0 %v3090
      %v3143 = vpop.f32.mrf.mxu0
      %v3144 = vadd.f32 0.0, %v3143
      %v3145 = vpop.f32.mrf.mxu0
      %v3146 = vpop.f32.mrf.mxu0
      %v3147 = vadd.f32 0.0, %v3146
      %v3148 = vpop.f32.mrf.mxu0
      %3149 = vmatprep.mubr.bf16.mxu0 0
      %3150 = vmatmul.mubr.bf16.gmra.mxu0 %v3093
      %v3151 = vpop.f32.mrf.mxu0
      %v3152 = vadd.f32 0.0, %v3151
      %v3153 = vpop.f32.mrf.mxu0
      %v3154 = vpop.f32.mrf.mxu0
      %v3155 = vadd.f32 0.0, %v3154
      %v3156 = vpop.f32.mrf.mxu0
      %3157 = vmatprep.mubr.bf16.mxu0 0
      %3158 = vmatmul.mubr.bf16.gmra.mxu0 %v3096
      %v3159 = vpop.f32.mrf.mxu0
      %v3160 = vadd.f32 0.0, %v3159
      %v3161 = vpop.f32.mrf.mxu0
      %v3162 = vpop.f32.mrf.mxu0
      %v3163 = vadd.f32 0.0, %v3162
      %v3164 = vpop.f32.mrf.mxu0
      %3165 = vdwg.mxu0
      %v3166 = vld [vmem:[#allocation2] sm:$0xff]
      %v3167 = vld [vmem:[#allocation2 + $0x8] sm:$0xff]
      %v3168 = vld [vmem:[#allocation2 + $0x10] sm:$0xff]
      %v3169 = vld [vmem:[#allocation2 + $0x18] sm:$0xff]
      %v3170 = vld [vmem:[#allocation2 + $0x20] sm:$0xff]
      %v3171 = vld [vmem:[#allocation2 + $0x28] sm:$0xff]
      %v3172 = vld [vmem:[#allocation2 + $0x30] sm:$0xff]
      %v3173 = vld [vmem:[#allocation2 + $0x38] sm:$0xff]
      %v3174 = vadd.f32 %v3166, %v3136
      %v3175 = vadd.f32 %v3167, %v3139
      %v3176 = vadd.f32 %v3168, %v3144
      %v3177 = vadd.f32 %v3169, %v3147
      %v3178 = vadd.f32 %v3170, %v3152
      %v3179 = vadd.f32 %v3171, %v3155
      %v3180 = vadd.f32 %v3172, %v3160
      %v3181 = vadd.f32 %v3173, %v3163
      %3182 = vst.msk [vmem:[#allocation2] sm:$0xff] %vm502, %v3174
      %3183 = vst.msk [vmem:[#allocation2 + $0x8] sm:$0xff] %vm502, %v3175
      %3184 = vst.msk [vmem:[#allocation2 + $0x10] sm:$0xff] %vm502, %v3176
      %3185 = vst.msk [vmem:[#allocation2 + $0x18] sm:$0xff] %vm502, %v3177
      %3186 = vst.msk [vmem:[#allocation2 + $0x20] sm:$0xff] %vm502, %v3178
      %3187 = vst.msk [vmem:[#allocation2 + $0x28] sm:$0xff] %vm502, %v3179
      %3188 = vst.msk [vmem:[#allocation2 + $0x30] sm:$0xff] %vm502, %v3180
      %3189 = vst.msk [vmem:[#allocation2 + $0x38] sm:$0xff] %vm502, %v3181
      %v3190 = vld [vmem:[%s2809] sm:$0xf]
      %v3191 = vld [vmem:[%s2809 + $0x4] sm:$0x1]
      %v3192 = vld [vmem:[%s2809 + $0x8] sm:$0xf]
      %v3193 = vld [vmem:[%s2809 + $0xc] sm:$0x1]
      %v3194 = vld [vmem:[%s2809 + $0x10] sm:$0xf]
      %v3195 = vld [vmem:[%s2809 + $0x14] sm:$0x1]
      %v3196 = vld [vmem:[%s2809 + $0x18] sm:$0xf]
      %v3197 = vld [vmem:[%s2809 + $0x1c] sm:$0x1]
      %v3198 = vld [vmem:[%s2809 + $0x20] sm:$0xf]
      %v3199 = vld [vmem:[%s2809 + $0x24] sm:$0x1]
      %v3200 = vld [vmem:[%s2809 + $0x28] sm:$0xf]
      %v3201 = vld [vmem:[%s2809 + $0x2c] sm:$0x1]
      %v3202 = vld [vmem:[%s2809 + $0x30] sm:$0xf]
      %v3203 = vld [vmem:[%s2809 + $0x34] sm:$0x1]
      %v3204 = vld [vmem:[%s2809 + $0x38] sm:$0xf]
      %v3205 = vld [vmem:[%s2809 + $0x3c] sm:$0x1]
      %v3207 = vshrl.u32 %v3190, 16
      %v3209 = vrot.slane %v3207, 4
      %v3210 = vshll.u32 %v3190, 16
      %v3212 = vrot.slane %v3210, 5
      %v3213 = vor.u32 %v3209, %v3212
      %v3214 = vrot.slane %v3213, 4
      %v3216 = vshll.u32 %v3191, 16
      %v3218 = vrot.slane %v3216, 5
      %v3219 = vsel %vm665, %v3214, %v3218
      %v3221 = vshrl.u32 %v3192, 16
      %v3223 = vrot.slane %v3221, 4
      %v3224 = vshll.u32 %v3192, 16
      %v3226 = vrot.slane %v3224, 5
      %v3227 = vor.u32 %v3223, %v3226
      %v3228 = vrot.slane %v3227, 4
      %v3230 = vshll.u32 %v3193, 16
      %v3232 = vrot.slane %v3230, 5
      %v3233 = vsel %vm665, %v3228, %v3232
      %v3235 = vshrl.u32 %v3194, 16
      %v3237 = vrot.slane %v3235, 4
      %v3238 = vshll.u32 %v3194, 16
      %v3240 = vrot.slane %v3238, 5
      %v3241 = vor.u32 %v3237, %v3240
      %v3242 = vrot.slane %v3241, 4
      %v3244 = vshll.u32 %v3195, 16
      %v3246 = vrot.slane %v3244, 5
      %v3247 = vsel %vm665, %v3242, %v3246
      %v3249 = vshrl.u32 %v3196, 16
      %v3251 = vrot.slane %v3249, 4
      %v3252 = vshll.u32 %v3196, 16
      %v3254 = vrot.slane %v3252, 5
      %v3255 = vor.u32 %v3251, %v3254
      %v3256 = vrot.slane %v3255, 4
      %v3258 = vshll.u32 %v3197, 16
      %v3260 = vrot.slane %v3258, 5
      %v3261 = vsel %vm665, %v3256, %v3260
      %v3263 = vshrl.u32 %v3198, 16
      %v3265 = vrot.slane %v3263, 4
      %v3266 = vshll.u32 %v3198, 16
      %v3268 = vrot.slane %v3266, 5
      %v3269 = vor.u32 %v3265, %v3268
      %v3270 = vrot.slane %v3269, 4
      %v3272 = vshll.u32 %v3199, 16
      %v3274 = vrot.slane %v3272, 5
      %v3275 = vsel %vm665, %v3270, %v3274
      %v3277 = vshrl.u32 %v3200, 16
      %v3279 = vrot.slane %v3277, 4
      %v3280 = vshll.u32 %v3200, 16
      %v3282 = vrot.slane %v3280, 5
      %v3283 = vor.u32 %v3279, %v3282
      %v3284 = vrot.slane %v3283, 4
      %v3286 = vshll.u32 %v3201, 16
      %v3288 = vrot.slane %v3286, 5
      %v3289 = vsel %vm665, %v3284, %v3288
      %v3291 = vshrl.u32 %v3202, 16
      %v3293 = vrot.slane %v3291, 4
      %v3294 = vshll.u32 %v3202, 16
      %v3296 = vrot.slane %v3294, 5
      %v3297 = vor.u32 %v3293, %v3296
      %v3298 = vrot.slane %v3297, 4
      %v3300 = vshll.u32 %v3203, 16
      %v3302 = vrot.slane %v3300, 5
      %v3303 = vsel %vm665, %v3298, %v3302
      %v3305 = vshrl.u32 %v3204, 16
      %v3307 = vrot.slane %v3305, 4
      %v3308 = vshll.u32 %v3204, 16
      %v3310 = vrot.slane %v3308, 5
      %v3311 = vor.u32 %v3307, %v3310
      %v3312 = vrot.slane %v3311, 4
      %v3314 = vshll.u32 %v3205, 16
      %v3316 = vrot.slane %v3314, 5
      %v3317 = vsel %vm665, %v3312, %v3316
      %s3318 = scalar_lea.vmem %s4, 30
      %v3319 = vld [vmem:[%s3318] sm:$0x3]
      %v3320 = vunpack.c.l.b16 %v3219
      %v3321 = vunpack.c.l.b16 %v3233
      %v3322 = vunpack.c.l.b16 %v3247
      %v3323 = vunpack.c.l.b16 %v3261
      %v3324 = vunpack.c.l.b16 %v3275
      %v3325 = vunpack.c.l.b16 %v3289
      %v3326 = vunpack.c.l.b16 %v3303
      %v3327 = vunpack.c.l.b16 %v3317
      %v3328 = vpack.c.b16 %v3321, %v3320
      %v3329 = vpack.c.b16 %v3323, %v3322
      %v3330 = vpack.c.b16 %v3325, %v3324
      %v3331 = vpack.c.b16 %v3327, %v3326
      %v3333 = vsel %vm420, %v3328, 0
      %v3336 = vsel %vm420, %v3329, 0
      %v3339 = vsel %vm420, %v3330, 0
      %v3342 = vsel %vm420, %v3331, 0
      %v3345 = vsel %vm433, %v3319, 0
      %3347 = vmatprep.subr.bf16.mxu0 0
      %3348 = vmatpush1.bf16.msra.mxu0 0
      %3349 = vmatprep.subr.bf16.mxu0 0
      %3350 = vmatpush1.bf16.msra.mxu0 0
      %3351 = vmatprep.subr.bf16.mxu0 0
      %3352 = vmatpush1.bf16.msra.mxu0 0
      %3353 = vmatprep.subr.bf16.mxu0 0
      %3354 = vmatpush1.bf16.msra.mxu0 0
      %3355 = vmatprep.subr.bf16.mxu0 0
      %3356 = vmatpush1.bf16.msra.mxu0 0
      %3357 = vmatprep.subr.bf16.mxu0 0
      %3358 = vmatpush1.bf16.msra.mxu0 0
      %3359 = vmatprep.subr.bf16.mxu0 0
      %3360 = vmatpush1.bf16.msra.mxu0 0
      %3361 = vmatprep.subr.bf16.mxu0 0
      %3362 = vmatpush1.bf16.msra.mxu0 %v3345
      %3363 = vmatprep.subr.bf16.mxu0 0
      %3364 = vmatpush2.bf16.msra.mxu0 0
      %3365 = vmatprep.subr.bf16.mxu0 0
      %3366 = vmatpush2.bf16.msra.mxu0 0
      %3367 = vmatprep.subr.bf16.mxu0 0
      %3368 = vmatpush2.bf16.msra.mxu0 0
      %3369 = vmatprep.subr.bf16.mxu0 0
      %3370 = vmatpush2.bf16.msra.mxu0 0
      %3371 = vmatprep.subr.bf16.mxu0 0
      %3372 = vmatpush2.bf16.msra.mxu0 0
      %3373 = vmatprep.subr.bf16.mxu0 0
      %3374 = vmatpush2.bf16.msra.mxu0 0
      %3375 = vmatprep.subr.bf16.mxu0 0
      %3376 = vmatpush2.bf16.msra.mxu0 0
      %3377 = vmatprep.subr.bf16.mxu0 0
      %3378 = vmatpush2.bf16.msra.mxu0 0
      %3379 = vmatprep.mubr.bf16.mxu0 0
      %3380 = vmatmul.mubr.bf16.gmra.mxu0 %v3333
      %v3381 = vpop.f32.mrf.mxu0
      %v3382 = vadd.f32 0.0, %v3381
      %v3383 = vpop.f32.mrf.mxu0
      %v3384 = vpop.f32.mrf.mxu0
      %v3385 = vadd.f32 0.0, %v3384
      %v3386 = vpop.f32.mrf.mxu0
      %3387 = vmatprep.mubr.bf16.mxu0 0
      %3388 = vmatmul.mubr.bf16.gmra.mxu0 %v3336
      %v3389 = vpop.f32.mrf.mxu0
      %v3390 = vadd.f32 0.0, %v3389
      %v3391 = vpop.f32.mrf.mxu0
      %v3392 = vpop.f32.mrf.mxu0
      %v3393 = vadd.f32 0.0, %v3392
      %v3394 = vpop.f32.mrf.mxu0
      %3395 = vmatprep.mubr.bf16.mxu0 0
      %3396 = vmatmul.mubr.bf16.gmra.mxu0 %v3339
      %v3397 = vpop.f32.mrf.mxu0
      %v3398 = vadd.f32 0.0, %v3397
      %v3399 = vpop.f32.mrf.mxu0
      %v3400 = vpop.f32.mrf.mxu0
      %v3401 = vadd.f32 0.0, %v3400
      %v3402 = vpop.f32.mrf.mxu0
      %3403 = vmatprep.mubr.bf16.mxu0 0
      %3404 = vmatmul.mubr.bf16.gmra.mxu0 %v3342
      %v3405 = vpop.f32.mrf.mxu0
      %v3406 = vadd.f32 0.0, %v3405
      %v3407 = vpop.f32.mrf.mxu0
      %v3408 = vpop.f32.mrf.mxu0
      %v3409 = vadd.f32 0.0, %v3408
      %v3410 = vpop.f32.mrf.mxu0
      %3411 = vdwg.mxu0
      %v3412 = vld [vmem:[#allocation2] sm:$0xff]
      %v3413 = vld [vmem:[#allocation2 + $0x8] sm:$0xff]
      %v3414 = vld [vmem:[#allocation2 + $0x10] sm:$0xff]
      %v3415 = vld [vmem:[#allocation2 + $0x18] sm:$0xff]
      %v3416 = vld [vmem:[#allocation2 + $0x20] sm:$0xff]
      %v3417 = vld [vmem:[#allocation2 + $0x28] sm:$0xff]
      %v3418 = vld [vmem:[#allocation2 + $0x30] sm:$0xff]
      %v3419 = vld [vmem:[#allocation2 + $0x38] sm:$0xff]
      %v3420 = vadd.f32 %v3412, %v3382
      %v3421 = vadd.f32 %v3413, %v3385
      %v3422 = vadd.f32 %v3414, %v3390
      %v3423 = vadd.f32 %v3415, %v3393
      %v3424 = vadd.f32 %v3416, %v3398
      %v3425 = vadd.f32 %v3417, %v3401
      %v3426 = vadd.f32 %v3418, %v3406
      %v3427 = vadd.f32 %v3419, %v3409
      %3428 = vst.msk [vmem:[#allocation2] sm:$0xff] %vm502, %v3420
      %3429 = vst.msk [vmem:[#allocation2 + $0x8] sm:$0xff] %vm502, %v3421
      %3430 = vst.msk [vmem:[#allocation2 + $0x10] sm:$0xff] %vm502, %v3422
      %3431 = vst.msk [vmem:[#allocation2 + $0x18] sm:$0xff] %vm502, %v3423
      %3432 = vst.msk [vmem:[#allocation2 + $0x20] sm:$0xff] %vm502, %v3424
      %3433 = vst.msk [vmem:[#allocation2 + $0x28] sm:$0xff] %vm502, %v3425
      %3434 = vst.msk [vmem:[#allocation2 + $0x30] sm:$0xff] %vm502, %v3426
      %3435 = vst.msk [vmem:[#allocation2 + $0x38] sm:$0xff] %vm502, %v3427
      %v3436 = vld [vmem:[#allocation2] sm:$0xff]
      %v3437 = vld [vmem:[#allocation2 + $0x8] sm:$0xff]
      %v3438 = vld [vmem:[#allocation2 + $0x10] sm:$0xff]
      %v3439 = vld [vmem:[#allocation2 + $0x18] sm:$0xff]
      %v3440 = vld [vmem:[#allocation2 + $0x20] sm:$0xff]
      %v3441 = vld [vmem:[#allocation2 + $0x28] sm:$0xff]
      %v3442 = vld [vmem:[#allocation2 + $0x30] sm:$0xff]
      %v3443 = vld [vmem:[#allocation2 + $0x38] sm:$0xff]
      %v3444 = vpack.c.bf16 %v3436, %v3436
      %v3445 = vpack.c.bf16 %v3437, %v3437
      %v3446 = vpack.c.bf16 %v3438, %v3438
      %v3447 = vpack.c.bf16 %v3439, %v3439
      %v3448 = vpack.c.bf16 %v3440, %v3440
      %v3449 = vpack.c.bf16 %v3441, %v3441
      %v3450 = vpack.c.bf16 %v3442, %v3442
      %v3451 = vpack.c.bf16 %v3443, %v3443
      %vm3452 = vcmask 60416
      %3453 = vst.msk [vmem:[%s371] sm:$0xf] %vm3452, %v3444
      %3454 = vst.msk [vmem:[%s371 + $0x4] sm:$0xf] %vm3452, %v3445
      %3455 = vst.msk [vmem:[%s371 + $0x8] sm:$0xf] %vm3452, %v3446
      %3456 = vst.msk [vmem:[%s371 + $0xc] sm:$0xf] %vm3452, %v3447
      %3457 = vst.msk [vmem:[%s371 + $0x10] sm:$0xf] %vm3452, %v3448
      %3458 = vst.msk [vmem:[%s371 + $0x14] sm:$0xf] %vm3452, %v3449
      %3459 = vst.msk [vmem:[%s371 + $0x18] sm:$0xf] %vm3452, %v3450
      %3460 = vst.msk [vmem:[%s371 + $0x1c] sm:$0xf] %vm3452, %v3451
      %v3461 = vld [vmem:[%s375] sm:$0x1]
      %v3462 = vsel %vm502, %v3436, 0.0
      %v3463 = vsel %vm502, %v3437, 0.0
      %v3464 = vadd.f32 %v3462, %v3463
      %v3465 = vsel %vm502, %v3438, 0.0
      %v3466 = vadd.f32 %v3464, %v3465
      %v3467 = vsel %vm502, %v3439, 0.0
      %v3468 = vadd.f32 %v3466, %v3467
      %v3469 = vsel %vm502, %v3440, 0.0
      %v3470 = vadd.f32 %v3468, %v3469
      %v3471 = vsel %vm502, %v3441, 0.0
      %v3472 = vadd.f32 %v3470, %v3471
      %v3473 = vsel %vm502, %v3442, 0.0
      %v3474 = vadd.f32 %v3472, %v3473
      %v3475 = vsel %vm502, %v3443, 0.0
      %v3476 = vadd.f32 %v3474, %v3475
      %v3477 = vrot.slane %v3476, 4
      %v3478 = vadd.f32 %v3476, %v3477
      %v3479 = vrot.slane %v3478, 2
      %v3480 = vadd.f32 %v3478, %v3479
      %v3481 = vrot.slane %v3480, 1
      %v3482 = vadd.f32 %v3480, %v3481
      %v3483 = vadd.f32 %v3461, %v3482
      %vm3484 = vcmask 57344
      %3485 = vst.msk [vmem:[%s375] sm:$0x1] %vm3484, %v3483
      %v3486 = vld [vmem:[%s378] sm:$0x1]
      %v3487 = vmul.f32 %v3436, %v3436
      %v3488 = vmul.f32 %v3437, %v3437
      %v3489 = vmul.f32 %v3438, %v3438
      %v3490 = vmul.f32 %v3439, %v3439
      %v3491 = vmul.f32 %v3440, %v3440
      %v3492 = vmul.f32 %v3441, %v3441
      %v3493 = vmul.f32 %v3442, %v3442
      %v3494 = vmul.f32 %v3443, %v3443
      %v3495 = vsel %vm502, %v3487, 0.0
      %v3496 = vsel %vm502, %v3488, 0.0
      %v3497 = vadd.f32 %v3495, %v3496
      %v3498 = vsel %vm502, %v3489, 0.0
      %v3499 = vadd.f32 %v3497, %v3498
      %v3500 = vsel %vm502, %v3490, 0.0
      %v3501 = vadd.f32 %v3499, %v3500
      %v3502 = vsel %vm502, %v3491, 0.0
      %v3503 = vadd.f32 %v3501, %v3502
      %v3504 = vsel %vm502, %v3492, 0.0
      %v3505 = vadd.f32 %v3503, %v3504
      %v3506 = vsel %vm502, %v3493, 0.0
      %v3507 = vadd.f32 %v3505, %v3506
      %v3508 = vsel %vm502, %v3494, 0.0
      %v3509 = vadd.f32 %v3507, %v3508
      %v3510 = vrot.slane %v3509, 4
      %v3511 = vadd.f32 %v3509, %v3510
      %v3512 = vrot.slane %v3511, 2
      %v3513 = vadd.f32 %v3511, %v3512
      %v3514 = vrot.slane %v3513, 1
      %v3515 = vadd.f32 %v3513, %v3514
      %v3516 = vadd.f32 %v3486, %v3515
      %3517 = vst.msk [vmem:[%s378] sm:$0x1] %vm3484, %v3516
      %s3518 = smul.u32 8, %s24
      %p3519 = scmp.lt.s32.totalorder %s23, 1
      %s3520 = scalar_select %p3519, %s23, 1
      %p3521 = scmp.lt.s32.totalorder %s3518, 7
      %s3522 = scalar_select %p3521, %s3518, 7
      %s3523 = smul.addr %s3520, 8
      %s3524 = sadd.s32 %s3522, %s3523
      %s3525 = smul.addr %s3524, 4
      %s3526 = scalar_lea.vmem %s5, %s3525
      %p3527 = scmp.lt.s32.totalorder %s23, 1
      %s3528 = scalar_select %p3527, %s23, 1
      %s3529 = scalar_lea.vmem %s6, %s3528
      %p3530 = scmp.lt.s32.totalorder %s23, 1
      %s3531 = scalar_select %p3530, %s23, 1
      %s3532 = scalar_lea.vmem %s7, %s3531
      // Predicated region
      $region45: #{downblock_forward.2} parent=39 // pred_check
        %p3533 = pneg %p176
      $region46: #{downblock_forward.2} parent=39 // pred_check_branch
        %3535 = sbr.rel (%p3533) target = $region48
      $region47: #{downblock_forward.2} parent=39 // pred_region
        %s3536 = smul.u32 8, %s24
      $region48: #{downblock_forward.2} parent=39 // pred_fallthru
        _
      // Predicated region
      $region49: #{downblock_forward.2} parent=39 // pred_check
        %p3537 = pneg %p202
      $region50: #{downblock_forward.2} parent=39 // pred_check_branch
        %3539 = sbr.rel (%p3537) target = $region52
      $region51: #{downblock_forward.2} parent=39 // pred_region
        _
      $region52: #{downblock_forward.2} parent=39 // pred_fallthru
        _
      // Predicated region
      $region53: #{downblock_forward.2} parent=39 // pred_check
        %p3540 = pneg %p228
      $region54: #{downblock_forward.2} parent=39 // pred_check_branch
        %3542 = sbr.rel (%p3540) target = $region56
      $region55: #{downblock_forward.2} parent=39 // pred_region
        _
      $region56: #{downblock_forward.2} parent=39 // pred_fallthru
        _
    $region40: #{downblock_forward.2} parent=5 // pred_fallthru
      _
    %p3543 = scmp.le.s32.totalorder 2, %s14
    // Predicated region
    $region57: #{downblock_forward.2} parent=5 // pred_check
      %p3544 = pneg %p3543
    $region58: #{downblock_forward.2} parent=5 // pred_check_branch
      %3546 = sbr.rel (%p3544) target = $region60
    $region59: #{downblock_forward.2} parent=5 // pred_region
      %s3547 = ssub.s32 %s14, 2
      // Predicated region
      $region61: #{downblock_forward.2} parent=59 // pred_check
        %p3548 = pneg %p182
      $region62: #{downblock_forward.2} parent=59 // pred_check_branch
        %3550 = sbr.rel (%p3548) target = $region64
      $region63: #{downblock_forward.2} parent=59 // pred_region
        %s3551 = smul.u32 8, %s26
        %p3552 = scmp.lt.s32.totalorder %s25, 1
        %s3553 = scalar_select %p3552, %s25, 1
        %p3554 = scmp.lt.s32.totalorder %s3551, 7
        %s3555 = scalar_select %p3554, %s3551, 7
        %s3556 = smul.addr %s3553, 8
        %s3557 = sadd.s32 %s3555, %s3556
        %s3558 = smul.addr %s3557, 4
        %s3559 = scalar_lea.vmem %s5, %s3558
      $region64: #{downblock_forward.2} parent=59 // pred_fallthru
        _
      // Predicated region
      $region65: #{downblock_forward.2} parent=59 // pred_check
        %p3560 = pneg %p208
      $region66: #{downblock_forward.2} parent=59 // pred_check_branch
        %3562 = sbr.rel (%p3560) target = $region68
      $region67: #{downblock_forward.2} parent=59 // pred_region
        %p3563 = scmp.lt.s32.totalorder %s25, 1
        %s3564 = scalar_select %p3563, %s25, 1
        %s3565 = scalar_lea.vmem %s6, %s3564
      $region68: #{downblock_forward.2} parent=59 // pred_fallthru
        _
      // Predicated region
      $region69: #{downblock_forward.2} parent=59 // pred_check
        %p3566 = pneg %p234
      $region70: #{downblock_forward.2} parent=59 // pred_check_branch
        %3568 = sbr.rel (%p3566) target = $region72
      $region71: #{downblock_forward.2} parent=59 // pred_region
        %p3569 = scmp.lt.s32.totalorder %s25, 1
        %s3570 = scalar_select %p3569, %s25, 1
        %s3571 = scalar_lea.vmem %s7, %s3570
      $region72: #{downblock_forward.2} parent=59 // pred_fallthru
        _
    $region60: #{downblock_forward.2} parent=5 // pred_fallthru
      _
  $region6: #{downblock_forward.2} parent=0 // loop_footer
    %s18 = sadd.s32 1, %s14
  $region7: #{downblock_forward.2} parent=0 // loop_footer_branch
    %13 = sbr.rel target = $region3
  $region8: #{downblock_forward.2} parent=0 // loop_exit
    _

</llo_original>
